<compile_context>
chip_gen: v7x
topology: tpu7x:2x2x1
jax: 0.10.0
libtpu: 0.0.40
codegen_flags: <defaults>
</compile_context>

<pallas_src>
import jax
import jax.numpy as jnp
from jax.experimental import pallas as pl
from jax.experimental.pallas import tpu as pltpu

LATENT_DIM = 8
HIDDEN = 512

_TILE_CANDIDATES = (128, 256, 512, 1024)
_STEP_OVERHEAD_ROWS = 128  # ~0.35 us fixed per grid step, expressed in row-equivalents


def discriminator_kernel(z_ref,
                         w1_ref, b1_ref,
                         w2_ref, b2_ref,
                         w3_ref, b3_ref,
                         w4_ref, b4_ref,
                         w5_ref, b5_ref,
                         out_ref):
    """Whole 5-layer MLP for one batch tile; all weights resident in VMEM."""

    def dense_relu(h_f32, w_ref, b_ref):
        # bf16 x bf16 matmul with f32 accumulation = native MXU path.
        h = jnp.dot(h_f32.astype(jnp.bfloat16), w_ref[...],
                    preferred_element_type=jnp.float32) + b_ref[...]
        return jnp.maximum(h, 0.0)

    h = dense_relu(z_ref[...], w1_ref, b1_ref)   # (bt, 512)
    h = dense_relu(h, w2_ref, b2_ref)
    h = dense_relu(h, w3_ref, b3_ref)
    h = dense_relu(h, w4_ref, b4_ref)

    # Final 512 -> 1 layer on the VPU/XLU instead of a wasted N=1 MXU pass:
    # elementwise multiply with the (1, 512) weight row, reduce over lanes.
    w5 = w5_ref[...].astype(jnp.float32)                     # (1, 512)
    logit = jnp.sum(h * w5, axis=-1)                         # (bt,)
    # Lane-dense store: one (1, bt) full-lane row per grid step.
    out_ref[...] = jax.nn.sigmoid(logit[None, :] + b5_ref[...]).astype(out_ref.dtype)


def _round_up(x, m):
    return ((x + m - 1) // m) * m


def _choose_batch_tile(B, max_tile):
    """Pick a 128-aligned batch tile that minimizes padded compute + per-step
    overhead, preferring >= 2 grid steps when the batch allows it (v7x: 2 TCs)."""
    max_tile = max(int(max_tile), 128)
    cap = min(max_tile, _round_up(B, 128))
    cands = [t for t in _TILE_CANDIDATES if t <= cap] or [128]

    def score(bt):
        Bp = _round_up(B, bt)
        n = Bp // bt
        single = 1 if (n < 2 and B > _TILE_CANDIDATES[0]) else 0   # keep both v7x TCs busy
        cost = Bp + n * _STEP_OVERHEAD_ROWS                         # padded rows + step overhead
        return (single, cost, -bt)                                  # ties -> larger tile

    return min(cands, key=score)


def discriminator_forward(z, params, *, batch_tile=None, max_batch_tile=1024):
    """z: [B, latent_dim] float32 -> [B, 1] float32 sigmoid probabilities."""
    z = jnp.asarray(z, jnp.float32)
    B, D = z.shape
    assert D == LATENT_DIM
    (w1, b1), (w2, b2), (w3, b3), (w4, b4), (w5, b5) = params

    # 128-aligned batch tile (MXU-aligned M, unmasked full-lane output stores);
    # arbitrary B handled by padding, not by shrinking the tile below 128.
    if batch_tile is None:
        bt = _choose_batch_tile(B, max_batch_tile)
    else:
        bt = _round_up(max(int(batch_tile), 128), 128)
    Bp = _round_up(B, bt)
    if Bp != B:
        z = jnp.pad(z, ((0, Bp - B), (0, 0)))
    num_tiles = Bp // bt

    # bf16 weights (MXU fast path, halves weight VMEM); biases stay f32.
    bf = jnp.bfloat16
    w1b, w2b, w3b, w4b = (w.astype(bf) for w in (w1, w2, w3, w4))
    w5b = w5.reshape(1, HIDDEN).astype(bf)           # row vector for the VPU final layer
    b1f, b2f, b3f, b4f = (b.astype(jnp.float32) for b in (b1, b2, b3, b4))
    b5f = b5.reshape(1, 1).astype(jnp.float32)

    def whole(arr):
        # Constant block index across the grid -> Pallas does not re-DMA the
        # weights between consecutive steps.
        return pl.BlockSpec(arr.shape, lambda i: (0, 0))

    in_specs = [
        pl.BlockSpec((bt, LATENT_DIM), lambda i: (i, 0)),
        whole(w1b), whole(b1f),
        whole(w2b), whole(b2f),
        whole(w3b), whole(b3f),
        whole(w4b), whole(b4f),
        whole(w5b), whole(b5f),
    ]
    # Packed, lane-dense output: one (1, bt) row per grid step.
    out_spec = pl.BlockSpec((1, bt), lambda i: (i, 0))

    out = pl.pallas_call(
        discriminator_kernel,
        out_shape=jax.ShapeDtypeStruct((num_tiles, bt), jnp.float32),
        grid_spec=pltpu.PrefetchScalarGridSpec(
            num_scalar_prefetch=0,
            grid=(num_tiles,),
            in_specs=in_specs,
            out_specs=out_spec,
        ),
        compiler_params=pltpu.CompilerParams(
            # Batch tiles are independent -> shard across TensorCores on v7x.
            dimension_semantics=("parallel",),
            # >= 32 MiB: bt=1024 activations (~2 MiB each, several live) + ~3 MiB
            # of double-buffered weights; above v5e's 16 MiB default scoped VMEM.
            vmem_limit_bytes=32 * 1024 * 1024,
        ),
    )(z, w1b, b1f, w2b, b2f, w3b, b3f, w4b, b4f, w5b, b5f)

    return out.reshape(Bp, 1)[:B]


def init_params(key):
    """PyTorch nn.Linear default init: U(-1/sqrt(fan_in), 1/sqrt(fan_in)); (in, out) layout."""
    dims = [(LATENT_DIM, HIDDEN), (HIDDEN, HIDDEN), (HIDDEN, HIDDEN),
            (HIDDEN, HIDDEN), (HIDDEN, 1)]
    params = []
    for (fan_in, fan_out) in dims:
        key, kw, kb = jax.random.split(key, 3)
        bound = 1.0 / (fan_in ** 0.5)
        w = jax.random.uniform(kw, (fan_in, fan_out), jnp.float32, -bound, bound)
        b = jax.random.uniform(kb, (1, fan_out), jnp.float32, -bound, bound)
        params.append((w, b))
    return params


def reference_forward(z, params):
    """Pure-JAX f32 reference matching the PyTorch module."""
    h = z
    for i, (w, b) in enumerate(params):
        h = h @ w + b
        if i < len(params) - 1:
            h = jnp.maximum(h, 0.0)
    return jax.nn.sigmoid(h)


if __name__ == "__main__":
    key = jax.random.PRNGKey(0)
    kz1, kz2, kp = jax.random.split(key, 3)
    params = init_params(kp)

    # Small batch, non-multiple of 128 -> single 128-row tile with padded rows.
    B1 = 20
    z1 = jax.random.normal(kz1, (B1, LATENT_DIM), jnp.float32)
    ref1 = reference_forward(z1, params)
    out1 = jax.block_until_ready(discriminator_forward(z1, params))
    assert out1.shape == (B1, 1)
    err1 = jnp.max(jnp.abs(out1 - ref1))
    # bf16 matmul inputs (f32 accumulation) -> loosened tolerance vs f32 reference.
    assert jnp.allclose(out1, ref1, atol=2e-2, rtol=2e-2), f"mismatch: max abs err = {err1}"

    # Batch above one tile -> adaptive chooser picks 2 x 128 grid steps
    # (multi-tile path + padded tail; both TensorCores on v7x).
    B2 = 200
    z2 = jax.random.normal(kz2, (B2, LATENT_DIM), jnp.float32)
    ref2 = reference_forward(z2, params)
    out2 = jax.block_until_ready(discriminator_forward(z2, params))
    assert out2.shape == (B2, 1)
    err2 = jnp.max(jnp.abs(out2 - ref2))
    assert jnp.allclose(out2, ref2, atol=2e-2, rtol=2e-2), f"mismatch: max abs err = {err2}"

    print("KERNEL_OK")
</pallas_src>

<mosaic_0001>
module attributes {stable_mosaic.version = 11 : i64} {
  func.func @discriminator_kernel(%arg0: i32, %arg1: memref<128x8xf32, #tpu.memory_space<vmem>>, %arg2: memref<8x512xbf16, #tpu.memory_space<vmem>>, %arg3: memref<1x512xf32, #tpu.memory_space<vmem>>, %arg4: memref<512x512xbf16, #tpu.memory_space<vmem>>, %arg5: memref<1x512xf32, #tpu.memory_space<vmem>>, %arg6: memref<512x512xbf16, #tpu.memory_space<vmem>>, %arg7: memref<1x512xf32, #tpu.memory_space<vmem>>, %arg8: memref<512x512xbf16, #tpu.memory_space<vmem>>, %arg9: memref<1x512xf32, #tpu.memory_space<vmem>>, %arg10: memref<1x512xbf16, #tpu.memory_space<vmem>>, %arg11: memref<1x1xf32, #tpu.memory_space<vmem>>, %arg12: memref<1x128xf32, #tpu.memory_space<vmem>>) attributes {dimension_semantics = [#tpu.dimension_semantics<parallel>], iteration_bounds = array<i64: 1>, scalar_prefetch = 0 : i64, scratch_operands = 0 : i64, tpu.core_type = #tpu.core_type<tc>, window_params = [{transform_indices = @transform_0, window_bounds = array<i64: 128, 8>}, {pipeline_mode = #tpu.pipeline_mode<synchronous>, transform_indices = @transform_1, window_bounds = array<i64: 8, 512>}, {pipeline_mode = #tpu.pipeline_mode<synchronous>, transform_indices = @transform_2, window_bounds = array<i64: 1, 512>}, {pipeline_mode = #tpu.pipeline_mode<synchronous>, transform_indices = @transform_3, window_bounds = array<i64: 512, 512>}, {pipeline_mode = #tpu.pipeline_mode<synchronous>, transform_indices = @transform_4, window_bounds = array<i64: 1, 512>}, {pipeline_mode = #tpu.pipeline_mode<synchronous>, transform_indices = @transform_5, window_bounds = array<i64: 512, 512>}, {pipeline_mode = #tpu.pipeline_mode<synchronous>, transform_indices = @transform_6, window_bounds = array<i64: 1, 512>}, {pipeline_mode = #tpu.pipeline_mode<synchronous>, transform_indices = @transform_7, window_bounds = array<i64: 512, 512>}, {pipeline_mode = #tpu.pipeline_mode<synchronous>, transform_indices = @transform_8, window_bounds = array<i64: 1, 512>}, {pipeline_mode = #tpu.pipeline_mode<synchronous>, transform_indices = @transform_9, window_bounds = array<i64: 1, 512>}, {pipeline_mode = #tpu.pipeline_mode<synchronous>, transform_indices = @transform_10, window_bounds = array<i64: 1, 1>}, {transform_indices = @transform_11, window_bounds = array<i64: 1, 128>}]} {
    %c0 = arith.constant 0 : index
    %c0_0 = arith.constant 0 : index
    %0 = vector.load %arg1[%c0, %c0_0] : memref<128x8xf32, #tpu.memory_space<vmem>>, vector<128x8xf32>
    %1 = arith.truncf %0 : vector<128x8xf32> to vector<128x8xbf16>
    %c0_1 = arith.constant 0 : index
    %c0_2 = arith.constant 0 : index
    %2 = vector.load %arg2[%c0_1, %c0_2] : memref<8x512xbf16, #tpu.memory_space<vmem>>, vector<8x512xbf16>
    %cst = arith.constant dense<0.000000e+00> : vector<128x512xf32>
    %3 = tpu.matmul %1, %2, %cst {dimension_numbers = #tpu.dot_dimension_numbers<[1], [0], [0], [1], [0, 0, 1, 1], [], []>} : vector<128x8xbf16>, vector<8x512xbf16>, vector<128x512xf32> -> vector<128x512xf32>
    %c0_3 = arith.constant 0 : index
    %c0_4 = arith.constant 0 : index
    %4 = vector.load %arg3[%c0_3, %c0_4] : memref<1x512xf32, #tpu.memory_space<vmem>>, vector<1x512xf32>
    %5 = vector.broadcast %4 : vector<1x512xf32> to vector<128x512xf32>
    %6 = arith.addf %3, %5 : vector<128x512xf32>
    %cst_5 = arith.constant 0.000000e+00 : f32
    %7 = vector.broadcast %cst_5 : f32 to vector<128x512xf32>
    %8 = arith.maximumf %6, %7 : vector<128x512xf32>
    %9 = arith.truncf %8 : vector<128x512xf32> to vector<128x512xbf16>
    %c0_6 = arith.constant 0 : index
    %c0_7 = arith.constant 0 : index
    %10 = vector.load %arg4[%c0_6, %c0_7] : memref<512x512xbf16, #tpu.memory_space<vmem>>, vector<512x512xbf16>
    %cst_8 = arith.constant dense<0.000000e+00> : vector<128x512xf32>
    %11 = tpu.matmul %9, %10, %cst_8 {dimension_numbers = #tpu.dot_dimension_numbers<[1], [0], [0], [1], [0, 0, 1, 1], [], []>} : vector<128x512xbf16>, vector<512x512xbf16>, vector<128x512xf32> -> vector<128x512xf32>
    %c0_9 = arith.constant 0 : index
    %c0_10 = arith.constant 0 : index
    %12 = vector.load %arg5[%c0_9, %c0_10] : memref<1x512xf32, #tpu.memory_space<vmem>>, vector<1x512xf32>
    %13 = vector.broadcast %12 : vector<1x512xf32> to vector<128x512xf32>
    %14 = arith.addf %11, %13 : vector<128x512xf32>
    %cst_11 = arith.constant 0.000000e+00 : f32
    %15 = vector.broadcast %cst_11 : f32 to vector<128x512xf32>
    %16 = arith.maximumf %14, %15 : vector<128x512xf32>
    %17 = arith.truncf %16 : vector<128x512xf32> to vector<128x512xbf16>
    %c0_12 = arith.constant 0 : index
    %c0_13 = arith.constant 0 : index
    %18 = vector.load %arg6[%c0_12, %c0_13] : memref<512x512xbf16, #tpu.memory_space<vmem>>, vector<512x512xbf16>
    %cst_14 = arith.constant dense<0.000000e+00> : vector<128x512xf32>
    %19 = tpu.matmul %17, %18, %cst_14 {dimension_numbers = #tpu.dot_dimension_numbers<[1], [0], [0], [1], [0, 0, 1, 1], [], []>} : vector<128x512xbf16>, vector<512x512xbf16>, vector<128x512xf32> -> vector<128x512xf32>
    %c0_15 = arith.constant 0 : index
    %c0_16 = arith.constant 0 : index
    %20 = vector.load %arg7[%c0_15, %c0_16] : memref<1x512xf32, #tpu.memory_space<vmem>>, vector<1x512xf32>
    %21 = vector.broadcast %20 : vector<1x512xf32> to vector<128x512xf32>
    %22 = arith.addf %19, %21 : vector<128x512xf32>
    %cst_17 = arith.constant 0.000000e+00 : f32
    %23 = vector.broadcast %cst_17 : f32 to vector<128x512xf32>
    %24 = arith.maximumf %22, %23 : vector<128x512xf32>
    %25 = arith.truncf %24 : vector<128x512xf32> to vector<128x512xbf16>
    %c0_18 = arith.constant 0 : index
    %c0_19 = arith.constant 0 : index
    %26 = vector.load %arg8[%c0_18, %c0_19] : memref<512x512xbf16, #tpu.memory_space<vmem>>, vector<512x512xbf16>
    %cst_20 = arith.constant dense<0.000000e+00> : vector<128x512xf32>
    %27 = tpu.matmul %25, %26, %cst_20 {dimension_numbers = #tpu.dot_dimension_numbers<[1], [0], [0], [1], [0, 0, 1, 1], [], []>} : vector<128x512xbf16>, vector<512x512xbf16>, vector<128x512xf32> -> vector<128x512xf32>
    %c0_21 = arith.constant 0 : index
    %c0_22 = arith.constant 0 : index
    %28 = vector.load %arg9[%c0_21, %c0_22] : memref<1x512xf32, #tpu.memory_space<vmem>>, vector<1x512xf32>
    %29 = vector.broadcast %28 : vector<1x512xf32> to vector<128x512xf32>
    %30 = arith.addf %27, %29 : vector<128x512xf32>
    %cst_23 = arith.constant 0.000000e+00 : f32
    %31 = vector.broadcast %cst_23 : f32 to vector<128x512xf32>
    %32 = arith.maximumf %30, %31 : vector<128x512xf32>
    %c0_24 = arith.constant 0 : index
    %c0_25 = arith.constant 0 : index
    %33 = vector.load %arg10[%c0_24, %c0_25] : memref<1x512xbf16, #tpu.memory_space<vmem>>, vector<1x512xbf16>
    %34 = arith.extf %33 : vector<1x512xbf16> to vector<1x512xf32>
    %35 = vector.broadcast %34 : vector<1x512xf32> to vector<128x512xf32>
    %36 = arith.mulf %32, %35 : vector<128x512xf32>
    %cst_26 = arith.constant dense<0.000000e+00> : vector<128xf32>
    %37 = vector.multi_reduction <add>, %36, %cst_26 [1] : vector<128x512xf32> to vector<128xf32>
    %38 = vector.shape_cast %37 : vector<128xf32> to vector<1x128xf32>
    %c0_27 = arith.constant 0 : index
    %c0_28 = arith.constant 0 : index
    %39 = vector.load %arg11[%c0_27, %c0_28] : memref<1x1xf32, #tpu.memory_space<vmem>>, vector<1x1xf32>
    %40 = vector.broadcast %39 : vector<1x1xf32> to vector<1x128xf32>
    %41 = arith.addf %38, %40 : vector<1x128xf32>
    %42 = arith.negf %41 : vector<1x128xf32>
    %43 = math.exp %42 : vector<1x128xf32>
    %cst_29 = arith.constant 1.000000e+00 : f32
    %44 = vector.broadcast %cst_29 : f32 to vector<1x128xf32>
    %45 = arith.addf %44, %43 : vector<1x128xf32>
    %46 = arith.divf %44, %45 : vector<1x128xf32>
    %c0_30 = arith.constant 0 : index
    %c0_31 = arith.constant 0 : index
    %47 = vector.load %arg12[%c0_30, %c0_31] : memref<1x128xf32, #tpu.memory_space<vmem>>, vector<1x128xf32>
    tpu.vector_store %arg12[%c0_30, %c0_31], %46 {strides = array<i32>} : memref<1x128xf32, #tpu.memory_space<vmem>>, vector<1x128xf32>,
    return
  }
  func.func @transform_0(%arg0: i32) -> (i32, i32) {
    %c0_i32 = arith.constant 0 : i32
    %c0_i32_0 = arith.constant 0 : i32
    return %arg0, %c0_i32 : i32, i32
  }
  func.func @transform_1(%arg0: i32) -> (i32, i32) {
    %c0_i32 = arith.constant 0 : i32
    %c0_i32_0 = arith.constant 0 : i32
    %c0_i32_1 = arith.constant 0 : i32
    return %c0_i32, %c0_i32_0 : i32, i32
  }
  func.func @transform_2(%arg0: i32) -> (i32, i32) {
    %c0_i32 = arith.constant 0 : i32
    %c0_i32_0 = arith.constant 0 : i32
    %c0_i32_1 = arith.constant 0 : i32
    return %c0_i32, %c0_i32_0 : i32, i32
  }
  func.func @transform_3(%arg0: i32) -> (i32, i32) {
    %c0_i32 = arith.constant 0 : i32
    %c0_i32_0 = arith.constant 0 : i32
    %c0_i32_1 = arith.constant 0 : i32
    return %c0_i32, %c0_i32_0 : i32, i32
  }
  func.func @transform_4(%arg0: i32) -> (i32, i32) {
    %c0_i32 = arith.constant 0 : i32
    %c0_i32_0 = arith.constant 0 : i32
    %c0_i32_1 = arith.constant 0 : i32
    return %c0_i32, %c0_i32_0 : i32, i32
  }
  func.func @transform_5(%arg0: i32) -> (i32, i32) {
    %c0_i32 = arith.constant 0 : i32
    %c0_i32_0 = arith.constant 0 : i32
    %c0_i32_1 = arith.constant 0 : i32
    return %c0_i32, %c0_i32_0 : i32, i32
  }
  func.func @transform_6(%arg0: i32) -> (i32, i32) {
    %c0_i32 = arith.constant 0 : i32
    %c0_i32_0 = arith.constant 0 : i32
    %c0_i32_1 = arith.constant 0 : i32
    return %c0_i32, %c0_i32_0 : i32, i32
  }
  func.func @transform_7(%arg0: i32) -> (i32, i32) {
    %c0_i32 = arith.constant 0 : i32
    %c0_i32_0 = arith.constant 0 : i32
    %c0_i32_1 = arith.constant 0 : i32
    return %c0_i32, %c0_i32_0 : i32, i32
  }
  func.func @transform_8(%arg0: i32) -> (i32, i32) {
    %c0_i32 = arith.constant 0 : i32
    %c0_i32_0 = arith.constant 0 : i32
    %c0_i32_1 = arith.constant 0 : i32
    return %c0_i32, %c0_i32_0 : i32, i32
  }
  func.func @transform_9(%arg0: i32) -> (i32, i32) {
    %c0_i32 = arith.constant 0 : i32
    %c0_i32_0 = arith.constant 0 : i32
    %c0_i32_1 = arith.constant 0 : i32
    return %c0_i32, %c0_i32_0 : i32, i32
  }
  func.func @transform_10(%arg0: i32) -> (i32, i32) {
    %c0_i32 = arith.constant 0 : i32
    %c0_i32_0 = arith.constant 0 : i32
    %c0_i32_1 = arith.constant 0 : i32
    return %c0_i32, %c0_i32_0 : i32, i32
  }
  func.func @transform_11(%arg0: i32) -> (i32, i32) {
    %c0_i32 = arith.constant 0 : i32
    %c0_i32_0 = arith.constant 0 : i32
    return %arg0, %c0_i32 : i32, i32
  }
}

</mosaic_0001>

<llo_original>
// kernel: tpu_custom_call.1
$region0: #{tpu_custom_call.1}
  #allocation0 [shape = 'u32[]', space=smem, size = 0x4, offset = 0x4, fixed_abs, tag = 'smem constant byte address 0x4 - core index']
  #allocation1 [shape = 'u32[144,128]{1,0:T(1,128)}', space=vmem, size = 0x12000, scoped, tag = 'internal scratch']
  #allocation2 [shape = 'f32[1,1]{1,0:T(1,128)S(1)}', space=vmem, size = 0x200, scoped, tag = 'scoped memory for tpu_custom_call.1']
  %s0 = inlined_call_operand.vmem [shape: f32[128,8], index: 0, kind: input, shape index: {}]
  %s1 = inlined_call_operand.vmem [shape: bf16[8,512], index: 1, kind: input, shape index: {}]
  %s2 = inlined_call_operand.vmem [shape: f32[1,512], index: 2, kind: input, shape index: {}]
  %s3 = inlined_call_operand.hbm [shape: bf16[512,512], index: 3, kind: input, shape index: {}]
  %s4 = inlined_call_operand.vmem [shape: f32[1,512], index: 4, kind: input, shape index: {}]
  %s5 = inlined_call_operand.hbm [shape: bf16[512,512], index: 5, kind: input, shape index: {}]
  %s6 = inlined_call_operand.vmem [shape: f32[1,512], index: 6, kind: input, shape index: {}]
  %s7 = inlined_call_operand.hbm [shape: bf16[512,512], index: 7, kind: input, shape index: {}]
  %s8 = inlined_call_operand.vmem [shape: f32[1,512], index: 8, kind: input, shape index: {}]
  %s9 = inlined_call_operand.vmem [shape: bf16[1,512], index: 9, kind: input, shape index: {}]
  %s10 = inlined_call_operand.<no memory space> [shape: f32[1,1], index: 10, kind: input, shape index: {}]
  %s11 = inlined_call_operand.hbm [shape: f32[1,128], index: 11, kind: output, shape index: {}]
  %s12 = sld [smem:[#allocation0]]
  $region66: #{tpu_custom_call.1} parent=0
    _
  %s14 = ssub.s32 1, %s12
  %s15 = scalar_select 0, %s14, %s12
  %v16 = vstv %s10
  %17 = vst [vmem:[#allocation2] sm:$0x1] %v16
  $region1: #{tpu_custom_call.1} parent=0
    #allocation3 [shape = 'u8[524288]{0}', space=vmem, size = 0x80000, scoped, tag = 'input window, operand 3, single buffered']
    #allocation4 [shape = 's32[1]{0}', space=sflag, size = 0x4, scoped, tag = 'scoped memory for tpu_custom_call.1']
    #allocation5 [shape = 's32[1]{0}', space=sflag, size = 0x4, scoped, tag = 'scoped memory for tpu_custom_call.1']
    #allocation6 [shape = 'u8[524288]{0}', space=vmem, size = 0x80000, scoped, tag = 'input window, operand 5, single buffered']
    #allocation7 [shape = 's32[1]{0}', space=sflag, size = 0x4, scoped, tag = 'scoped memory for tpu_custom_call.1']
    #allocation8 [shape = 'u8[524288]{0}', space=vmem, size = 0x80000, scoped, tag = 'input window, operand 7, single buffered']
    #allocation9 [shape = 'u8[512]{0}', space=vmem, size = 0x400, scoped, tag = 'output window, operand 0, single buffered']
    %18 = vsyncpa [#allocation4], 0
    %19 = vsyncpa [#allocation7], 0
    %20 = vsyncpa [#allocation5], 0
    // Predicated region
    $region2: #{tpu_custom_call.1} parent=1 // pred_check
      _
    $region3: #{tpu_custom_call.1} parent=1 // pred_check_branch
      %22 = sbr.rel (0) target = $region5
    $region4: #{tpu_custom_call.1} parent=1 // pred_region
      _
    $region5: #{tpu_custom_call.1} parent=1 // pred_fallthru
      _
    // Predicated region
    $region6: #{tpu_custom_call.1} parent=1 // pred_check
      _
    $region7: #{tpu_custom_call.1} parent=1 // pred_check_branch
      %24 = sbr.rel (0) target = $region9
    $region8: #{tpu_custom_call.1} parent=1 // pred_region
      _
    $region9: #{tpu_custom_call.1} parent=1 // pred_fallthru
      _
    // Predicated region
    $region10: #{tpu_custom_call.1} parent=1 // pred_check
      _
    $region11: #{tpu_custom_call.1} parent=1 // pred_check_branch
      %26 = sbr.rel (0) target = $region13
    $region12: #{tpu_custom_call.1} parent=1 // pred_region
      _
    $region13: #{tpu_custom_call.1} parent=1 // pred_fallthru
      _
    // Predicated region
    $region14: #{tpu_custom_call.1} parent=1 // pred_check
      _
    $region15: #{tpu_custom_call.1} parent=1 // pred_check_branch
      %28 = sbr.rel (0) target = $region17
    $region16: #{tpu_custom_call.1} parent=1 // pred_region
      %s30 = ssub.s32 16384, 16384
      %31 = vsyncadd [#allocation4], %s30
      %s32 = sshll.u32 [#allocation3], 4
      %s33 = int_to_ptr.vmem [resolvable:$true] %s32
      %38 = dma.hbm_to_vmem [thread:$0]  %s3, 16384, %s33, [#allocation4], 256, 256, 16
    $region17: #{tpu_custom_call.1} parent=1 // pred_fallthru
      _
    // Predicated region
    $region18: #{tpu_custom_call.1} parent=1 // pred_check
      _
    $region19: #{tpu_custom_call.1} parent=1 // pred_check_branch
      %40 = sbr.rel (0) target = $region21
    $region20: #{tpu_custom_call.1} parent=1 // pred_region
      _
    $region21: #{tpu_custom_call.1} parent=1 // pred_fallthru
      _
    // Predicated region
    $region22: #{tpu_custom_call.1} parent=1 // pred_check
      _
    $region23: #{tpu_custom_call.1} parent=1 // pred_check_branch
      %42 = sbr.rel (0) target = $region25
    $region24: #{tpu_custom_call.1} parent=1 // pred_region
      %s44 = ssub.s32 16384, 16384
      %45 = vsyncadd [#allocation7], %s44
      %s46 = sshll.u32 [#allocation6], 4
      %s47 = int_to_ptr.vmem [resolvable:$true] %s46
      %52 = dma.hbm_to_vmem [thread:$0]  %s5, 16384, %s47, [#allocation7], 256, 256, 16
    $region25: #{tpu_custom_call.1} parent=1 // pred_fallthru
      _
    // Predicated region
    $region26: #{tpu_custom_call.1} parent=1 // pred_check
      _
    $region27: #{tpu_custom_call.1} parent=1 // pred_check_branch
      %54 = sbr.rel (0) target = $region29
    $region28: #{tpu_custom_call.1} parent=1 // pred_region
      _
    $region29: #{tpu_custom_call.1} parent=1 // pred_fallthru
      _
    // Predicated region
    $region30: #{tpu_custom_call.1} parent=1 // pred_check
      _
    $region31: #{tpu_custom_call.1} parent=1 // pred_check_branch
      %56 = sbr.rel (0) target = $region33
    $region32: #{tpu_custom_call.1} parent=1 // pred_region
      %s58 = ssub.s32 16384, 16384
      %59 = vsyncadd [#allocation7], %s58
      %s60 = sshll.u32 [#allocation8], 4
      %s61 = int_to_ptr.vmem [resolvable:$true] %s60
      %66 = dma.hbm_to_vmem [thread:$0]  %s7, 16384, %s61, [#allocation7], 256, 256, 16
    $region33: #{tpu_custom_call.1} parent=1 // pred_fallthru
      _
    // Predicated region
    $region34: #{tpu_custom_call.1} parent=1 // pred_check
      _
    $region35: #{tpu_custom_call.1} parent=1 // pred_check_branch
      %68 = sbr.rel (0) target = $region37
    $region36: #{tpu_custom_call.1} parent=1 // pred_region
      _
    $region37: #{tpu_custom_call.1} parent=1 // pred_fallthru
      _
    // Predicated region
    $region38: #{tpu_custom_call.1} parent=1 // pred_check
      _
    $region39: #{tpu_custom_call.1} parent=1 // pred_check_branch
      %70 = sbr.rel (0) target = $region41
    $region40: #{tpu_custom_call.1} parent=1 // pred_region
      _
    $region41: #{tpu_custom_call.1} parent=1 // pred_fallthru
      _
    // Predicated region
    $region42: #{tpu_custom_call.1} parent=1 // pred_check
      _
    $region43: #{tpu_custom_call.1} parent=1 // pred_check_branch
      %72 = sbr.rel (0) target = $region45
    $region44: #{tpu_custom_call.1} parent=1 // pred_region
      _
    $region45: #{tpu_custom_call.1} parent=1 // pred_fallthru
      _
    // Predicated region
    $region46: #{tpu_custom_call.1} parent=1 // pred_check
      _
    $region47: #{tpu_custom_call.1} parent=1 // pred_check_branch
      %74 = sbr.rel (0) target = $region49
    $region48: #{tpu_custom_call.1} parent=1 // pred_region
      %75 = dma.done [#allocation4], 16384
    $region49: #{tpu_custom_call.1} parent=1 // pred_fallthru
      _
    // Predicated region
    $region50: #{tpu_custom_call.1} parent=1 // pred_check
      _
    $region51: #{tpu_custom_call.1} parent=1 // pred_check_branch
      %77 = sbr.rel (0) target = $region53
    $region52: #{tpu_custom_call.1} parent=1 // pred_region
      %78 = dma.done [#allocation7], 16384
    $region53: #{tpu_custom_call.1} parent=1 // pred_fallthru
      _
    // Predicated region
    $region54: #{tpu_custom_call.1} parent=1 // pred_check
      _
    $region55: #{tpu_custom_call.1} parent=1 // pred_check_branch
      %80 = sbr.rel (0) target = $region57
    $region56: #{tpu_custom_call.1} parent=1 // pred_region
      %81 = dma.done [#allocation7], 16384
    $region57: #{tpu_custom_call.1} parent=1 // pred_fallthru
      _
    %v83 = vld [vmem:[%s0] sm:$0xff]
    %v84 = vld [vmem:[%s0 + $0x8] sm:$0xff]
    %v85 = vld [vmem:[%s0 + $0x10] sm:$0xff]
    %v86 = vld [vmem:[%s0 + $0x18] sm:$0xff]
    %v87 = vld [vmem:[%s0 + $0x20] sm:$0xff]
    %v88 = vld [vmem:[%s0 + $0x28] sm:$0xff]
    %v89 = vld [vmem:[%s0 + $0x30] sm:$0xff]
    %v90 = vld [vmem:[%s0 + $0x38] sm:$0xff]
    %v91 = vld [vmem:[%s0 + $0x40] sm:$0xff]
    %v92 = vld [vmem:[%s0 + $0x48] sm:$0xff]
    %v93 = vld [vmem:[%s0 + $0x50] sm:$0xff]
    %v94 = vld [vmem:[%s0 + $0x58] sm:$0xff]
    %v95 = vld [vmem:[%s0 + $0x60] sm:$0xff]
    %v96 = vld [vmem:[%s0 + $0x68] sm:$0xff]
    %v97 = vld [vmem:[%s0 + $0x70] sm:$0xff]
    %v98 = vld [vmem:[%s0 + $0x78] sm:$0xff]
    %v99 = vpack.c.bf16 %v84, %v83
    %v100 = vpack.c.bf16 %v86, %v85
    %v101 = vpack.c.bf16 %v88, %v87
    %v102 = vpack.c.bf16 %v90, %v89
    %v103 = vpack.c.bf16 %v92, %v91
    %v104 = vpack.c.bf16 %v94, %v93
    %v105 = vpack.c.bf16 %v96, %v95
    %v106 = vpack.c.bf16 %v98, %v97
    %v107 = vld [vmem:[%s1] sm:$0xff]
    %v108 = vld [vmem:[%s1 + $0x8] sm:$0xff]
    %v109 = vld [vmem:[%s2] sm:$0xf]
    %v111 = vlaneseq
    %v112 = vshrl.u32 %v111, 7
    %v113 = vsub.s32 0, %v112
    %v114 = vrot.slane %v109, %v113
    %v115 = vlaneseq
    %v116 = vshrl.u32 %v115, 7
    %v117 = vsub.s32 1, %v116
    %v118 = vrot.slane %v109, %v117
    %v119 = vlaneseq
    %v120 = vshrl.u32 %v119, 7
    %v121 = vsub.s32 2, %v120
    %v122 = vrot.slane %v109, %v121
    %v123 = vlaneseq
    %v124 = vshrl.u32 %v123, 7
    %v125 = vsub.s32 3, %v124
    %v126 = vrot.slane %v109, %v125
    %v133 = vunpack.c.l.b16 %v107
    %v134 = vunpack.c.h.b16 %v107
    %v135 = vunpack.c.l.b16 %v108
    %v136 = vunpack.c.h.b16 %v108
    %v137 = vpack.c.b16 %v133, %v133
    %v138 = vpack.c.b16 %v134, %v134
    %v139 = vpack.c.b16 %v135, %v135
    %v140 = vpack.c.b16 %v136, %v136
    %vm141 = vcmask 64512
    %v143 = vsel %vm141, %v99, 0
    %v146 = vsel %vm141, %v100, 0
    %v149 = vsel %vm141, %v101, 0
    %v152 = vsel %vm141, %v102, 0
    %v155 = vsel %vm141, %v103, 0
    %v158 = vsel %vm141, %v104, 0
    %v161 = vsel %vm141, %v105, 0
    %v164 = vsel %vm141, %v106, 0
    %vm166 = vcmask 1043456
    %v168 = vsel %vm166, %v137, 0
    %v171 = vsel %vm166, %v138, 0
    %v174 = vsel %vm166, %v139, 0
    %v177 = vsel %vm166, %v140, 0
    %179 = vmatprep.subr.bf16.mxu0 %v171
    %180 = vmatpush1.bf16.msra.mxu0 %v168
    %181 = vmatprep.subr.bf16.mxu0 0
    %182 = vmatpush1.bf16.msra.mxu0 0
    %183 = vmatprep.subr.bf16.mxu0 0
    %184 = vmatpush1.bf16.msra.mxu0 0
    %185 = vmatprep.subr.bf16.mxu0 0
    %186 = vmatpush1.bf16.msra.mxu0 0
    %187 = vmatprep.subr.bf16.mxu0 0
    %188 = vmatpush1.bf16.msra.mxu0 0
    %189 = vmatprep.subr.bf16.mxu0 0
    %190 = vmatpush1.bf16.msra.mxu0 0
    %191 = vmatprep.subr.bf16.mxu0 0
    %192 = vmatpush1.bf16.msra.mxu0 0
    %193 = vmatprep.subr.bf16.mxu0 0
    %194 = vmatpush1.bf16.msra.mxu0 0
    %195 = vmatprep.subr.bf16.mxu0 0
    %196 = vmatpush1.bf16.msra.mxu0 0
    %197 = vmatprep.subr.bf16.mxu0 0
    %198 = vmatpush1.bf16.msra.mxu0 0
    %199 = vmatprep.subr.bf16.mxu0 0
    %200 = vmatpush1.bf16.msra.mxu0 0
    %201 = vmatprep.subr.bf16.mxu0 0
    %202 = vmatpush1.bf16.msra.mxu0 0
    %203 = vmatprep.subr.bf16.mxu0 0
    %204 = vmatpush1.bf16.msra.mxu0 0
    %205 = vmatprep.subr.bf16.mxu0 0
    %206 = vmatpush1.bf16.msra.mxu0 0
    %207 = vmatprep.subr.bf16.mxu0 0
    %208 = vmatpush1.bf16.msra.mxu0 0
    %209 = vmatprep.subr.bf16.mxu0 0
    %210 = vmatpush1.bf16.msra.mxu0 0
    %211 = vmatprep.mubr.bf16.mxu0 0
    %212 = vmatmul.mubr.bf16.gmra.mrb[0].mxu0 %v143
    %v213 = vpop.f32.mrb[0].mxu0
    %v214 = vadd.f32 %v114, %v213
    %v215 = vpop.f32.mrb[0].mxu0
    %v216 = vadd.f32 %v118, %v215
    %v217 = vpop.f32.mrb[0].mxu0
    %v218 = vadd.f32 %v114, %v217
    %v219 = vpop.f32.mrb[0].mxu0
    %v220 = vadd.f32 %v118, %v219
    %221 = vmatprep.mubr.bf16.mxu0 0
    %222 = vmatmul.mubr.bf16.gmra.mrb[0].mxu0 %v146
    %v223 = vpop.f32.mrb[0].mxu0
    %v224 = vadd.f32 %v114, %v223
    %v225 = vpop.f32.mrb[0].mxu0
    %v226 = vadd.f32 %v118, %v225
    %v227 = vpop.f32.mrb[0].mxu0
    %v228 = vadd.f32 %v114, %v227
    %v229 = vpop.f32.mrb[0].mxu0
    %v230 = vadd.f32 %v118, %v229
    %231 = vmatprep.mubr.bf16.mxu0 0
    %232 = vmatmul.mubr.bf16.gmra.mrb[0].mxu0 %v149
    %v233 = vpop.f32.mrb[0].mxu0
    %v234 = vadd.f32 %v114, %v233
    %v235 = vpop.f32.mrb[0].mxu0
    %v236 = vadd.f32 %v118, %v235
    %v237 = vpop.f32.mrb[0].mxu0
    %v238 = vadd.f32 %v114, %v237
    %v239 = vpop.f32.mrb[0].mxu0
    %v240 = vadd.f32 %v118, %v239
    %241 = vmatprep.mubr.bf16.mxu0 0
    %242 = vmatmul.mubr.bf16.gmra.mrb[0].mxu0 %v152
    %v243 = vpop.f32.mrb[0].mxu0
    %v244 = vadd.f32 %v114, %v243
    %v245 = vpop.f32.mrb[0].mxu0
    %v246 = vadd.f32 %v118, %v245
    %v247 = vpop.f32.mrb[0].mxu0
    %v248 = vadd.f32 %v114, %v247
    %v249 = vpop.f32.mrb[0].mxu0
    %v250 = vadd.f32 %v118, %v249
    %251 = vmatprep.mubr.bf16.mxu0 0
    %252 = vmatmul.mubr.bf16.gmra.mrb[0].mxu0 %v155
    %v253 = vpop.f32.mrb[0].mxu0
    %v254 = vadd.f32 %v114, %v253
    %v255 = vpop.f32.mrb[0].mxu0
    %v256 = vadd.f32 %v118, %v255
    %v257 = vpop.f32.mrb[0].mxu0
    %v258 = vadd.f32 %v114, %v257
    %v259 = vpop.f32.mrb[0].mxu0
    %v260 = vadd.f32 %v118, %v259
    %261 = vmatprep.mubr.bf16.mxu0 0
    %262 = vmatmul.mubr.bf16.gmra.mrb[0].mxu0 %v158
    %v263 = vpop.f32.mrb[0].mxu0
    %v264 = vadd.f32 %v114, %v263
    %v265 = vpop.f32.mrb[0].mxu0
    %v266 = vadd.f32 %v118, %v265
    %v267 = vpop.f32.mrb[0].mxu0
    %v268 = vadd.f32 %v114, %v267
    %v269 = vpop.f32.mrb[0].mxu0
    %v270 = vadd.f32 %v118, %v269
    %271 = vmatprep.mubr.bf16.mxu0 0
    %272 = vmatmul.mubr.bf16.gmra.mrb[0].mxu0 %v161
    %v273 = vpop.f32.mrb[0].mxu0
    %v274 = vadd.f32 %v114, %v273
    %v275 = vpop.f32.mrb[0].mxu0
    %v276 = vadd.f32 %v118, %v275
    %v277 = vpop.f32.mrb[0].mxu0
    %v278 = vadd.f32 %v114, %v277
    %v279 = vpop.f32.mrb[0].mxu0
    %v280 = vadd.f32 %v118, %v279
    %281 = vmatprep.mubr.bf16.mxu0 0
    %282 = vmatmul.mubr.bf16.gmra.mrb[0].mxu0 %v164
    %v283 = vpop.f32.mrb[0].mxu0
    %v284 = vadd.f32 %v114, %v283
    %v285 = vpop.f32.mrb[0].mxu0
    %v286 = vadd.f32 %v118, %v285
    %v287 = vpop.f32.mrb[0].mxu0
    %v288 = vadd.f32 %v114, %v287
    %v289 = vpop.f32.mrb[0].mxu0
    %v290 = vadd.f32 %v118, %v289
    %291 = vdwg.mxu0
    %292 = vmatprep.subr.bf16.mxu0 %v177
    %293 = vmatpush1.bf16.msra.mxu0 %v174
    %294 = vmatprep.subr.bf16.mxu0 0
    %295 = vmatpush1.bf16.msra.mxu0 0
    %296 = vmatprep.subr.bf16.mxu0 0
    %297 = vmatpush1.bf16.msra.mxu0 0
    %298 = vmatprep.subr.bf16.mxu0 0
    %299 = vmatpush1.bf16.msra.mxu0 0
    %300 = vmatprep.subr.bf16.mxu0 0
    %301 = vmatpush1.bf16.msra.mxu0 0
    %302 = vmatprep.subr.bf16.mxu0 0
    %303 = vmatpush1.bf16.msra.mxu0 0
    %304 = vmatprep.subr.bf16.mxu0 0
    %305 = vmatpush1.bf16.msra.mxu0 0
    %306 = vmatprep.subr.bf16.mxu0 0
    %307 = vmatpush1.bf16.msra.mxu0 0
    %308 = vmatprep.subr.bf16.mxu0 0
    %309 = vmatpush1.bf16.msra.mxu0 0
    %310 = vmatprep.subr.bf16.mxu0 0
    %311 = vmatpush1.bf16.msra.mxu0 0
    %312 = vmatprep.subr.bf16.mxu0 0
    %313 = vmatpush1.bf16.msra.mxu0 0
    %314 = vmatprep.subr.bf16.mxu0 0
    %315 = vmatpush1.bf16.msra.mxu0 0
    %316 = vmatprep.subr.bf16.mxu0 0
    %317 = vmatpush1.bf16.msra.mxu0 0
    %318 = vmatprep.subr.bf16.mxu0 0
    %319 = vmatpush1.bf16.msra.mxu0 0
    %320 = vmatprep.subr.bf16.mxu0 0
    %321 = vmatpush1.bf16.msra.mxu0 0
    %322 = vmatprep.subr.bf16.mxu0 0
    %323 = vmatpush1.bf16.msra.mxu0 0
    %324 = vmatprep.mubr.bf16.mxu0 0
    %325 = vmatmul.mubr.bf16.gmra.mrb[0].mxu0 %v143
    %v326 = vpop.f32.mrb[0].mxu0
    %v327 = vadd.f32 %v122, %v326
    %v328 = vpop.f32.mrb[0].mxu0
    %v329 = vadd.f32 %v126, %v328
    %v330 = vpop.f32.mrb[0].mxu0
    %v331 = vadd.f32 %v122, %v330
    %v332 = vpop.f32.mrb[0].mxu0
    %v333 = vadd.f32 %v126, %v332
    %334 = vmatprep.mubr.bf16.mxu0 0
    %335 = vmatmul.mubr.bf16.gmra.mrb[0].mxu0 %v146
    %v336 = vpop.f32.mrb[0].mxu0
    %v337 = vadd.f32 %v122, %v336
    %v338 = vpop.f32.mrb[0].mxu0
    %v339 = vadd.f32 %v126, %v338
    %v340 = vpop.f32.mrb[0].mxu0
    %v341 = vadd.f32 %v122, %v340
    %v342 = vpop.f32.mrb[0].mxu0
    %v343 = vadd.f32 %v126, %v342
    %344 = vmatprep.mubr.bf16.mxu0 0
    %345 = vmatmul.mubr.bf16.gmra.mrb[0].mxu0 %v149
    %v346 = vpop.f32.mrb[0].mxu0
    %v347 = vadd.f32 %v122, %v346
    %v348 = vpop.f32.mrb[0].mxu0
    %v349 = vadd.f32 %v126, %v348
    %v350 = vpop.f32.mrb[0].mxu0
    %v351 = vadd.f32 %v122, %v350
    %v352 = vpop.f32.mrb[0].mxu0
    %v353 = vadd.f32 %v126, %v352
    %354 = vmatprep.mubr.bf16.mxu0 0
    %355 = vmatmul.mubr.bf16.gmra.mrb[0].mxu0 %v152
    %v356 = vpop.f32.mrb[0].mxu0
    %v357 = vadd.f32 %v122, %v356
    %v358 = vpop.f32.mrb[0].mxu0
    %v359 = vadd.f32 %v126, %v358
    %v360 = vpop.f32.mrb[0].mxu0
    %v361 = vadd.f32 %v122, %v360
    %v362 = vpop.f32.mrb[0].mxu0
    %v363 = vadd.f32 %v126, %v362
    %364 = vmatprep.mubr.bf16.mxu0 0
    %365 = vmatmul.mubr.bf16.gmra.mrb[0].mxu0 %v155
    %v366 = vpop.f32.mrb[0].mxu0
    %v367 = vadd.f32 %v122, %v366
    %v368 = vpop.f32.mrb[0].mxu0
    %v369 = vadd.f32 %v126, %v368
    %v370 = vpop.f32.mrb[0].mxu0
    %v371 = vadd.f32 %v122, %v370
    %v372 = vpop.f32.mrb[0].mxu0
    %v373 = vadd.f32 %v126, %v372
    %374 = vmatprep.mubr.bf16.mxu0 0
    %375 = vmatmul.mubr.bf16.gmra.mrb[0].mxu0 %v158
    %v376 = vpop.f32.mrb[0].mxu0
    %v377 = vadd.f32 %v122, %v376
    %v378 = vpop.f32.mrb[0].mxu0
    %v379 = vadd.f32 %v126, %v378
    %v380 = vpop.f32.mrb[0].mxu0
    %v381 = vadd.f32 %v122, %v380
    %v382 = vpop.f32.mrb[0].mxu0
    %v383 = vadd.f32 %v126, %v382
    %384 = vmatprep.mubr.bf16.mxu0 0
    %385 = vmatmul.mubr.bf16.gmra.mrb[0].mxu0 %v161
    %v386 = vpop.f32.mrb[0].mxu0
    %v387 = vadd.f32 %v122, %v386
    %v388 = vpop.f32.mrb[0].mxu0
    %v389 = vadd.f32 %v126, %v388
    %v390 = vpop.f32.mrb[0].mxu0
    %v391 = vadd.f32 %v122, %v390
    %v392 = vpop.f32.mrb[0].mxu0
    %v393 = vadd.f32 %v126, %v392
    %394 = vmatprep.mubr.bf16.mxu0 0
    %395 = vmatmul.mubr.bf16.gmra.mrb[0].mxu0 %v164
    %v396 = vpop.f32.mrb[0].mxu0
    %v397 = vadd.f32 %v122, %v396
    %v398 = vpop.f32.mrb[0].mxu0
    %v399 = vadd.f32 %v126, %v398
    %v400 = vpop.f32.mrb[0].mxu0
    %v401 = vadd.f32 %v122, %v400
    %v402 = vpop.f32.mrb[0].mxu0
    %v403 = vadd.f32 %v126, %v402
    %404 = vdwg.mxu0
    %v405 = vmax.f32 %v214, 0.0
    %v406 = vmax.f32 %v216, 0.0
    %v407 = vmax.f32 %v327, 0.0
    %v408 = vmax.f32 %v329, 0.0
    %v409 = vmax.f32 %v218, 0.0
    %v410 = vmax.f32 %v220, 0.0
    %v411 = vmax.f32 %v331, 0.0
    %v412 = vmax.f32 %v333, 0.0
    %v413 = vmax.f32 %v224, 0.0
    %v414 = vmax.f32 %v226, 0.0
    %v415 = vmax.f32 %v337, 0.0
    %v416 = vmax.f32 %v339, 0.0
    %v417 = vmax.f32 %v228, 0.0
    %v418 = vmax.f32 %v230, 0.0
    %v419 = vmax.f32 %v341, 0.0
    %v420 = vmax.f32 %v343, 0.0
    %v421 = vmax.f32 %v234, 0.0
    %v422 = vmax.f32 %v236, 0.0
    %v423 = vmax.f32 %v347, 0.0
    %v424 = vmax.f32 %v349, 0.0
    %v425 = vmax.f32 %v238, 0.0
    %v426 = vmax.f32 %v240, 0.0
    %v427 = vmax.f32 %v351, 0.0
    %v428 = vmax.f32 %v353, 0.0
    %v429 = vmax.f32 %v244, 0.0
    %v430 = vmax.f32 %v246, 0.0
    %v431 = vmax.f32 %v357, 0.0
    %v432 = vmax.f32 %v359, 0.0
    %v433 = vmax.f32 %v248, 0.0
    %v434 = vmax.f32 %v250, 0.0
    %v435 = vmax.f32 %v361, 0.0
    %v436 = vmax.f32 %v363, 0.0
    %v437 = vmax.f32 %v254, 0.0
    %v438 = vmax.f32 %v256, 0.0
    %v439 = vmax.f32 %v367, 0.0
    %v440 = vmax.f32 %v369, 0.0
    %v441 = vmax.f32 %v258, 0.0
    %v442 = vmax.f32 %v260, 0.0
    %v443 = vmax.f32 %v371, 0.0
    %v444 = vmax.f32 %v373, 0.0
    %v445 = vmax.f32 %v264, 0.0
    %v446 = vmax.f32 %v266, 0.0
    %v447 = vmax.f32 %v377, 0.0
    %v448 = vmax.f32 %v379, 0.0
    %v449 = vmax.f32 %v268, 0.0
    %v450 = vmax.f32 %v270, 0.0
    %v451 = vmax.f32 %v381, 0.0
    %v452 = vmax.f32 %v383, 0.0
    %v453 = vmax.f32 %v274, 0.0
    %v454 = vmax.f32 %v276, 0.0
    %v455 = vmax.f32 %v387, 0.0
    %v456 = vmax.f32 %v389, 0.0
    %v457 = vmax.f32 %v278, 0.0
    %v458 = vmax.f32 %v280, 0.0
    %v459 = vmax.f32 %v391, 0.0
    %v460 = vmax.f32 %v393, 0.0
    %v461 = vmax.f32 %v284, 0.0
    %v462 = vmax.f32 %v286, 0.0
    %v463 = vmax.f32 %v397, 0.0
    %v464 = vmax.f32 %v399, 0.0
    %v465 = vmax.f32 %v288, 0.0
    %v466 = vmax.f32 %v290, 0.0
    %v467 = vmax.f32 %v401, 0.0
    %v468 = vmax.f32 %v403, 0.0
    %v469 = vpack.c.bf16 %v409, %v405
    %v470 = vpack.c.bf16 %v410, %v406
    %v471 = vpack.c.bf16 %v411, %v407
    %v472 = vpack.c.bf16 %v412, %v408
    %v473 = vpack.c.bf16 %v417, %v413
    %v474 = vpack.c.bf16 %v418, %v414
    %v475 = vpack.c.bf16 %v419, %v415
    %v476 = vpack.c.bf16 %v420, %v416
    %v477 = vpack.c.bf16 %v425, %v421
    %v478 = vpack.c.bf16 %v426, %v422
    %v479 = vpack.c.bf16 %v427, %v423
    %v480 = vpack.c.bf16 %v428, %v424
    %v481 = vpack.c.bf16 %v433, %v429
    %v482 = vpack.c.bf16 %v434, %v430
    %v483 = vpack.c.bf16 %v435, %v431
    %v484 = vpack.c.bf16 %v436, %v432
    %v485 = vpack.c.bf16 %v441, %v437
    %v486 = vpack.c.bf16 %v442, %v438
    %v487 = vpack.c.bf16 %v443, %v439
    %v488 = vpack.c.bf16 %v444, %v440
    %v489 = vpack.c.bf16 %v449, %v445
    %v490 = vpack.c.bf16 %v450, %v446
    %v491 = vpack.c.bf16 %v451, %v447
    %v492 = vpack.c.bf16 %v452, %v448
    %v493 = vpack.c.bf16 %v457, %v453
    %v494 = vpack.c.bf16 %v458, %v454
    %v495 = vpack.c.bf16 %v459, %v455
    %v496 = vpack.c.bf16 %v460, %v456
    %v497 = vpack.c.bf16 %v465, %v461
    %v498 = vpack.c.bf16 %v466, %v462
    %v499 = vpack.c.bf16 %v467, %v463
    %v500 = vpack.c.bf16 %v468, %v464
    %v501 = vld [vmem:[#allocation3] sm:$0xff]
    %v502 = vld [vmem:[#allocation3 + $0x8] sm:$0xff]
    %v503 = vld [vmem:[#allocation3 + $0x10] sm:$0xff]
    %v504 = vld [vmem:[#allocation3 + $0x18] sm:$0xff]
    %v505 = vld [vmem:[#allocation3 + $0x20] sm:$0xff]
    %v506 = vld [vmem:[#allocation3 + $0x28] sm:$0xff]
    %v507 = vld [vmem:[#allocation3 + $0x30] sm:$0xff]
    %v508 = vld [vmem:[#allocation3 + $0x38] sm:$0xff]
    %v509 = vld [vmem:[#allocation3 + $0x40] sm:$0xff]
    %v510 = vld [vmem:[#allocation3 + $0x48] sm:$0xff]
    %v511 = vld [vmem:[#allocation3 + $0x50] sm:$0xff]
    %v512 = vld [vmem:[#allocation3 + $0x58] sm:$0xff]
    %v513 = vld [vmem:[#allocation3 + $0x60] sm:$0xff]
    %v514 = vld [vmem:[#allocation3 + $0x68] sm:$0xff]
    %v515 = vld [vmem:[#allocation3 + $0x70] sm:$0xff]
    %v516 = vld [vmem:[#allocation3 + $0x78] sm:$0xff]
    %v517 = vld [vmem:[#allocation3 + $0x80] sm:$0xff]
    %v518 = vld [vmem:[#allocation3 + $0x88] sm:$0xff]
    %v519 = vld [vmem:[#allocation3 + $0x90] sm:$0xff]
    %v520 = vld [vmem:[#allocation3 + $0x98] sm:$0xff]
    %v521 = vld [vmem:[#allocation3 + $0xa0] sm:$0xff]
    %v522 = vld [vmem:[#allocation3 + $0xa8] sm:$0xff]
    %v523 = vld [vmem:[#allocation3 + $0xb0] sm:$0xff]
    %v524 = vld [vmem:[#allocation3 + $0xb8] sm:$0xff]
    %v525 = vld [vmem:[#allocation3 + $0xc0] sm:$0xff]
    %v526 = vld [vmem:[#allocation3 + $0xc8] sm:$0xff]
    %v527 = vld [vmem:[#allocation3 + $0xd0] sm:$0xff]
    %v528 = vld [vmem:[#allocation3 + $0xd8] sm:$0xff]
    %v529 = vld [vmem:[#allocation3 + $0xe0] sm:$0xff]
    %v530 = vld [vmem:[#allocation3 + $0xe8] sm:$0xff]
    %v531 = vld [vmem:[#allocation3 + $0xf0] sm:$0xff]
    %v532 = vld [vmem:[#allocation3 + $0xf8] sm:$0xff]
    %v533 = vld [vmem:[#allocation3 + $0x100] sm:$0xff]
    %v534 = vld [vmem:[#allocation3 + $0x108] sm:$0xff]
    %v535 = vld [vmem:[#allocation3 + $0x110] sm:$0xff]
    %v536 = vld [vmem:[#allocation3 + $0x118] sm:$0xff]
    %v537 = vld [vmem:[#allocation3 + $0x120] sm:$0xff]
    %v538 = vld [vmem:[#allocation3 + $0x128] sm:$0xff]
    %v539 = vld [vmem:[#allocation3 + $0x130] sm:$0xff]
    %v540 = vld [vmem:[#allocation3 + $0x138] sm:$0xff]
    %v541 = vld [vmem:[#allocation3 + $0x140] sm:$0xff]
    %v542 = vld [vmem:[#allocation3 + $0x148] sm:$0xff]
    %v543 = vld [vmem:[#allocation3 + $0x150] sm:$0xff]
    %v544 = vld [vmem:[#allocation3 + $0x158] sm:$0xff]
    %v545 = vld [vmem:[#allocation3 + $0x160] sm:$0xff]
    %v546 = vld [vmem:[#allocation3 + $0x168] sm:$0xff]
    %v547 = vld [vmem:[#allocation3 + $0x170] sm:$0xff]
    %v548 = vld [vmem:[#allocation3 + $0x178] sm:$0xff]
    %v549 = vld [vmem:[#allocation3 + $0x180] sm:$0xff]
    %v550 = vld [vmem:[#allocation3 + $0x188] sm:$0xff]
    %v551 = vld [vmem:[#allocation3 + $0x190] sm:$0xff]
    %v552 = vld [vmem:[#allocation3 + $0x198] sm:$0xff]
    %v553 = vld [vmem:[#allocation3 + $0x1a0] sm:$0xff]
    %v554 = vld [vmem:[#allocation3 + $0x1a8] sm:$0xff]
    %v555 = vld [vmem:[#allocation3 + $0x1b0] sm:$0xff]
    %v556 = vld [vmem:[#allocation3 + $0x1b8] sm:$0xff]
    %v557 = vld [vmem:[#allocation3 + $0x1c0] sm:$0xff]
    %v558 = vld [vmem:[#allocation3 + $0x1c8] sm:$0xff]
    %v559 = vld [vmem:[#allocation3 + $0x1d0] sm:$0xff]
    %v560 = vld [vmem:[#allocation3 + $0x1d8] sm:$0xff]
    %v561 = vld [vmem:[#allocation3 + $0x1e0] sm:$0xff]
    %v562 = vld [vmem:[#allocation3 + $0x1e8] sm:$0xff]
    %v563 = vld [vmem:[#allocation3 + $0x1f0] sm:$0xff]
    %v564 = vld [vmem:[#allocation3 + $0x1f8] sm:$0xff]
    %v565 = vld [vmem:[#allocation3 + $0x200] sm:$0xff]
    %v566 = vld [vmem:[#allocation3 + $0x208] sm:$0xff]
    %v567 = vld [vmem:[#allocation3 + $0x210] sm:$0xff]
    %v568 = vld [vmem:[#allocation3 + $0x218] sm:$0xff]
    %v569 = vld [vmem:[#allocation3 + $0x220] sm:$0xff]
    %v570 = vld [vmem:[#allocation3 + $0x228] sm:$0xff]
    %v571 = vld [vmem:[#allocation3 + $0x230] sm:$0xff]
    %v572 = vld [vmem:[#allocation3 + $0x238] sm:$0xff]
    %v573 = vld [vmem:[#allocation3 + $0x240] sm:$0xff]
    %v574 = vld [vmem:[#allocation3 + $0x248] sm:$0xff]
    %v575 = vld [vmem:[#allocation3 + $0x250] sm:$0xff]
    %v576 = vld [vmem:[#allocation3 + $0x258] sm:$0xff]
    %v577 = vld [vmem:[#allocation3 + $0x260] sm:$0xff]
    %v578 = vld [vmem:[#allocation3 + $0x268] sm:$0xff]
    %v579 = vld [vmem:[#allocation3 + $0x270] sm:$0xff]
    %v580 = vld [vmem:[#allocation3 + $0x278] sm:$0xff]
    %v581 = vld [vmem:[#allocation3 + $0x280] sm:$0xff]
    %v582 = vld [vmem:[#allocation3 + $0x288] sm:$0xff]
    %v583 = vld [vmem:[#allocation3 + $0x290] sm:$0xff]
    %v584 = vld [vmem:[#allocation3 + $0x298] sm:$0xff]
    %v585 = vld [vmem:[#allocation3 + $0x2a0] sm:$0xff]
    %v586 = vld [vmem:[#allocation3 + $0x2a8] sm:$0xff]
    %v587 = vld [vmem:[#allocation3 + $0x2b0] sm:$0xff]
    %v588 = vld [vmem:[#allocation3 + $0x2b8] sm:$0xff]
    %v589 = vld [vmem:[#allocation3 + $0x2c0] sm:$0xff]
    %v590 = vld [vmem:[#allocation3 + $0x2c8] sm:$0xff]
    %v591 = vld [vmem:[#allocation3 + $0x2d0] sm:$0xff]
    %v592 = vld [vmem:[#allocation3 + $0x2d8] sm:$0xff]
    %v593 = vld [vmem:[#allocation3 + $0x2e0] sm:$0xff]
    %v594 = vld [vmem:[#allocation3 + $0x2e8] sm:$0xff]
    %v595 = vld [vmem:[#allocation3 + $0x2f0] sm:$0xff]
    %v596 = vld [vmem:[#allocation3 + $0x2f8] sm:$0xff]
    %v597 = vld [vmem:[#allocation3 + $0x300] sm:$0xff]
    %v598 = vld [vmem:[#allocation3 + $0x308] sm:$0xff]
    %v599 = vld [vmem:[#allocation3 + $0x310] sm:$0xff]
    %v600 = vld [vmem:[#allocation3 + $0x318] sm:$0xff]
    %v601 = vld [vmem:[#allocation3 + $0x320] sm:$0xff]
    %v602 = vld [vmem:[#allocation3 + $0x328] sm:$0xff]
    %v603 = vld [vmem:[#allocation3 + $0x330] sm:$0xff]
    %v604 = vld [vmem:[#allocation3 + $0x338] sm:$0xff]
    %v605 = vld [vmem:[#allocation3 + $0x340] sm:$0xff]
    %v606 = vld [vmem:[#allocation3 + $0x348] sm:$0xff]
    %v607 = vld [vmem:[#allocation3 + $0x350] sm:$0xff]
    %v608 = vld [vmem:[#allocation3 + $0x358] sm:$0xff]
    %v609 = vld [vmem:[#allocation3 + $0x360] sm:$0xff]
    %v610 = vld [vmem:[#allocation3 + $0x368] sm:$0xff]
    %v611 = vld [vmem:[#allocation3 + $0x370] sm:$0xff]
    %v612 = vld [vmem:[#allocation3 + $0x378] sm:$0xff]
    %v613 = vld [vmem:[#allocation3 + $0x380] sm:$0xff]
    %v614 = vld [vmem:[#allocation3 + $0x388] sm:$0xff]
    %v615 = vld [vmem:[#allocation3 + $0x390] sm:$0xff]
    %v616 = vld [vmem:[#allocation3 + $0x398] sm:$0xff]
    %v617 = vld [vmem:[#allocation3 + $0x3a0] sm:$0xff]
    %v618 = vld [vmem:[#allocation3 + $0x3a8] sm:$0xff]
    %v619 = vld [vmem:[#allocation3 + $0x3b0] sm:$0xff]
    %v620 = vld [vmem:[#allocation3 + $0x3b8] sm:$0xff]
    %v621 = vld [vmem:[#allocation3 + $0x3c0] sm:$0xff]
    %v622 = vld [vmem:[#allocation3 + $0x3c8] sm:$0xff]
    %v623 = vld [vmem:[#allocation3 + $0x3d0] sm:$0xff]
    %v624 = vld [vmem:[#allocation3 + $0x3d8] sm:$0xff]
    %v625 = vld [vmem:[#allocation3 + $0x3e0] sm:$0xff]
    %v626 = vld [vmem:[#allocation3 + $0x3e8] sm:$0xff]
    %v627 = vld [vmem:[#allocation3 + $0x3f0] sm:$0xff]
    %v628 = vld [vmem:[#allocation3 + $0x3f8] sm:$0xff]
    %v629 = vld [vmem:[%s4] sm:$0xf]
    %v631 = vlaneseq
    %v632 = vshrl.u32 %v631, 7
    %v633 = vsub.s32 0, %v632
    %v634 = vrot.slane %v629, %v633
    %v635 = vlaneseq
    %v636 = vshrl.u32 %v635, 7
    %v637 = vsub.s32 1, %v636
    %v638 = vrot.slane %v629, %v637
    %v639 = vlaneseq
    %v640 = vshrl.u32 %v639, 7
    %v641 = vsub.s32 2, %v640
    %v642 = vrot.slane %v629, %v641
    %v643 = vlaneseq
    %v644 = vshrl.u32 %v643, 7
    %v645 = vsub.s32 3, %v644
    %v646 = vrot.slane %v629, %v645
    %v779 = vunpack.c.l.b16 %v501
    %v780 = vunpack.c.h.b16 %v501
    %v781 = vunpack.c.l.b16 %v502
    %v782 = vunpack.c.h.b16 %v502
    %v783 = vunpack.c.l.b16 %v503
    %v784 = vunpack.c.h.b16 %v503
    %v785 = vunpack.c.l.b16 %v504
    %v786 = vunpack.c.h.b16 %v504
    %v787 = vunpack.c.l.b16 %v505
    %v788 = vunpack.c.h.b16 %v505
    %v789 = vunpack.c.l.b16 %v506
    %v790 = vunpack.c.h.b16 %v506
    %v791 = vunpack.c.l.b16 %v507
    %v792 = vunpack.c.h.b16 %v507
    %v793 = vunpack.c.l.b16 %v508
    %v794 = vunpack.c.h.b16 %v508
    %v795 = vunpack.c.l.b16 %v509
    %v796 = vunpack.c.h.b16 %v509
    %v797 = vunpack.c.l.b16 %v510
    %v798 = vunpack.c.h.b16 %v510
    %v799 = vunpack.c.l.b16 %v511
    %v800 = vunpack.c.h.b16 %v511
    %v801 = vunpack.c.l.b16 %v512
    %v802 = vunpack.c.h.b16 %v512
    %v803 = vunpack.c.l.b16 %v513
    %v804 = vunpack.c.h.b16 %v513
    %v805 = vunpack.c.l.b16 %v514
    %v806 = vunpack.c.h.b16 %v514
    %v807 = vunpack.c.l.b16 %v515
    %v808 = vunpack.c.h.b16 %v515
    %v809 = vunpack.c.l.b16 %v516
    %v810 = vunpack.c.h.b16 %v516
    %v811 = vunpack.c.l.b16 %v517
    %v812 = vunpack.c.h.b16 %v517
    %v813 = vunpack.c.l.b16 %v518
    %v814 = vunpack.c.h.b16 %v518
    %v815 = vunpack.c.l.b16 %v519
    %v816 = vunpack.c.h.b16 %v519
    %v817 = vunpack.c.l.b16 %v520
    %v818 = vunpack.c.h.b16 %v520
    %v819 = vunpack.c.l.b16 %v521
    %v820 = vunpack.c.h.b16 %v521
    %v821 = vunpack.c.l.b16 %v522
    %v822 = vunpack.c.h.b16 %v522
    %v823 = vunpack.c.l.b16 %v523
    %v824 = vunpack.c.h.b16 %v523
    %v825 = vunpack.c.l.b16 %v524
    %v826 = vunpack.c.h.b16 %v524
    %v827 = vunpack.c.l.b16 %v525
    %v828 = vunpack.c.h.b16 %v525
    %v829 = vunpack.c.l.b16 %v526
    %v830 = vunpack.c.h.b16 %v526
    %v831 = vunpack.c.l.b16 %v527
    %v832 = vunpack.c.h.b16 %v527
    %v833 = vunpack.c.l.b16 %v528
    %v834 = vunpack.c.h.b16 %v528
    %v835 = vunpack.c.l.b16 %v529
    %v836 = vunpack.c.h.b16 %v529
    %v837 = vunpack.c.l.b16 %v530
    %v838 = vunpack.c.h.b16 %v530
    %v839 = vunpack.c.l.b16 %v531
    %v840 = vunpack.c.h.b16 %v531
    %v841 = vunpack.c.l.b16 %v532
    %v842 = vunpack.c.h.b16 %v532
    %v843 = vunpack.c.l.b16 %v533
    %v844 = vunpack.c.h.b16 %v533
    %v845 = vunpack.c.l.b16 %v534
    %v846 = vunpack.c.h.b16 %v534
    %v847 = vunpack.c.l.b16 %v535
    %v848 = vunpack.c.h.b16 %v535
    %v849 = vunpack.c.l.b16 %v536
    %v850 = vunpack.c.h.b16 %v536
    %v851 = vunpack.c.l.b16 %v537
    %v852 = vunpack.c.h.b16 %v537
    %v853 = vunpack.c.l.b16 %v538
    %v854 = vunpack.c.h.b16 %v538
    %v855 = vunpack.c.l.b16 %v539
    %v856 = vunpack.c.h.b16 %v539
    %v857 = vunpack.c.l.b16 %v540
    %v858 = vunpack.c.h.b16 %v540
    %v859 = vunpack.c.l.b16 %v541
    %v860 = vunpack.c.h.b16 %v541
    %v861 = vunpack.c.l.b16 %v542
    %v862 = vunpack.c.h.b16 %v542
    %v863 = vunpack.c.l.b16 %v543
    %v864 = vunpack.c.h.b16 %v543
    %v865 = vunpack.c.l.b16 %v544
    %v866 = vunpack.c.h.b16 %v544
    %v867 = vunpack.c.l.b16 %v545
    %v868 = vunpack.c.h.b16 %v545
    %v869 = vunpack.c.l.b16 %v546
    %v870 = vunpack.c.h.b16 %v546
    %v871 = vunpack.c.l.b16 %v547
    %v872 = vunpack.c.h.b16 %v547
    %v873 = vunpack.c.l.b16 %v548
    %v874 = vunpack.c.h.b16 %v548
    %v875 = vunpack.c.l.b16 %v549
    %v876 = vunpack.c.h.b16 %v549
    %v877 = vunpack.c.l.b16 %v550
    %v878 = vunpack.c.h.b16 %v550
    %v879 = vunpack.c.l.b16 %v551
    %v880 = vunpack.c.h.b16 %v551
    %v881 = vunpack.c.l.b16 %v552
    %v882 = vunpack.c.h.b16 %v552
    %v883 = vunpack.c.l.b16 %v553
    %v884 = vunpack.c.h.b16 %v553
    %v885 = vunpack.c.l.b16 %v554
    %v886 = vunpack.c.h.b16 %v554
    %v887 = vunpack.c.l.b16 %v555
    %v888 = vunpack.c.h.b16 %v555
    %v889 = vunpack.c.l.b16 %v556
    %v890 = vunpack.c.h.b16 %v556
    %v891 = vunpack.c.l.b16 %v557
    %v892 = vunpack.c.h.b16 %v557
    %v893 = vunpack.c.l.b16 %v558
    %v894 = vunpack.c.h.b16 %v558
    %v895 = vunpack.c.l.b16 %v559
    %v896 = vunpack.c.h.b16 %v559
    %v897 = vunpack.c.l.b16 %v560
    %v898 = vunpack.c.h.b16 %v560
    %v899 = vunpack.c.l.b16 %v561
    %v900 = vunpack.c.h.b16 %v561
    %v901 = vunpack.c.l.b16 %v562
    %v902 = vunpack.c.h.b16 %v562
    %v903 = vunpack.c.l.b16 %v563
    %v904 = vunpack.c.h.b16 %v563
    %v905 = vunpack.c.l.b16 %v564
    %v906 = vunpack.c.h.b16 %v564
    %v907 = vunpack.c.l.b16 %v565
    %v908 = vunpack.c.h.b16 %v565
    %v909 = vunpack.c.l.b16 %v566
    %v910 = vunpack.c.h.b16 %v566
    %v911 = vunpack.c.l.b16 %v567
    %v912 = vunpack.c.h.b16 %v567
    %v913 = vunpack.c.l.b16 %v568
    %v914 = vunpack.c.h.b16 %v568
    %v915 = vunpack.c.l.b16 %v569
    %v916 = vunpack.c.h.b16 %v569
    %v917 = vunpack.c.l.b16 %v570
    %v918 = vunpack.c.h.b16 %v570
    %v919 = vunpack.c.l.b16 %v571
    %v920 = vunpack.c.h.b16 %v571
    %v921 = vunpack.c.l.b16 %v572
    %v922 = vunpack.c.h.b16 %v572
    %v923 = vunpack.c.l.b16 %v573
    %v924 = vunpack.c.h.b16 %v573
    %v925 = vunpack.c.l.b16 %v574
    %v926 = vunpack.c.h.b16 %v574
    %v927 = vunpack.c.l.b16 %v575
    %v928 = vunpack.c.h.b16 %v575
    %v929 = vunpack.c.l.b16 %v576
    %v930 = vunpack.c.h.b16 %v576
    %v931 = vunpack.c.l.b16 %v577
    %v932 = vunpack.c.h.b16 %v577
    %v933 = vunpack.c.l.b16 %v578
    %v934 = vunpack.c.h.b16 %v578
    %v935 = vunpack.c.l.b16 %v579
    %v936 = vunpack.c.h.b16 %v579
    %v937 = vunpack.c.l.b16 %v580
    %v938 = vunpack.c.h.b16 %v580
    %v939 = vunpack.c.l.b16 %v581
    %v940 = vunpack.c.h.b16 %v581
    %v941 = vunpack.c.l.b16 %v582
    %v942 = vunpack.c.h.b16 %v582
    %v943 = vunpack.c.l.b16 %v583
    %v944 = vunpack.c.h.b16 %v583
    %v945 = vunpack.c.l.b16 %v584
    %v946 = vunpack.c.h.b16 %v584
    %v947 = vunpack.c.l.b16 %v585
    %v948 = vunpack.c.h.b16 %v585
    %v949 = vunpack.c.l.b16 %v586
    %v950 = vunpack.c.h.b16 %v586
    %v951 = vunpack.c.l.b16 %v587
    %v952 = vunpack.c.h.b16 %v587
    %v953 = vunpack.c.l.b16 %v588
    %v954 = vunpack.c.h.b16 %v588
    %v955 = vunpack.c.l.b16 %v589
    %v956 = vunpack.c.h.b16 %v589
    %v957 = vunpack.c.l.b16 %v590
    %v958 = vunpack.c.h.b16 %v590
    %v959 = vunpack.c.l.b16 %v591
    %v960 = vunpack.c.h.b16 %v591
    %v961 = vunpack.c.l.b16 %v592
    %v962 = vunpack.c.h.b16 %v592
    %v963 = vunpack.c.l.b16 %v593
    %v964 = vunpack.c.h.b16 %v593
    %v965 = vunpack.c.l.b16 %v594
    %v966 = vunpack.c.h.b16 %v594
    %v967 = vunpack.c.l.b16 %v595
    %v968 = vunpack.c.h.b16 %v595
    %v969 = vunpack.c.l.b16 %v596
    %v970 = vunpack.c.h.b16 %v596
    %v971 = vunpack.c.l.b16 %v597
    %v972 = vunpack.c.h.b16 %v597
    %v973 = vunpack.c.l.b16 %v598
    %v974 = vunpack.c.h.b16 %v598
    %v975 = vunpack.c.l.b16 %v599
    %v976 = vunpack.c.h.b16 %v599
    %v977 = vunpack.c.l.b16 %v600
    %v978 = vunpack.c.h.b16 %v600
    %v979 = vunpack.c.l.b16 %v601
    %v980 = vunpack.c.h.b16 %v601
    %v981 = vunpack.c.l.b16 %v602
    %v982 = vunpack.c.h.b16 %v602
    %v983 = vunpack.c.l.b16 %v603
    %v984 = vunpack.c.h.b16 %v603
    %v985 = vunpack.c.l.b16 %v604
    %v986 = vunpack.c.h.b16 %v604
    %v987 = vunpack.c.l.b16 %v605
    %v988 = vunpack.c.h.b16 %v605
    %v989 = vunpack.c.l.b16 %v606
    %v990 = vunpack.c.h.b16 %v606
    %v991 = vunpack.c.l.b16 %v607
    %v992 = vunpack.c.h.b16 %v607
    %v993 = vunpack.c.l.b16 %v608
    %v994 = vunpack.c.h.b16 %v608
    %v995 = vunpack.c.l.b16 %v609
    %v996 = vunpack.c.h.b16 %v609
    %v997 = vunpack.c.l.b16 %v610
    %v998 = vunpack.c.h.b16 %v610
    %v999 = vunpack.c.l.b16 %v611
    %v1000 = vunpack.c.h.b16 %v611
    %v1001 = vunpack.c.l.b16 %v612
    %v1002 = vunpack.c.h.b16 %v612
    %v1003 = vunpack.c.l.b16 %v613
    %v1004 = vunpack.c.h.b16 %v613
    %v1005 = vunpack.c.l.b16 %v614
    %v1006 = vunpack.c.h.b16 %v614
    %v1007 = vunpack.c.l.b16 %v615
    %v1008 = vunpack.c.h.b16 %v615
    %v1009 = vunpack.c.l.b16 %v616
    %v1010 = vunpack.c.h.b16 %v616
    %v1011 = vunpack.c.l.b16 %v617
    %v1012 = vunpack.c.h.b16 %v617
    %v1013 = vunpack.c.l.b16 %v618
    %v1014 = vunpack.c.h.b16 %v618
    %v1015 = vunpack.c.l.b16 %v619
    %v1016 = vunpack.c.h.b16 %v619
    %v1017 = vunpack.c.l.b16 %v620
    %v1018 = vunpack.c.h.b16 %v620
    %v1019 = vunpack.c.l.b16 %v621
    %v1020 = vunpack.c.h.b16 %v621
    %v1021 = vunpack.c.l.b16 %v622
    %v1022 = vunpack.c.h.b16 %v622
    %v1023 = vunpack.c.l.b16 %v623
    %v1024 = vunpack.c.h.b16 %v623
    %v1025 = vunpack.c.l.b16 %v624
    %v1026 = vunpack.c.h.b16 %v624
    %v1027 = vunpack.c.l.b16 %v625
    %v1028 = vunpack.c.h.b16 %v625
    %v1029 = vunpack.c.l.b16 %v626
    %v1030 = vunpack.c.h.b16 %v626
    %v1031 = vunpack.c.l.b16 %v627
    %v1032 = vunpack.c.h.b16 %v627
    %v1033 = vunpack.c.l.b16 %v628
    %v1034 = vunpack.c.h.b16 %v628
    %v1035 = vpack.c.b16 %v783, %v779
    %v1036 = vpack.c.b16 %v784, %v780
    %v1037 = vpack.c.b16 %v785, %v781
    %v1038 = vpack.c.b16 %v786, %v782
    %v1039 = vpack.c.b16 %v791, %v787
    %v1040 = vpack.c.b16 %v792, %v788
    %v1041 = vpack.c.b16 %v793, %v789
    %v1042 = vpack.c.b16 %v794, %v790
    %v1043 = vpack.c.b16 %v799, %v795
    %v1044 = vpack.c.b16 %v800, %v796
    %v1045 = vpack.c.b16 %v801, %v797
    %v1046 = vpack.c.b16 %v802, %v798
    %v1047 = vpack.c.b16 %v807, %v803
    %v1048 = vpack.c.b16 %v808, %v804
    %v1049 = vpack.c.b16 %v809, %v805
    %v1050 = vpack.c.b16 %v810, %v806
    %v1051 = vpack.c.b16 %v815, %v811
    %v1052 = vpack.c.b16 %v816, %v812
    %v1053 = vpack.c.b16 %v817, %v813
    %v1054 = vpack.c.b16 %v818, %v814
    %v1055 = vpack.c.b16 %v823, %v819
    %v1056 = vpack.c.b16 %v824, %v820
    %v1057 = vpack.c.b16 %v825, %v821
    %v1058 = vpack.c.b16 %v826, %v822
    %v1059 = vpack.c.b16 %v831, %v827
    %v1060 = vpack.c.b16 %v832, %v828
    %v1061 = vpack.c.b16 %v833, %v829
    %v1062 = vpack.c.b16 %v834, %v830
    %v1063 = vpack.c.b16 %v839, %v835
    %v1064 = vpack.c.b16 %v840, %v836
    %v1065 = vpack.c.b16 %v841, %v837
    %v1066 = vpack.c.b16 %v842, %v838
    %v1067 = vpack.c.b16 %v847, %v843
    %v1068 = vpack.c.b16 %v848, %v844
    %v1069 = vpack.c.b16 %v849, %v845
    %v1070 = vpack.c.b16 %v850, %v846
    %v1071 = vpack.c.b16 %v855, %v851
    %v1072 = vpack.c.b16 %v856, %v852
    %v1073 = vpack.c.b16 %v857, %v853
    %v1074 = vpack.c.b16 %v858, %v854
    %v1075 = vpack.c.b16 %v863, %v859
    %v1076 = vpack.c.b16 %v864, %v860
    %v1077 = vpack.c.b16 %v865, %v861
    %v1078 = vpack.c.b16 %v866, %v862
    %v1079 = vpack.c.b16 %v871, %v867
    %v1080 = vpack.c.b16 %v872, %v868
    %v1081 = vpack.c.b16 %v873, %v869
    %v1082 = vpack.c.b16 %v874, %v870
    %v1083 = vpack.c.b16 %v879, %v875
    %v1084 = vpack.c.b16 %v880, %v876
    %v1085 = vpack.c.b16 %v881, %v877
    %v1086 = vpack.c.b16 %v882, %v878
    %v1087 = vpack.c.b16 %v887, %v883
    %v1088 = vpack.c.b16 %v888, %v884
    %v1089 = vpack.c.b16 %v889, %v885
    %v1090 = vpack.c.b16 %v890, %v886
    %v1091 = vpack.c.b16 %v895, %v891
    %v1092 = vpack.c.b16 %v896, %v892
    %v1093 = vpack.c.b16 %v897, %v893
    %v1094 = vpack.c.b16 %v898, %v894
    %v1095 = vpack.c.b16 %v903, %v899
    %v1096 = vpack.c.b16 %v904, %v900
    %v1097 = vpack.c.b16 %v905, %v901
    %v1098 = vpack.c.b16 %v906, %v902
    %v1099 = vpack.c.b16 %v911, %v907
    %v1100 = vpack.c.b16 %v912, %v908
    %v1101 = vpack.c.b16 %v913, %v909
    %v1102 = vpack.c.b16 %v914, %v910
    %v1103 = vpack.c.b16 %v919, %v915
    %v1104 = vpack.c.b16 %v920, %v916
    %v1105 = vpack.c.b16 %v921, %v917
    %v1106 = vpack.c.b16 %v922, %v918
    %v1107 = vpack.c.b16 %v927, %v923
    %v1108 = vpack.c.b16 %v928, %v924
    %v1109 = vpack.c.b16 %v929, %v925
    %v1110 = vpack.c.b16 %v930, %v926
    %v1111 = vpack.c.b16 %v935, %v931
    %v1112 = vpack.c.b16 %v936, %v932
    %v1113 = vpack.c.b16 %v937, %v933
    %v1114 = vpack.c.b16 %v938, %v934
    %v1115 = vpack.c.b16 %v943, %v939
    %v1116 = vpack.c.b16 %v944, %v940
    %v1117 = vpack.c.b16 %v945, %v941
    %v1118 = vpack.c.b16 %v946, %v942
    %v1119 = vpack.c.b16 %v951, %v947
    %v1120 = vpack.c.b16 %v952, %v948
    %v1121 = vpack.c.b16 %v953, %v949
    %v1122 = vpack.c.b16 %v954, %v950
    %v1123 = vpack.c.b16 %v959, %v955
    %v1124 = vpack.c.b16 %v960, %v956
    %v1125 = vpack.c.b16 %v961, %v957
    %v1126 = vpack.c.b16 %v962, %v958
    %v1127 = vpack.c.b16 %v967, %v963
    %v1128 = vpack.c.b16 %v968, %v964
    %v1129 = vpack.c.b16 %v969, %v965
    %v1130 = vpack.c.b16 %v970, %v966
    %v1131 = vpack.c.b16 %v975, %v971
    %v1132 = vpack.c.b16 %v976, %v972
    %v1133 = vpack.c.b16 %v977, %v973
    %v1134 = vpack.c.b16 %v978, %v974
    %v1135 = vpack.c.b16 %v983, %v979
    %v1136 = vpack.c.b16 %v984, %v980
    %v1137 = vpack.c.b16 %v985, %v981
    %v1138 = vpack.c.b16 %v986, %v982
    %v1139 = vpack.c.b16 %v991, %v987
    %v1140 = vpack.c.b16 %v992, %v988
    %v1141 = vpack.c.b16 %v993, %v989
    %v1142 = vpack.c.b16 %v994, %v990
    %v1143 = vpack.c.b16 %v999, %v995
    %v1144 = vpack.c.b16 %v1000, %v996
    %v1145 = vpack.c.b16 %v1001, %v997
    %v1146 = vpack.c.b16 %v1002, %v998
    %v1147 = vpack.c.b16 %v1007, %v1003
    %v1148 = vpack.c.b16 %v1008, %v1004
    %v1149 = vpack.c.b16 %v1009, %v1005
    %v1150 = vpack.c.b16 %v1010, %v1006
    %v1151 = vpack.c.b16 %v1015, %v1011
    %v1152 = vpack.c.b16 %v1016, %v1012
    %v1153 = vpack.c.b16 %v1017, %v1013
    %v1154 = vpack.c.b16 %v1018, %v1014
    %v1155 = vpack.c.b16 %v1023, %v1019
    %v1156 = vpack.c.b16 %v1024, %v1020
    %v1157 = vpack.c.b16 %v1025, %v1021
    %v1158 = vpack.c.b16 %v1026, %v1022
    %v1159 = vpack.c.b16 %v1031, %v1027
    %v1160 = vpack.c.b16 %v1032, %v1028
    %v1161 = vpack.c.b16 %v1033, %v1029
    %v1162 = vpack.c.b16 %v1034, %v1030
    %1291 = vmatprep.subr.bf16.mxu0 %v1036
    %1292 = vmatpush1.bf16.msra.mxu0 %v1035
    %1293 = vmatprep.subr.bf16.mxu0 %v1040
    %1294 = vmatpush1.bf16.msra.mxu0 %v1039
    %1295 = vmatprep.subr.bf16.mxu0 %v1044
    %1296 = vmatpush1.bf16.msra.mxu0 %v1043
    %1297 = vmatprep.subr.bf16.mxu0 %v1048
    %1298 = vmatpush1.bf16.msra.mxu0 %v1047
    %1299 = vmatprep.subr.bf16.mxu0 %v1052
    %1300 = vmatpush1.bf16.msra.mxu0 %v1051
    %1301 = vmatprep.subr.bf16.mxu0 %v1056
    %1302 = vmatpush1.bf16.msra.mxu0 %v1055
    %1303 = vmatprep.subr.bf16.mxu0 %v1060
    %1304 = vmatpush1.bf16.msra.mxu0 %v1059
    %1305 = vmatprep.subr.bf16.mxu0 %v1064
    %1306 = vmatpush1.bf16.msra.mxu0 %v1063
    %1307 = vmatprep.subr.bf16.mxu0 %v1068
    %1308 = vmatpush1.bf16.msra.mxu0 %v1067
    %1309 = vmatprep.subr.bf16.mxu0 %v1072
    %1310 = vmatpush1.bf16.msra.mxu0 %v1071
    %1311 = vmatprep.subr.bf16.mxu0 %v1076
    %1312 = vmatpush1.bf16.msra.mxu0 %v1075
    %1313 = vmatprep.subr.bf16.mxu0 %v1080
    %1314 = vmatpush1.bf16.msra.mxu0 %v1079
    %1315 = vmatprep.subr.bf16.mxu0 %v1084
    %1316 = vmatpush1.bf16.msra.mxu0 %v1083
    %1317 = vmatprep.subr.bf16.mxu0 %v1088
    %1318 = vmatpush1.bf16.msra.mxu0 %v1087
    %1319 = vmatprep.subr.bf16.mxu0 %v1092
    %1320 = vmatpush1.bf16.msra.mxu0 %v1091
    %1321 = vmatprep.subr.bf16.mxu0 %v1096
    %1322 = vmatpush1.bf16.msra.mxu0 %v1095
    %1323 = vmatprep.mubr.bf16.mxu0 %v470
    %1324 = vmatmul.mubr.bf16.gmra.mrb[0].mxu0 %v469
    %v1325 = vpop.f32.mrb[0].mxu0
    %v1326 = vadd.f32 %v634, %v1325
    %v1327 = vpop.f32.mrb[0].mxu0
    %v1328 = vadd.f32 %v638, %v1327
    %v1329 = vpop.f32.mrb[0].mxu0
    %v1330 = vadd.f32 %v634, %v1329
    %v1331 = vpop.f32.mrb[0].mxu0
    %v1332 = vadd.f32 %v638, %v1331
    %1333 = vmatprep.mubr.bf16.mxu0 %v474
    %1334 = vmatmul.mubr.bf16.gmra.mrb[0].mxu0 %v473
    %v1335 = vpop.f32.mrb[0].mxu0
    %v1336 = vadd.f32 %v634, %v1335
    %v1337 = vpop.f32.mrb[0].mxu0
    %v1338 = vadd.f32 %v638, %v1337
    %v1339 = vpop.f32.mrb[0].mxu0
    %v1340 = vadd.f32 %v634, %v1339
    %v1341 = vpop.f32.mrb[0].mxu0
    %v1342 = vadd.f32 %v638, %v1341
    %1343 = vmatprep.mubr.bf16.mxu0 %v478
    %1344 = vmatmul.mubr.bf16.gmra.mrb[0].mxu0 %v477
    %v1345 = vpop.f32.mrb[0].mxu0
    %v1346 = vadd.f32 %v634, %v1345
    %v1347 = vpop.f32.mrb[0].mxu0
    %v1348 = vadd.f32 %v638, %v1347
    %v1349 = vpop.f32.mrb[0].mxu0
    %v1350 = vadd.f32 %v634, %v1349
    %v1351 = vpop.f32.mrb[0].mxu0
    %v1352 = vadd.f32 %v638, %v1351
    %1353 = vmatprep.mubr.bf16.mxu0 %v482
    %1354 = vmatmul.mubr.bf16.gmra.mrb[0].mxu0 %v481
    %v1355 = vpop.f32.mrb[0].mxu0
    %v1356 = vadd.f32 %v634, %v1355
    %v1357 = vpop.f32.mrb[0].mxu0
    %v1358 = vadd.f32 %v638, %v1357
    %v1359 = vpop.f32.mrb[0].mxu0
    %v1360 = vadd.f32 %v634, %v1359
    %v1361 = vpop.f32.mrb[0].mxu0
    %v1362 = vadd.f32 %v638, %v1361
    %1363 = vmatprep.mubr.bf16.mxu0 %v486
    %1364 = vmatmul.mubr.bf16.gmra.mrb[0].mxu0 %v485
    %v1365 = vpop.f32.mrb[0].mxu0
    %v1366 = vadd.f32 %v634, %v1365
    %v1367 = vpop.f32.mrb[0].mxu0
    %v1368 = vadd.f32 %v638, %v1367
    %v1369 = vpop.f32.mrb[0].mxu0
    %v1370 = vadd.f32 %v634, %v1369
    %v1371 = vpop.f32.mrb[0].mxu0
    %v1372 = vadd.f32 %v638, %v1371
    %1373 = vmatprep.mubr.bf16.mxu0 %v490
    %1374 = vmatmul.mubr.bf16.gmra.mrb[0].mxu0 %v489
    %v1375 = vpop.f32.mrb[0].mxu0
    %v1376 = vadd.f32 %v634, %v1375
    %v1377 = vpop.f32.mrb[0].mxu0
    %v1378 = vadd.f32 %v638, %v1377
    %v1379 = vpop.f32.mrb[0].mxu0
    %v1380 = vadd.f32 %v634, %v1379
    %v1381 = vpop.f32.mrb[0].mxu0
    %v1382 = vadd.f32 %v638, %v1381
    %1383 = vmatprep.mubr.bf16.mxu0 %v494
    %1384 = vmatmul.mubr.bf16.gmra.mrb[0].mxu0 %v493
    %v1385 = vpop.f32.mrb[0].mxu0
    %v1386 = vadd.f32 %v634, %v1385
    %v1387 = vpop.f32.mrb[0].mxu0
    %v1388 = vadd.f32 %v638, %v1387
    %v1389 = vpop.f32.mrb[0].mxu0
    %v1390 = vadd.f32 %v634, %v1389
    %v1391 = vpop.f32.mrb[0].mxu0
    %v1392 = vadd.f32 %v638, %v1391
    %1393 = vmatprep.mubr.bf16.mxu0 %v498
    %1394 = vmatmul.mubr.bf16.gmra.mrb[0].mxu0 %v497
    %v1395 = vpop.f32.mrb[0].mxu0
    %v1396 = vadd.f32 %v634, %v1395
    %v1397 = vpop.f32.mrb[0].mxu0
    %v1398 = vadd.f32 %v638, %v1397
    %v1399 = vpop.f32.mrb[0].mxu0
    %v1400 = vadd.f32 %v634, %v1399
    %v1401 = vpop.f32.mrb[0].mxu0
    %v1402 = vadd.f32 %v638, %v1401
    %1403 = vdwg.mxu0
    %1404 = vmatprep.subr.bf16.mxu0 %v1100
    %1405 = vmatpush1.bf16.msra.mxu0 %v1099
    %1406 = vmatprep.subr.bf16.mxu0 %v1104
    %1407 = vmatpush1.bf16.msra.mxu0 %v1103
    %1408 = vmatprep.subr.bf16.mxu0 %v1108
    %1409 = vmatpush1.bf16.msra.mxu0 %v1107
    %1410 = vmatprep.subr.bf16.mxu0 %v1112
    %1411 = vmatpush1.bf16.msra.mxu0 %v1111
    %1412 = vmatprep.subr.bf16.mxu0 %v1116
    %1413 = vmatpush1.bf16.msra.mxu0 %v1115
    %1414 = vmatprep.subr.bf16.mxu0 %v1120
    %1415 = vmatpush1.bf16.msra.mxu0 %v1119
    %1416 = vmatprep.subr.bf16.mxu0 %v1124
    %1417 = vmatpush1.bf16.msra.mxu0 %v1123
    %1418 = vmatprep.subr.bf16.mxu0 %v1128
    %1419 = vmatpush1.bf16.msra.mxu0 %v1127
    %1420 = vmatprep.subr.bf16.mxu0 %v1132
    %1421 = vmatpush1.bf16.msra.mxu0 %v1131
    %1422 = vmatprep.subr.bf16.mxu0 %v1136
    %1423 = vmatpush1.bf16.msra.mxu0 %v1135
    %1424 = vmatprep.subr.bf16.mxu0 %v1140
    %1425 = vmatpush1.bf16.msra.mxu0 %v1139
    %1426 = vmatprep.subr.bf16.mxu0 %v1144
    %1427 = vmatpush1.bf16.msra.mxu0 %v1143
    %1428 = vmatprep.subr.bf16.mxu0 %v1148
    %1429 = vmatpush1.bf16.msra.mxu0 %v1147
    %1430 = vmatprep.subr.bf16.mxu0 %v1152
    %1431 = vmatpush1.bf16.msra.mxu0 %v1151
    %1432 = vmatprep.subr.bf16.mxu0 %v1156
    %1433 = vmatpush1.bf16.msra.mxu0 %v1155
    %1434 = vmatprep.subr.bf16.mxu0 %v1160
    %1435 = vmatpush1.bf16.msra.mxu0 %v1159
    %1436 = vmatprep.mubr.bf16.mxu0 %v472
    %1437 = vmatmul.mubr.bf16.gmra.mrb[0].mxu0 %v471
    %v1438 = vpop.f32.mrb[0].mxu0
    %v1439 = vadd.f32 %v1326, %v1438
    %v1440 = vpop.f32.mrb[0].mxu0
    %v1441 = vadd.f32 %v1328, %v1440
    %v1442 = vpop.f32.mrb[0].mxu0
    %v1443 = vadd.f32 %v1330, %v1442
    %v1444 = vpop.f32.mrb[0].mxu0
    %v1445 = vadd.f32 %v1332, %v1444
    %1446 = vmatprep.mubr.bf16.mxu0 %v476
    %1447 = vmatmul.mubr.bf16.gmra.mrb[0].mxu0 %v475
    %v1448 = vpop.f32.mrb[0].mxu0
    %v1449 = vadd.f32 %v1336, %v1448
    %v1450 = vpop.f32.mrb[0].mxu0
    %v1451 = vadd.f32 %v1338, %v1450
    %v1452 = vpop.f32.mrb[0].mxu0
    %v1453 = vadd.f32 %v1340, %v1452
    %v1454 = vpop.f32.mrb[0].mxu0
    %v1455 = vadd.f32 %v1342, %v1454
    %1456 = vmatprep.mubr.bf16.mxu0 %v480
    %1457 = vmatmul.mubr.bf16.gmra.mrb[0].mxu0 %v479
    %v1458 = vpop.f32.mrb[0].mxu0
    %v1459 = vadd.f32 %v1346, %v1458
    %v1460 = vpop.f32.mrb[0].mxu0
    %v1461 = vadd.f32 %v1348, %v1460
    %v1462 = vpop.f32.mrb[0].mxu0
    %v1463 = vadd.f32 %v1350, %v1462
    %v1464 = vpop.f32.mrb[0].mxu0
    %v1465 = vadd.f32 %v1352, %v1464
    %1466 = vmatprep.mubr.bf16.mxu0 %v484
    %1467 = vmatmul.mubr.bf16.gmra.mrb[0].mxu0 %v483
    %v1468 = vpop.f32.mrb[0].mxu0
    %v1469 = vadd.f32 %v1356, %v1468
    %v1470 = vpop.f32.mrb[0].mxu0
    %v1471 = vadd.f32 %v1358, %v1470
    %v1472 = vpop.f32.mrb[0].mxu0
    %v1473 = vadd.f32 %v1360, %v1472
    %v1474 = vpop.f32.mrb[0].mxu0
    %v1475 = vadd.f32 %v1362, %v1474
    %1476 = vmatprep.mubr.bf16.mxu0 %v488
    %1477 = vmatmul.mubr.bf16.gmra.mrb[0].mxu0 %v487
    %v1478 = vpop.f32.mrb[0].mxu0
    %v1479 = vadd.f32 %v1366, %v1478
    %v1480 = vpop.f32.mrb[0].mxu0
    %v1481 = vadd.f32 %v1368, %v1480
    %v1482 = vpop.f32.mrb[0].mxu0
    %v1483 = vadd.f32 %v1370, %v1482
    %v1484 = vpop.f32.mrb[0].mxu0
    %v1485 = vadd.f32 %v1372, %v1484
    %1486 = vmatprep.mubr.bf16.mxu0 %v492
    %1487 = vmatmul.mubr.bf16.gmra.mrb[0].mxu0 %v491
    %v1488 = vpop.f32.mrb[0].mxu0
    %v1489 = vadd.f32 %v1376, %v1488
    %v1490 = vpop.f32.mrb[0].mxu0
    %v1491 = vadd.f32 %v1378, %v1490
    %v1492 = vpop.f32.mrb[0].mxu0
    %v1493 = vadd.f32 %v1380, %v1492
    %v1494 = vpop.f32.mrb[0].mxu0
    %v1495 = vadd.f32 %v1382, %v1494
    %1496 = vmatprep.mubr.bf16.mxu0 %v496
    %1497 = vmatmul.mubr.bf16.gmra.mrb[0].mxu0 %v495
    %v1498 = vpop.f32.mrb[0].mxu0
    %v1499 = vadd.f32 %v1386, %v1498
    %v1500 = vpop.f32.mrb[0].mxu0
    %v1501 = vadd.f32 %v1388, %v1500
    %v1502 = vpop.f32.mrb[0].mxu0
    %v1503 = vadd.f32 %v1390, %v1502
    %v1504 = vpop.f32.mrb[0].mxu0
    %v1505 = vadd.f32 %v1392, %v1504
    %1506 = vmatprep.mubr.bf16.mxu0 %v500
    %1507 = vmatmul.mubr.bf16.gmra.mrb[0].mxu0 %v499
    %v1508 = vpop.f32.mrb[0].mxu0
    %v1509 = vadd.f32 %v1396, %v1508
    %v1510 = vpop.f32.mrb[0].mxu0
    %v1511 = vadd.f32 %v1398, %v1510
    %v1512 = vpop.f32.mrb[0].mxu0
    %v1513 = vadd.f32 %v1400, %v1512
    %v1514 = vpop.f32.mrb[0].mxu0
    %v1515 = vadd.f32 %v1402, %v1514
    %1516 = vdwg.mxu0
    %1517 = vmatprep.subr.bf16.mxu0 %v1038
    %1518 = vmatpush1.bf16.msra.mxu0 %v1037
    %1519 = vmatprep.subr.bf16.mxu0 %v1042
    %1520 = vmatpush1.bf16.msra.mxu0 %v1041
    %1521 = vmatprep.subr.bf16.mxu0 %v1046
    %1522 = vmatpush1.bf16.msra.mxu0 %v1045
    %1523 = vmatprep.subr.bf16.mxu0 %v1050
    %1524 = vmatpush1.bf16.msra.mxu0 %v1049
    %1525 = vmatprep.subr.bf16.mxu0 %v1054
    %1526 = vmatpush1.bf16.msra.mxu0 %v1053
    %1527 = vmatprep.subr.bf16.mxu0 %v1058
    %1528 = vmatpush1.bf16.msra.mxu0 %v1057
    %1529 = vmatprep.subr.bf16.mxu0 %v1062
    %1530 = vmatpush1.bf16.msra.mxu0 %v1061
    %1531 = vmatprep.subr.bf16.mxu0 %v1066
    %1532 = vmatpush1.bf16.msra.mxu0 %v1065
    %1533 = vmatprep.subr.bf16.mxu0 %v1070
    %1534 = vmatpush1.bf16.msra.mxu0 %v1069
    %1535 = vmatprep.subr.bf16.mxu0 %v1074
    %1536 = vmatpush1.bf16.msra.mxu0 %v1073
    %1537 = vmatprep.subr.bf16.mxu0 %v1078
    %1538 = vmatpush1.bf16.msra.mxu0 %v1077
    %1539 = vmatprep.subr.bf16.mxu0 %v1082
    %1540 = vmatpush1.bf16.msra.mxu0 %v1081
    %1541 = vmatprep.subr.bf16.mxu0 %v1086
    %1542 = vmatpush1.bf16.msra.mxu0 %v1085
    %1543 = vmatprep.subr.bf16.mxu0 %v1090
    %1544 = vmatpush1.bf16.msra.mxu0 %v1089
    %1545 = vmatprep.subr.bf16.mxu0 %v1094
    %1546 = vmatpush1.bf16.msra.mxu0 %v1093
    %1547 = vmatprep.subr.bf16.mxu0 %v1098
    %1548 = vmatpush1.bf16.msra.mxu0 %v1097
    %1549 = vmatprep.mubr.bf16.mxu0 %v470
    %1550 = vmatmul.mubr.bf16.gmra.mrb[0].mxu0 %v469
    %v1551 = vpop.f32.mrb[0].mxu0
    %v1552 = vadd.f32 %v642, %v1551
    %v1553 = vpop.f32.mrb[0].mxu0
    %v1554 = vadd.f32 %v646, %v1553
    %v1555 = vpop.f32.mrb[0].mxu0
    %v1556 = vadd.f32 %v642, %v1555
    %v1557 = vpop.f32.mrb[0].mxu0
    %v1558 = vadd.f32 %v646, %v1557
    %1559 = vmatprep.mubr.bf16.mxu0 %v474
    %1560 = vmatmul.mubr.bf16.gmra.mrb[0].mxu0 %v473
    %v1561 = vpop.f32.mrb[0].mxu0
    %v1562 = vadd.f32 %v642, %v1561
    %v1563 = vpop.f32.mrb[0].mxu0
    %v1564 = vadd.f32 %v646, %v1563
    %v1565 = vpop.f32.mrb[0].mxu0
    %v1566 = vadd.f32 %v642, %v1565
    %v1567 = vpop.f32.mrb[0].mxu0
    %v1568 = vadd.f32 %v646, %v1567
    %1569 = vmatprep.mubr.bf16.mxu0 %v478
    %1570 = vmatmul.mubr.bf16.gmra.mrb[0].mxu0 %v477
    %v1571 = vpop.f32.mrb[0].mxu0
    %v1572 = vadd.f32 %v642, %v1571
    %v1573 = vpop.f32.mrb[0].mxu0
    %v1574 = vadd.f32 %v646, %v1573
    %v1575 = vpop.f32.mrb[0].mxu0
    %v1576 = vadd.f32 %v642, %v1575
    %v1577 = vpop.f32.mrb[0].mxu0
    %v1578 = vadd.f32 %v646, %v1577
    %1579 = vmatprep.mubr.bf16.mxu0 %v482
    %1580 = vmatmul.mubr.bf16.gmra.mrb[0].mxu0 %v481
    %v1581 = vpop.f32.mrb[0].mxu0
    %v1582 = vadd.f32 %v642, %v1581
    %v1583 = vpop.f32.mrb[0].mxu0
    %v1584 = vadd.f32 %v646, %v1583
    %v1585 = vpop.f32.mrb[0].mxu0
    %v1586 = vadd.f32 %v642, %v1585
    %v1587 = vpop.f32.mrb[0].mxu0
    %v1588 = vadd.f32 %v646, %v1587
    %1589 = vmatprep.mubr.bf16.mxu0 %v486
    %1590 = vmatmul.mubr.bf16.gmra.mrb[0].mxu0 %v485
    %v1591 = vpop.f32.mrb[0].mxu0
    %v1592 = vadd.f32 %v642, %v1591
    %v1593 = vpop.f32.mrb[0].mxu0
    %v1594 = vadd.f32 %v646, %v1593
    %v1595 = vpop.f32.mrb[0].mxu0
    %v1596 = vadd.f32 %v642, %v1595
    %v1597 = vpop.f32.mrb[0].mxu0
    %v1598 = vadd.f32 %v646, %v1597
    %1599 = vmatprep.mubr.bf16.mxu0 %v490
    %1600 = vmatmul.mubr.bf16.gmra.mrb[0].mxu0 %v489
    %v1601 = vpop.f32.mrb[0].mxu0
    %v1602 = vadd.f32 %v642, %v1601
    %v1603 = vpop.f32.mrb[0].mxu0
    %v1604 = vadd.f32 %v646, %v1603
    %v1605 = vpop.f32.mrb[0].mxu0
    %v1606 = vadd.f32 %v642, %v1605
    %v1607 = vpop.f32.mrb[0].mxu0
    %v1608 = vadd.f32 %v646, %v1607
    %1609 = vmatprep.mubr.bf16.mxu0 %v494
    %1610 = vmatmul.mubr.bf16.gmra.mrb[0].mxu0 %v493
    %v1611 = vpop.f32.mrb[0].mxu0
    %v1612 = vadd.f32 %v642, %v1611
    %v1613 = vpop.f32.mrb[0].mxu0
    %v1614 = vadd.f32 %v646, %v1613
    %v1615 = vpop.f32.mrb[0].mxu0
    %v1616 = vadd.f32 %v642, %v1615
    %v1617 = vpop.f32.mrb[0].mxu0
    %v1618 = vadd.f32 %v646, %v1617
    %1619 = vmatprep.mubr.bf16.mxu0 %v498
    %1620 = vmatmul.mubr.bf16.gmra.mrb[0].mxu0 %v497
    %v1621 = vpop.f32.mrb[0].mxu0
    %v1622 = vadd.f32 %v642, %v1621
    %v1623 = vpop.f32.mrb[0].mxu0
    %v1624 = vadd.f32 %v646, %v1623
    %v1625 = vpop.f32.mrb[0].mxu0
    %v1626 = vadd.f32 %v642, %v1625
    %v1627 = vpop.f32.mrb[0].mxu0
    %v1628 = vadd.f32 %v646, %v1627
    %1629 = vdwg.mxu0
    %1630 = vmatprep.subr.bf16.mxu0 %v1102
    %1631 = vmatpush1.bf16.msra.mxu0 %v1101
    %1632 = vmatprep.subr.bf16.mxu0 %v1106
    %1633 = vmatpush1.bf16.msra.mxu0 %v1105
    %1634 = vmatprep.subr.bf16.mxu0 %v1110
    %1635 = vmatpush1.bf16.msra.mxu0 %v1109
    %1636 = vmatprep.subr.bf16.mxu0 %v1114
    %1637 = vmatpush1.bf16.msra.mxu0 %v1113
    %1638 = vmatprep.subr.bf16.mxu0 %v1118
    %1639 = vmatpush1.bf16.msra.mxu0 %v1117
    %1640 = vmatprep.subr.bf16.mxu0 %v1122
    %1641 = vmatpush1.bf16.msra.mxu0 %v1121
    %1642 = vmatprep.subr.bf16.mxu0 %v1126
    %1643 = vmatpush1.bf16.msra.mxu0 %v1125
    %1644 = vmatprep.subr.bf16.mxu0 %v1130
    %1645 = vmatpush1.bf16.msra.mxu0 %v1129
    %1646 = vmatprep.subr.bf16.mxu0 %v1134
    %1647 = vmatpush1.bf16.msra.mxu0 %v1133
    %1648 = vmatprep.subr.bf16.mxu0 %v1138
    %1649 = vmatpush1.bf16.msra.mxu0 %v1137
    %1650 = vmatprep.subr.bf16.mxu0 %v1142
    %1651 = vmatpush1.bf16.msra.mxu0 %v1141
    %1652 = vmatprep.subr.bf16.mxu0 %v1146
    %1653 = vmatpush1.bf16.msra.mxu0 %v1145
    %1654 = vmatprep.subr.bf16.mxu0 %v1150
    %1655 = vmatpush1.bf16.msra.mxu0 %v1149
    %1656 = vmatprep.subr.bf16.mxu0 %v1154
    %1657 = vmatpush1.bf16.msra.mxu0 %v1153
    %1658 = vmatprep.subr.bf16.mxu0 %v1158
    %1659 = vmatpush1.bf16.msra.mxu0 %v1157
    %1660 = vmatprep.subr.bf16.mxu0 %v1162
    %1661 = vmatpush1.bf16.msra.mxu0 %v1161
    %1662 = vmatprep.mubr.bf16.mxu0 %v472
    %1663 = vmatmul.mubr.bf16.gmra.mrb[0].mxu0 %v471
    %v1664 = vpop.f32.mrb[0].mxu0
    %v1665 = vadd.f32 %v1552, %v1664
    %v1666 = vpop.f32.mrb[0].mxu0
    %v1667 = vadd.f32 %v1554, %v1666
    %v1668 = vpop.f32.mrb[0].mxu0
    %v1669 = vadd.f32 %v1556, %v1668
    %v1670 = vpop.f32.mrb[0].mxu0
    %v1671 = vadd.f32 %v1558, %v1670
    %1672 = vmatprep.mubr.bf16.mxu0 %v476
    %1673 = vmatmul.mubr.bf16.gmra.mrb[0].mxu0 %v475
    %v1674 = vpop.f32.mrb[0].mxu0
    %v1675 = vadd.f32 %v1562, %v1674
    %v1676 = vpop.f32.mrb[0].mxu0
    %v1677 = vadd.f32 %v1564, %v1676
    %v1678 = vpop.f32.mrb[0].mxu0
    %v1679 = vadd.f32 %v1566, %v1678
    %v1680 = vpop.f32.mrb[0].mxu0
    %v1681 = vadd.f32 %v1568, %v1680
    %1682 = vmatprep.mubr.bf16.mxu0 %v480
    %1683 = vmatmul.mubr.bf16.gmra.mrb[0].mxu0 %v479
    %v1684 = vpop.f32.mrb[0].mxu0
    %v1685 = vadd.f32 %v1572, %v1684
    %v1686 = vpop.f32.mrb[0].mxu0
    %v1687 = vadd.f32 %v1574, %v1686
    %v1688 = vpop.f32.mrb[0].mxu0
    %v1689 = vadd.f32 %v1576, %v1688
    %v1690 = vpop.f32.mrb[0].mxu0
    %v1691 = vadd.f32 %v1578, %v1690
    %1692 = vmatprep.mubr.bf16.mxu0 %v484
    %1693 = vmatmul.mubr.bf16.gmra.mrb[0].mxu0 %v483
    %v1694 = vpop.f32.mrb[0].mxu0
    %v1695 = vadd.f32 %v1582, %v1694
    %v1696 = vpop.f32.mrb[0].mxu0
    %v1697 = vadd.f32 %v1584, %v1696
    %v1698 = vpop.f32.mrb[0].mxu0
    %v1699 = vadd.f32 %v1586, %v1698
    %v1700 = vpop.f32.mrb[0].mxu0
    %v1701 = vadd.f32 %v1588, %v1700
    %1702 = vmatprep.mubr.bf16.mxu0 %v488
    %1703 = vmatmul.mubr.bf16.gmra.mrb[0].mxu0 %v487
    %v1704 = vpop.f32.mrb[0].mxu0
    %v1705 = vadd.f32 %v1592, %v1704
    %v1706 = vpop.f32.mrb[0].mxu0
    %v1707 = vadd.f32 %v1594, %v1706
    %v1708 = vpop.f32.mrb[0].mxu0
    %v1709 = vadd.f32 %v1596, %v1708
    %v1710 = vpop.f32.mrb[0].mxu0
    %v1711 = vadd.f32 %v1598, %v1710
    %1712 = vmatprep.mubr.bf16.mxu0 %v492
    %1713 = vmatmul.mubr.bf16.gmra.mrb[0].mxu0 %v491
    %v1714 = vpop.f32.mrb[0].mxu0
    %v1715 = vadd.f32 %v1602, %v1714
    %v1716 = vpop.f32.mrb[0].mxu0
    %v1717 = vadd.f32 %v1604, %v1716
    %v1718 = vpop.f32.mrb[0].mxu0
    %v1719 = vadd.f32 %v1606, %v1718
    %v1720 = vpop.f32.mrb[0].mxu0
    %v1721 = vadd.f32 %v1608, %v1720
    %1722 = vmatprep.mubr.bf16.mxu0 %v496
    %1723 = vmatmul.mubr.bf16.gmra.mrb[0].mxu0 %v495
    %v1724 = vpop.f32.mrb[0].mxu0
    %v1725 = vadd.f32 %v1612, %v1724
    %v1726 = vpop.f32.mrb[0].mxu0
    %v1727 = vadd.f32 %v1614, %v1726
    %v1728 = vpop.f32.mrb[0].mxu0
    %v1729 = vadd.f32 %v1616, %v1728
    %v1730 = vpop.f32.mrb[0].mxu0
    %v1731 = vadd.f32 %v1618, %v1730
    %1732 = vmatprep.mubr.bf16.mxu0 %v500
    %1733 = vmatmul.mubr.bf16.gmra.mrb[0].mxu0 %v499
    %v1734 = vpop.f32.mrb[0].mxu0
    %v1735 = vadd.f32 %v1622, %v1734
    %v1736 = vpop.f32.mrb[0].mxu0
    %v1737 = vadd.f32 %v1624, %v1736
    %v1738 = vpop.f32.mrb[0].mxu0
    %v1739 = vadd.f32 %v1626, %v1738
    %v1740 = vpop.f32.mrb[0].mxu0
    %v1741 = vadd.f32 %v1628, %v1740
    %1742 = vdwg.mxu0
    %v1743 = vmax.f32 %v1439, 0.0
    %v1744 = vmax.f32 %v1441, 0.0
    %v1745 = vmax.f32 %v1665, 0.0
    %v1746 = vmax.f32 %v1667, 0.0
    %v1747 = vmax.f32 %v1443, 0.0
    %v1748 = vmax.f32 %v1445, 0.0
    %v1749 = vmax.f32 %v1669, 0.0
    %v1750 = vmax.f32 %v1671, 0.0
    %v1751 = vmax.f32 %v1449, 0.0
    %v1752 = vmax.f32 %v1451, 0.0
    %v1753 = vmax.f32 %v1675, 0.0
    %v1754 = vmax.f32 %v1677, 0.0
    %v1755 = vmax.f32 %v1453, 0.0
    %v1756 = vmax.f32 %v1455, 0.0
    %v1757 = vmax.f32 %v1679, 0.0
    %v1758 = vmax.f32 %v1681, 0.0
    %v1759 = vmax.f32 %v1459, 0.0
    %v1760 = vmax.f32 %v1461, 0.0
    %v1761 = vmax.f32 %v1685, 0.0
    %v1762 = vmax.f32 %v1687, 0.0
    %v1763 = vmax.f32 %v1463, 0.0
    %v1764 = vmax.f32 %v1465, 0.0
    %v1765 = vmax.f32 %v1689, 0.0
    %v1766 = vmax.f32 %v1691, 0.0
    %v1767 = vmax.f32 %v1469, 0.0
    %v1768 = vmax.f32 %v1471, 0.0
    %v1769 = vmax.f32 %v1695, 0.0
    %v1770 = vmax.f32 %v1697, 0.0
    %v1771 = vmax.f32 %v1473, 0.0
    %v1772 = vmax.f32 %v1475, 0.0
    %v1773 = vmax.f32 %v1699, 0.0
    %v1774 = vmax.f32 %v1701, 0.0
    %v1775 = vmax.f32 %v1479, 0.0
    %v1776 = vmax.f32 %v1481, 0.0
    %v1777 = vmax.f32 %v1705, 0.0
    %v1778 = vmax.f32 %v1707, 0.0
    %v1779 = vmax.f32 %v1483, 0.0
    %v1780 = vmax.f32 %v1485, 0.0
    %v1781 = vmax.f32 %v1709, 0.0
    %v1782 = vmax.f32 %v1711, 0.0
    %v1783 = vmax.f32 %v1489, 0.0
    %v1784 = vmax.f32 %v1491, 0.0
    %v1785 = vmax.f32 %v1715, 0.0
    %v1786 = vmax.f32 %v1717, 0.0
    %v1787 = vmax.f32 %v1493, 0.0
    %v1788 = vmax.f32 %v1495, 0.0
    %v1789 = vmax.f32 %v1719, 0.0
    %v1790 = vmax.f32 %v1721, 0.0
    %v1791 = vmax.f32 %v1499, 0.0
    %v1792 = vmax.f32 %v1501, 0.0
    %v1793 = vmax.f32 %v1725, 0.0
    %v1794 = vmax.f32 %v1727, 0.0
    %v1795 = vmax.f32 %v1503, 0.0
    %v1796 = vmax.f32 %v1505, 0.0
    %v1797 = vmax.f32 %v1729, 0.0
    %v1798 = vmax.f32 %v1731, 0.0
    %v1799 = vmax.f32 %v1509, 0.0
    %v1800 = vmax.f32 %v1511, 0.0
    %v1801 = vmax.f32 %v1735, 0.0
    %v1802 = vmax.f32 %v1737, 0.0
    %v1803 = vmax.f32 %v1513, 0.0
    %v1804 = vmax.f32 %v1515, 0.0
    %v1805 = vmax.f32 %v1739, 0.0
    %v1806 = vmax.f32 %v1741, 0.0
    %v1807 = vpack.c.bf16 %v1747, %v1743
    %v1808 = vpack.c.bf16 %v1748, %v1744
    %v1809 = vpack.c.bf16 %v1749, %v1745
    %v1810 = vpack.c.bf16 %v1750, %v1746
    %v1811 = vpack.c.bf16 %v1755, %v1751
    %v1812 = vpack.c.bf16 %v1756, %v1752
    %v1813 = vpack.c.bf16 %v1757, %v1753
    %v1814 = vpack.c.bf16 %v1758, %v1754
    %v1815 = vpack.c.bf16 %v1763, %v1759
    %v1816 = vpack.c.bf16 %v1764, %v1760
    %v1817 = vpack.c.bf16 %v1765, %v1761
    %v1818 = vpack.c.bf16 %v1766, %v1762
    %v1819 = vpack.c.bf16 %v1771, %v1767
    %v1820 = vpack.c.bf16 %v1772, %v1768
    %v1821 = vpack.c.bf16 %v1773, %v1769
    %v1822 = vpack.c.bf16 %v1774, %v1770
    %v1823 = vpack.c.bf16 %v1779, %v1775
    %v1824 = vpack.c.bf16 %v1780, %v1776
    %v1825 = vpack.c.bf16 %v1781, %v1777
    %v1826 = vpack.c.bf16 %v1782, %v1778
    %v1827 = vpack.c.bf16 %v1787, %v1783
    %v1828 = vpack.c.bf16 %v1788, %v1784
    %v1829 = vpack.c.bf16 %v1789, %v1785
    %v1830 = vpack.c.bf16 %v1790, %v1786
    %v1831 = vpack.c.bf16 %v1795, %v1791
    %v1832 = vpack.c.bf16 %v1796, %v1792
    %v1833 = vpack.c.bf16 %v1797, %v1793
    %v1834 = vpack.c.bf16 %v1798, %v1794
    %v1835 = vpack.c.bf16 %v1803, %v1799
    %v1836 = vpack.c.bf16 %v1804, %v1800
    %v1837 = vpack.c.bf16 %v1805, %v1801
    %v1838 = vpack.c.bf16 %v1806, %v1802
    %v1839 = vld [vmem:[#allocation6] sm:$0xff]
    %v1840 = vld [vmem:[#allocation6 + $0x8] sm:$0xff]
    %v1841 = vld [vmem:[#allocation6 + $0x10] sm:$0xff]
    %v1842 = vld [vmem:[#allocation6 + $0x18] sm:$0xff]
    %v1843 = vld [vmem:[#allocation6 + $0x20] sm:$0xff]
    %v1844 = vld [vmem:[#allocation6 + $0x28] sm:$0xff]
    %v1845 = vld [vmem:[#allocation6 + $0x30] sm:$0xff]
    %v1846 = vld [vmem:[#allocation6 + $0x38] sm:$0xff]
    %v1847 = vld [vmem:[#allocation6 + $0x40] sm:$0xff]
    %v1848 = vld [vmem:[#allocation6 + $0x48] sm:$0xff]
    %v1849 = vld [vmem:[#allocation6 + $0x50] sm:$0xff]
    %v1850 = vld [vmem:[#allocation6 + $0x58] sm:$0xff]
    %v1851 = vld [vmem:[#allocation6 + $0x60] sm:$0xff]
    %v1852 = vld [vmem:[#allocation6 + $0x68] sm:$0xff]
    %v1853 = vld [vmem:[#allocation6 + $0x70] sm:$0xff]
    %v1854 = vld [vmem:[#allocation6 + $0x78] sm:$0xff]
    %v1855 = vld [vmem:[#allocation6 + $0x80] sm:$0xff]
    %v1856 = vld [vmem:[#allocation6 + $0x88] sm:$0xff]
    %v1857 = vld [vmem:[#allocation6 + $0x90] sm:$0xff]
    %v1858 = vld [vmem:[#allocation6 + $0x98] sm:$0xff]
    %v1859 = vld [vmem:[#allocation6 + $0xa0] sm:$0xff]
    %v1860 = vld [vmem:[#allocation6 + $0xa8] sm:$0xff]
    %v1861 = vld [vmem:[#allocation6 + $0xb0] sm:$0xff]
    %v1862 = vld [vmem:[#allocation6 + $0xb8] sm:$0xff]
    %v1863 = vld [vmem:[#allocation6 + $0xc0] sm:$0xff]
    %v1864 = vld [vmem:[#allocation6 + $0xc8] sm:$0xff]
    %v1865 = vld [vmem:[#allocation6 + $0xd0] sm:$0xff]
    %v1866 = vld [vmem:[#allocation6 + $0xd8] sm:$0xff]
    %v1867 = vld [vmem:[#allocation6 + $0xe0] sm:$0xff]
    %v1868 = vld [vmem:[#allocation6 + $0xe8] sm:$0xff]
    %v1869 = vld [vmem:[#allocation6 + $0xf0] sm:$0xff]
    %v1870 = vld [vmem:[#allocation6 + $0xf8] sm:$0xff]
    %v1871 = vld [vmem:[#allocation6 + $0x100] sm:$0xff]
    %v1872 = vld [vmem:[#allocation6 + $0x108] sm:$0xff]
    %v1873 = vld [vmem:[#allocation6 + $0x110] sm:$0xff]
    %v1874 = vld [vmem:[#allocation6 + $0x118] sm:$0xff]
    %v1875 = vld [vmem:[#allocation6 + $0x120] sm:$0xff]
    %v1876 = vld [vmem:[#allocation6 + $0x128] sm:$0xff]
    %v1877 = vld [vmem:[#allocation6 + $0x130] sm:$0xff]
    %v1878 = vld [vmem:[#allocation6 + $0x138] sm:$0xff]
    %v1879 = vld [vmem:[#allocation6 + $0x140] sm:$0xff]
    %v1880 = vld [vmem:[#allocation6 + $0x148] sm:$0xff]
    %v1881 = vld [vmem:[#allocation6 + $0x150] sm:$0xff]
    %v1882 = vld [vmem:[#allocation6 + $0x158] sm:$0xff]
    %v1883 = vld [vmem:[#allocation6 + $0x160] sm:$0xff]
    %v1884 = vld [vmem:[#allocation6 + $0x168] sm:$0xff]
    %v1885 = vld [vmem:[#allocation6 + $0x170] sm:$0xff]
    %v1886 = vld [vmem:[#allocation6 + $0x178] sm:$0xff]
    %v1887 = vld [vmem:[#allocation6 + $0x180] sm:$0xff]
    %v1888 = vld [vmem:[#allocation6 + $0x188] sm:$0xff]
    %v1889 = vld [vmem:[#allocation6 + $0x190] sm:$0xff]
    %v1890 = vld [vmem:[#allocation6 + $0x198] sm:$0xff]
    %v1891 = vld [vmem:[#allocation6 + $0x1a0] sm:$0xff]
    %v1892 = vld [vmem:[#allocation6 + $0x1a8] sm:$0xff]
    %v1893 = vld [vmem:[#allocation6 + $0x1b0] sm:$0xff]
    %v1894 = vld [vmem:[#allocation6 + $0x1b8] sm:$0xff]
    %v1895 = vld [vmem:[#allocation6 + $0x1c0] sm:$0xff]
    %v1896 = vld [vmem:[#allocation6 + $0x1c8] sm:$0xff]
    %v1897 = vld [vmem:[#allocation6 + $0x1d0] sm:$0xff]
    %v1898 = vld [vmem:[#allocation6 + $0x1d8] sm:$0xff]
    %v1899 = vld [vmem:[#allocation6 + $0x1e0] sm:$0xff]
    %v1900 = vld [vmem:[#allocation6 + $0x1e8] sm:$0xff]
    %v1901 = vld [vmem:[#allocation6 + $0x1f0] sm:$0xff]
    %v1902 = vld [vmem:[#allocation6 + $0x1f8] sm:$0xff]
    %v1903 = vld [vmem:[#allocation6 + $0x200] sm:$0xff]
    %v1904 = vld [vmem:[#allocation6 + $0x208] sm:$0xff]
    %v1905 = vld [vmem:[#allocation6 + $0x210] sm:$0xff]
    %v1906 = vld [vmem:[#allocation6 + $0x218] sm:$0xff]
    %v1907 = vld [vmem:[#allocation6 + $0x220] sm:$0xff]
    %v1908 = vld [vmem:[#allocation6 + $0x228] sm:$0xff]
    %v1909 = vld [vmem:[#allocation6 + $0x230] sm:$0xff]
    %v1910 = vld [vmem:[#allocation6 + $0x238] sm:$0xff]
    %v1911 = vld [vmem:[#allocation6 + $0x240] sm:$0xff]
    %v1912 = vld [vmem:[#allocation6 + $0x248] sm:$0xff]
    %v1913 = vld [vmem:[#allocation6 + $0x250] sm:$0xff]
    %v1914 = vld [vmem:[#allocation6 + $0x258] sm:$0xff]
    %v1915 = vld [vmem:[#allocation6 + $0x260] sm:$0xff]
    %v1916 = vld [vmem:[#allocation6 + $0x268] sm:$0xff]
    %v1917 = vld [vmem:[#allocation6 + $0x270] sm:$0xff]
    %v1918 = vld [vmem:[#allocation6 + $0x278] sm:$0xff]
    %v1919 = vld [vmem:[#allocation6 + $0x280] sm:$0xff]
    %v1920 = vld [vmem:[#allocation6 + $0x288] sm:$0xff]
    %v1921 = vld [vmem:[#allocation6 + $0x290] sm:$0xff]
    %v1922 = vld [vmem:[#allocation6 + $0x298] sm:$0xff]
    %v1923 = vld [vmem:[#allocation6 + $0x2a0] sm:$0xff]
    %v1924 = vld [vmem:[#allocation6 + $0x2a8] sm:$0xff]
    %v1925 = vld [vmem:[#allocation6 + $0x2b0] sm:$0xff]
    %v1926 = vld [vmem:[#allocation6 + $0x2b8] sm:$0xff]
    %v1927 = vld [vmem:[#allocation6 + $0x2c0] sm:$0xff]
    %v1928 = vld [vmem:[#allocation6 + $0x2c8] sm:$0xff]
    %v1929 = vld [vmem:[#allocation6 + $0x2d0] sm:$0xff]
    %v1930 = vld [vmem:[#allocation6 + $0x2d8] sm:$0xff]
    %v1931 = vld [vmem:[#allocation6 + $0x2e0] sm:$0xff]
    %v1932 = vld [vmem:[#allocation6 + $0x2e8] sm:$0xff]
    %v1933 = vld [vmem:[#allocation6 + $0x2f0] sm:$0xff]
    %v1934 = vld [vmem:[#allocation6 + $0x2f8] sm:$0xff]
    %v1935 = vld [vmem:[#allocation6 + $0x300] sm:$0xff]
    %v1936 = vld [vmem:[#allocation6 + $0x308] sm:$0xff]
    %v1937 = vld [vmem:[#allocation6 + $0x310] sm:$0xff]
    %v1938 = vld [vmem:[#allocation6 + $0x318] sm:$0xff]
    %v1939 = vld [vmem:[#allocation6 + $0x320] sm:$0xff]
    %v1940 = vld [vmem:[#allocation6 + $0x328] sm:$0xff]
    %v1941 = vld [vmem:[#allocation6 + $0x330] sm:$0xff]
    %v1942 = vld [vmem:[#allocation6 + $0x338] sm:$0xff]
    %v1943 = vld [vmem:[#allocation6 + $0x340] sm:$0xff]
    %v1944 = vld [vmem:[#allocation6 + $0x348] sm:$0xff]
    %v1945 = vld [vmem:[#allocation6 + $0x350] sm:$0xff]
    %v1946 = vld [vmem:[#allocation6 + $0x358] sm:$0xff]
    %v1947 = vld [vmem:[#allocation6 + $0x360] sm:$0xff]
    %v1948 = vld [vmem:[#allocation6 + $0x368] sm:$0xff]
    %v1949 = vld [vmem:[#allocation6 + $0x370] sm:$0xff]
    %v1950 = vld [vmem:[#allocation6 + $0x378] sm:$0xff]
    %v1951 = vld [vmem:[#allocation6 + $0x380] sm:$0xff]
    %v1952 = vld [vmem:[#allocation6 + $0x388] sm:$0xff]
    %v1953 = vld [vmem:[#allocation6 + $0x390] sm:$0xff]
    %v1954 = vld [vmem:[#allocation6 + $0x398] sm:$0xff]
    %v1955 = vld [vmem:[#allocation6 + $0x3a0] sm:$0xff]
    %v1956 = vld [vmem:[#allocation6 + $0x3a8] sm:$0xff]
    %v1957 = vld [vmem:[#allocation6 + $0x3b0] sm:$0xff]
    %v1958 = vld [vmem:[#allocation6 + $0x3b8] sm:$0xff]
    %v1959 = vld [vmem:[#allocation6 + $0x3c0] sm:$0xff]
    %v1960 = vld [vmem:[#allocation6 + $0x3c8] sm:$0xff]
    %v1961 = vld [vmem:[#allocation6 + $0x3d0] sm:$0xff]
    %v1962 = vld [vmem:[#allocation6 + $0x3d8] sm:$0xff]
    %v1963 = vld [vmem:[#allocation6 + $0x3e0] sm:$0xff]
    %v1964 = vld [vmem:[#allocation6 + $0x3e8] sm:$0xff]
    %v1965 = vld [vmem:[#allocation6 + $0x3f0] sm:$0xff]
    %v1966 = vld [vmem:[#allocation6 + $0x3f8] sm:$0xff]
    %v1967 = vld [vmem:[%s6] sm:$0xf]
    %v1969 = vlaneseq
    %v1970 = vshrl.u32 %v1969, 7
    %v1971 = vsub.s32 0, %v1970
    %v1972 = vrot.slane %v1967, %v1971
    %v1973 = vlaneseq
    %v1974 = vshrl.u32 %v1973, 7
    %v1975 = vsub.s32 1, %v1974
    %v1976 = vrot.slane %v1967, %v1975
    %v1977 = vlaneseq
    %v1978 = vshrl.u32 %v1977, 7
    %v1979 = vsub.s32 2, %v1978
    %v1980 = vrot.slane %v1967, %v1979
    %v1981 = vlaneseq
    %v1982 = vshrl.u32 %v1981, 7
    %v1983 = vsub.s32 3, %v1982
    %v1984 = vrot.slane %v1967, %v1983
    %v2117 = vunpack.c.l.b16 %v1839
    %v2118 = vunpack.c.h.b16 %v1839
    %v2119 = vunpack.c.l.b16 %v1840
    %v2120 = vunpack.c.h.b16 %v1840
    %v2121 = vunpack.c.l.b16 %v1841
    %v2122 = vunpack.c.h.b16 %v1841
    %v2123 = vunpack.c.l.b16 %v1842
    %v2124 = vunpack.c.h.b16 %v1842
    %v2125 = vunpack.c.l.b16 %v1843
    %v2126 = vunpack.c.h.b16 %v1843
    %v2127 = vunpack.c.l.b16 %v1844
    %v2128 = vunpack.c.h.b16 %v1844
    %v2129 = vunpack.c.l.b16 %v1845
    %v2130 = vunpack.c.h.b16 %v1845
    %v2131 = vunpack.c.l.b16 %v1846
    %v2132 = vunpack.c.h.b16 %v1846
    %v2133 = vunpack.c.l.b16 %v1847
    %v2134 = vunpack.c.h.b16 %v1847
    %v2135 = vunpack.c.l.b16 %v1848
    %v2136 = vunpack.c.h.b16 %v1848
    %v2137 = vunpack.c.l.b16 %v1849
    %v2138 = vunpack.c.h.b16 %v1849
    %v2139 = vunpack.c.l.b16 %v1850
    %v2140 = vunpack.c.h.b16 %v1850
    %v2141 = vunpack.c.l.b16 %v1851
    %v2142 = vunpack.c.h.b16 %v1851
    %v2143 = vunpack.c.l.b16 %v1852
    %v2144 = vunpack.c.h.b16 %v1852
    %v2145 = vunpack.c.l.b16 %v1853
    %v2146 = vunpack.c.h.b16 %v1853
    %v2147 = vunpack.c.l.b16 %v1854
    %v2148 = vunpack.c.h.b16 %v1854
    %v2149 = vunpack.c.l.b16 %v1855
    %v2150 = vunpack.c.h.b16 %v1855
    %v2151 = vunpack.c.l.b16 %v1856
    %v2152 = vunpack.c.h.b16 %v1856
    %v2153 = vunpack.c.l.b16 %v1857
    %v2154 = vunpack.c.h.b16 %v1857
    %v2155 = vunpack.c.l.b16 %v1858
    %v2156 = vunpack.c.h.b16 %v1858
    %v2157 = vunpack.c.l.b16 %v1859
    %v2158 = vunpack.c.h.b16 %v1859
    %v2159 = vunpack.c.l.b16 %v1860
    %v2160 = vunpack.c.h.b16 %v1860
    %v2161 = vunpack.c.l.b16 %v1861
    %v2162 = vunpack.c.h.b16 %v1861
    %v2163 = vunpack.c.l.b16 %v1862
    %v2164 = vunpack.c.h.b16 %v1862
    %v2165 = vunpack.c.l.b16 %v1863
    %v2166 = vunpack.c.h.b16 %v1863
    %v2167 = vunpack.c.l.b16 %v1864
    %v2168 = vunpack.c.h.b16 %v1864
    %v2169 = vunpack.c.l.b16 %v1865
    %v2170 = vunpack.c.h.b16 %v1865
    %v2171 = vunpack.c.l.b16 %v1866
    %v2172 = vunpack.c.h.b16 %v1866
    %v2173 = vunpack.c.l.b16 %v1867
    %v2174 = vunpack.c.h.b16 %v1867
    %v2175 = vunpack.c.l.b16 %v1868
    %v2176 = vunpack.c.h.b16 %v1868
    %v2177 = vunpack.c.l.b16 %v1869
    %v2178 = vunpack.c.h.b16 %v1869
    %v2179 = vunpack.c.l.b16 %v1870
    %v2180 = vunpack.c.h.b16 %v1870
    %v2181 = vunpack.c.l.b16 %v1871
    %v2182 = vunpack.c.h.b16 %v1871
    %v2183 = vunpack.c.l.b16 %v1872
    %v2184 = vunpack.c.h.b16 %v1872
    %v2185 = vunpack.c.l.b16 %v1873
    %v2186 = vunpack.c.h.b16 %v1873
    %v2187 = vunpack.c.l.b16 %v1874
    %v2188 = vunpack.c.h.b16 %v1874
    %v2189 = vunpack.c.l.b16 %v1875
    %v2190 = vunpack.c.h.b16 %v1875
    %v2191 = vunpack.c.l.b16 %v1876
    %v2192 = vunpack.c.h.b16 %v1876
    %v2193 = vunpack.c.l.b16 %v1877
    %v2194 = vunpack.c.h.b16 %v1877
    %v2195 = vunpack.c.l.b16 %v1878
    %v2196 = vunpack.c.h.b16 %v1878
    %v2197 = vunpack.c.l.b16 %v1879
    %v2198 = vunpack.c.h.b16 %v1879
    %v2199 = vunpack.c.l.b16 %v1880
    %v2200 = vunpack.c.h.b16 %v1880
    %v2201 = vunpack.c.l.b16 %v1881
    %v2202 = vunpack.c.h.b16 %v1881
    %v2203 = vunpack.c.l.b16 %v1882
    %v2204 = vunpack.c.h.b16 %v1882
    %v2205 = vunpack.c.l.b16 %v1883
    %v2206 = vunpack.c.h.b16 %v1883
    %v2207 = vunpack.c.l.b16 %v1884
    %v2208 = vunpack.c.h.b16 %v1884
    %v2209 = vunpack.c.l.b16 %v1885
    %v2210 = vunpack.c.h.b16 %v1885
    %v2211 = vunpack.c.l.b16 %v1886
    %v2212 = vunpack.c.h.b16 %v1886
    %v2213 = vunpack.c.l.b16 %v1887
    %v2214 = vunpack.c.h.b16 %v1887
    %v2215 = vunpack.c.l.b16 %v1888
    %v2216 = vunpack.c.h.b16 %v1888
    %v2217 = vunpack.c.l.b16 %v1889
    %v2218 = vunpack.c.h.b16 %v1889
    %v2219 = vunpack.c.l.b16 %v1890
    %v2220 = vunpack.c.h.b16 %v1890
    %v2221 = vunpack.c.l.b16 %v1891
    %v2222 = vunpack.c.h.b16 %v1891
    %v2223 = vunpack.c.l.b16 %v1892
    %v2224 = vunpack.c.h.b16 %v1892
    %v2225 = vunpack.c.l.b16 %v1893
    %v2226 = vunpack.c.h.b16 %v1893
    %v2227 = vunpack.c.l.b16 %v1894
    %v2228 = vunpack.c.h.b16 %v1894
    %v2229 = vunpack.c.l.b16 %v1895
    %v2230 = vunpack.c.h.b16 %v1895
    %v2231 = vunpack.c.l.b16 %v1896
    %v2232 = vunpack.c.h.b16 %v1896
    %v2233 = vunpack.c.l.b16 %v1897
    %v2234 = vunpack.c.h.b16 %v1897
    %v2235 = vunpack.c.l.b16 %v1898
    %v2236 = vunpack.c.h.b16 %v1898
    %v2237 = vunpack.c.l.b16 %v1899
    %v2238 = vunpack.c.h.b16 %v1899
    %v2239 = vunpack.c.l.b16 %v1900
    %v2240 = vunpack.c.h.b16 %v1900
    %v2241 = vunpack.c.l.b16 %v1901
    %v2242 = vunpack.c.h.b16 %v1901
    %v2243 = vunpack.c.l.b16 %v1902
    %v2244 = vunpack.c.h.b16 %v1902
    %v2245 = vunpack.c.l.b16 %v1903
    %v2246 = vunpack.c.h.b16 %v1903
    %v2247 = vunpack.c.l.b16 %v1904
    %v2248 = vunpack.c.h.b16 %v1904
    %v2249 = vunpack.c.l.b16 %v1905
    %v2250 = vunpack.c.h.b16 %v1905
    %v2251 = vunpack.c.l.b16 %v1906
    %v2252 = vunpack.c.h.b16 %v1906
    %v2253 = vunpack.c.l.b16 %v1907
    %v2254 = vunpack.c.h.b16 %v1907
    %v2255 = vunpack.c.l.b16 %v1908
    %v2256 = vunpack.c.h.b16 %v1908
    %v2257 = vunpack.c.l.b16 %v1909
    %v2258 = vunpack.c.h.b16 %v1909
    %v2259 = vunpack.c.l.b16 %v1910
    %v2260 = vunpack.c.h.b16 %v1910
    %v2261 = vunpack.c.l.b16 %v1911
    %v2262 = vunpack.c.h.b16 %v1911
    %v2263 = vunpack.c.l.b16 %v1912
    %v2264 = vunpack.c.h.b16 %v1912
    %v2265 = vunpack.c.l.b16 %v1913
    %v2266 = vunpack.c.h.b16 %v1913
    %v2267 = vunpack.c.l.b16 %v1914
    %v2268 = vunpack.c.h.b16 %v1914
    %v2269 = vunpack.c.l.b16 %v1915
    %v2270 = vunpack.c.h.b16 %v1915
    %v2271 = vunpack.c.l.b16 %v1916
    %v2272 = vunpack.c.h.b16 %v1916
    %v2273 = vunpack.c.l.b16 %v1917
    %v2274 = vunpack.c.h.b16 %v1917
    %v2275 = vunpack.c.l.b16 %v1918
    %v2276 = vunpack.c.h.b16 %v1918
    %v2277 = vunpack.c.l.b16 %v1919
    %v2278 = vunpack.c.h.b16 %v1919
    %v2279 = vunpack.c.l.b16 %v1920
    %v2280 = vunpack.c.h.b16 %v1920
    %v2281 = vunpack.c.l.b16 %v1921
    %v2282 = vunpack.c.h.b16 %v1921
    %v2283 = vunpack.c.l.b16 %v1922
    %v2284 = vunpack.c.h.b16 %v1922
    %v2285 = vunpack.c.l.b16 %v1923
    %v2286 = vunpack.c.h.b16 %v1923
    %v2287 = vunpack.c.l.b16 %v1924
    %v2288 = vunpack.c.h.b16 %v1924
    %v2289 = vunpack.c.l.b16 %v1925
    %v2290 = vunpack.c.h.b16 %v1925
    %v2291 = vunpack.c.l.b16 %v1926
    %v2292 = vunpack.c.h.b16 %v1926
    %v2293 = vunpack.c.l.b16 %v1927
    %v2294 = vunpack.c.h.b16 %v1927
    %v2295 = vunpack.c.l.b16 %v1928
    %v2296 = vunpack.c.h.b16 %v1928
    %v2297 = vunpack.c.l.b16 %v1929
    %v2298 = vunpack.c.h.b16 %v1929
    %v2299 = vunpack.c.l.b16 %v1930
    %v2300 = vunpack.c.h.b16 %v1930
    %v2301 = vunpack.c.l.b16 %v1931
    %v2302 = vunpack.c.h.b16 %v1931
    %v2303 = vunpack.c.l.b16 %v1932
    %v2304 = vunpack.c.h.b16 %v1932
    %v2305 = vunpack.c.l.b16 %v1933
    %v2306 = vunpack.c.h.b16 %v1933
    %v2307 = vunpack.c.l.b16 %v1934
    %v2308 = vunpack.c.h.b16 %v1934
    %v2309 = vunpack.c.l.b16 %v1935
    %v2310 = vunpack.c.h.b16 %v1935
    %v2311 = vunpack.c.l.b16 %v1936
    %v2312 = vunpack.c.h.b16 %v1936
    %v2313 = vunpack.c.l.b16 %v1937
    %v2314 = vunpack.c.h.b16 %v1937
    %v2315 = vunpack.c.l.b16 %v1938
    %v2316 = vunpack.c.h.b16 %v1938
    %v2317 = vunpack.c.l.b16 %v1939
    %v2318 = vunpack.c.h.b16 %v1939
    %v2319 = vunpack.c.l.b16 %v1940
    %v2320 = vunpack.c.h.b16 %v1940
    %v2321 = vunpack.c.l.b16 %v1941
    %v2322 = vunpack.c.h.b16 %v1941
    %v2323 = vunpack.c.l.b16 %v1942
    %v2324 = vunpack.c.h.b16 %v1942
    %v2325 = vunpack.c.l.b16 %v1943
    %v2326 = vunpack.c.h.b16 %v1943
    %v2327 = vunpack.c.l.b16 %v1944
    %v2328 = vunpack.c.h.b16 %v1944
    %v2329 = vunpack.c.l.b16 %v1945
    %v2330 = vunpack.c.h.b16 %v1945
    %v2331 = vunpack.c.l.b16 %v1946
    %v2332 = vunpack.c.h.b16 %v1946
    %v2333 = vunpack.c.l.b16 %v1947
    %v2334 = vunpack.c.h.b16 %v1947
    %v2335 = vunpack.c.l.b16 %v1948
    %v2336 = vunpack.c.h.b16 %v1948
    %v2337 = vunpack.c.l.b16 %v1949
    %v2338 = vunpack.c.h.b16 %v1949
    %v2339 = vunpack.c.l.b16 %v1950
    %v2340 = vunpack.c.h.b16 %v1950
    %v2341 = vunpack.c.l.b16 %v1951
    %v2342 = vunpack.c.h.b16 %v1951
    %v2343 = vunpack.c.l.b16 %v1952
    %v2344 = vunpack.c.h.b16 %v1952
    %v2345 = vunpack.c.l.b16 %v1953
    %v2346 = vunpack.c.h.b16 %v1953
    %v2347 = vunpack.c.l.b16 %v1954
    %v2348 = vunpack.c.h.b16 %v1954
    %v2349 = vunpack.c.l.b16 %v1955
    %v2350 = vunpack.c.h.b16 %v1955
    %v2351 = vunpack.c.l.b16 %v1956
    %v2352 = vunpack.c.h.b16 %v1956
    %v2353 = vunpack.c.l.b16 %v1957
    %v2354 = vunpack.c.h.b16 %v1957
    %v2355 = vunpack.c.l.b16 %v1958
    %v2356 = vunpack.c.h.b16 %v1958
    %v2357 = vunpack.c.l.b16 %v1959
    %v2358 = vunpack.c.h.b16 %v1959
    %v2359 = vunpack.c.l.b16 %v1960
    %v2360 = vunpack.c.h.b16 %v1960
    %v2361 = vunpack.c.l.b16 %v1961
    %v2362 = vunpack.c.h.b16 %v1961
    %v2363 = vunpack.c.l.b16 %v1962
    %v2364 = vunpack.c.h.b16 %v1962
    %v2365 = vunpack.c.l.b16 %v1963
    %v2366 = vunpack.c.h.b16 %v1963
    %v2367 = vunpack.c.l.b16 %v1964
    %v2368 = vunpack.c.h.b16 %v1964
    %v2369 = vunpack.c.l.b16 %v1965
    %v2370 = vunpack.c.h.b16 %v1965
    %v2371 = vunpack.c.l.b16 %v1966
    %v2372 = vunpack.c.h.b16 %v1966
    %v2373 = vpack.c.b16 %v2121, %v2117
    %v2374 = vpack.c.b16 %v2122, %v2118
    %v2375 = vpack.c.b16 %v2123, %v2119
    %v2376 = vpack.c.b16 %v2124, %v2120
    %v2377 = vpack.c.b16 %v2129, %v2125
    %v2378 = vpack.c.b16 %v2130, %v2126
    %v2379 = vpack.c.b16 %v2131, %v2127
    %v2380 = vpack.c.b16 %v2132, %v2128
    %v2381 = vpack.c.b16 %v2137, %v2133
    %v2382 = vpack.c.b16 %v2138, %v2134
    %v2383 = vpack.c.b16 %v2139, %v2135
    %v2384 = vpack.c.b16 %v2140, %v2136
    %v2385 = vpack.c.b16 %v2145, %v2141
    %v2386 = vpack.c.b16 %v2146, %v2142
    %v2387 = vpack.c.b16 %v2147, %v2143
    %v2388 = vpack.c.b16 %v2148, %v2144
    %v2389 = vpack.c.b16 %v2153, %v2149
    %v2390 = vpack.c.b16 %v2154, %v2150
    %v2391 = vpack.c.b16 %v2155, %v2151
    %v2392 = vpack.c.b16 %v2156, %v2152
    %v2393 = vpack.c.b16 %v2161, %v2157
    %v2394 = vpack.c.b16 %v2162, %v2158
    %v2395 = vpack.c.b16 %v2163, %v2159
    %v2396 = vpack.c.b16 %v2164, %v2160
    %v2397 = vpack.c.b16 %v2169, %v2165
    %v2398 = vpack.c.b16 %v2170, %v2166
    %v2399 = vpack.c.b16 %v2171, %v2167
    %v2400 = vpack.c.b16 %v2172, %v2168
    %v2401 = vpack.c.b16 %v2177, %v2173
    %v2402 = vpack.c.b16 %v2178, %v2174
    %v2403 = vpack.c.b16 %v2179, %v2175
    %v2404 = vpack.c.b16 %v2180, %v2176
    %v2405 = vpack.c.b16 %v2185, %v2181
    %v2406 = vpack.c.b16 %v2186, %v2182
    %v2407 = vpack.c.b16 %v2187, %v2183
    %v2408 = vpack.c.b16 %v2188, %v2184
    %v2409 = vpack.c.b16 %v2193, %v2189
    %v2410 = vpack.c.b16 %v2194, %v2190
    %v2411 = vpack.c.b16 %v2195, %v2191
    %v2412 = vpack.c.b16 %v2196, %v2192
    %v2413 = vpack.c.b16 %v2201, %v2197
    %v2414 = vpack.c.b16 %v2202, %v2198
    %v2415 = vpack.c.b16 %v2203, %v2199
    %v2416 = vpack.c.b16 %v2204, %v2200
    %v2417 = vpack.c.b16 %v2209, %v2205
    %v2418 = vpack.c.b16 %v2210, %v2206
    %v2419 = vpack.c.b16 %v2211, %v2207
    %v2420 = vpack.c.b16 %v2212, %v2208
    %v2421 = vpack.c.b16 %v2217, %v2213
    %v2422 = vpack.c.b16 %v2218, %v2214
    %v2423 = vpack.c.b16 %v2219, %v2215
    %v2424 = vpack.c.b16 %v2220, %v2216
    %v2425 = vpack.c.b16 %v2225, %v2221
    %v2426 = vpack.c.b16 %v2226, %v2222
    %v2427 = vpack.c.b16 %v2227, %v2223
    %v2428 = vpack.c.b16 %v2228, %v2224
    %v2429 = vpack.c.b16 %v2233, %v2229
    %v2430 = vpack.c.b16 %v2234, %v2230
    %v2431 = vpack.c.b16 %v2235, %v2231
    %v2432 = vpack.c.b16 %v2236, %v2232
    %v2433 = vpack.c.b16 %v2241, %v2237
    %v2434 = vpack.c.b16 %v2242, %v2238
    %v2435 = vpack.c.b16 %v2243, %v2239
    %v2436 = vpack.c.b16 %v2244, %v2240
    %v2437 = vpack.c.b16 %v2249, %v2245
    %v2438 = vpack.c.b16 %v2250, %v2246
    %v2439 = vpack.c.b16 %v2251, %v2247
    %v2440 = vpack.c.b16 %v2252, %v2248
    %v2441 = vpack.c.b16 %v2257, %v2253
    %v2442 = vpack.c.b16 %v2258, %v2254
    %v2443 = vpack.c.b16 %v2259, %v2255
    %v2444 = vpack.c.b16 %v2260, %v2256
    %v2445 = vpack.c.b16 %v2265, %v2261
    %v2446 = vpack.c.b16 %v2266, %v2262
    %v2447 = vpack.c.b16 %v2267, %v2263
    %v2448 = vpack.c.b16 %v2268, %v2264
    %v2449 = vpack.c.b16 %v2273, %v2269
    %v2450 = vpack.c.b16 %v2274, %v2270
    %v2451 = vpack.c.b16 %v2275, %v2271
    %v2452 = vpack.c.b16 %v2276, %v2272
    %v2453 = vpack.c.b16 %v2281, %v2277
    %v2454 = vpack.c.b16 %v2282, %v2278
    %v2455 = vpack.c.b16 %v2283, %v2279
    %v2456 = vpack.c.b16 %v2284, %v2280
    %v2457 = vpack.c.b16 %v2289, %v2285
    %v2458 = vpack.c.b16 %v2290, %v2286
    %v2459 = vpack.c.b16 %v2291, %v2287
    %v2460 = vpack.c.b16 %v2292, %v2288
    %v2461 = vpack.c.b16 %v2297, %v2293
    %v2462 = vpack.c.b16 %v2298, %v2294
    %v2463 = vpack.c.b16 %v2299, %v2295
    %v2464 = vpack.c.b16 %v2300, %v2296
    %v2465 = vpack.c.b16 %v2305, %v2301
    %v2466 = vpack.c.b16 %v2306, %v2302
    %v2467 = vpack.c.b16 %v2307, %v2303
    %v2468 = vpack.c.b16 %v2308, %v2304
    %v2469 = vpack.c.b16 %v2313, %v2309
    %v2470 = vpack.c.b16 %v2314, %v2310
    %v2471 = vpack.c.b16 %v2315, %v2311
    %v2472 = vpack.c.b16 %v2316, %v2312
    %v2473 = vpack.c.b16 %v2321, %v2317
    %v2474 = vpack.c.b16 %v2322, %v2318
    %v2475 = vpack.c.b16 %v2323, %v2319
    %v2476 = vpack.c.b16 %v2324, %v2320
    %v2477 = vpack.c.b16 %v2329, %v2325
    %v2478 = vpack.c.b16 %v2330, %v2326
    %v2479 = vpack.c.b16 %v2331, %v2327
    %v2480 = vpack.c.b16 %v2332, %v2328
    %v2481 = vpack.c.b16 %v2337, %v2333
    %v2482 = vpack.c.b16 %v2338, %v2334
    %v2483 = vpack.c.b16 %v2339, %v2335
    %v2484 = vpack.c.b16 %v2340, %v2336
    %v2485 = vpack.c.b16 %v2345, %v2341
    %v2486 = vpack.c.b16 %v2346, %v2342
    %v2487 = vpack.c.b16 %v2347, %v2343
    %v2488 = vpack.c.b16 %v2348, %v2344
    %v2489 = vpack.c.b16 %v2353, %v2349
    %v2490 = vpack.c.b16 %v2354, %v2350
    %v2491 = vpack.c.b16 %v2355, %v2351
    %v2492 = vpack.c.b16 %v2356, %v2352
    %v2493 = vpack.c.b16 %v2361, %v2357
    %v2494 = vpack.c.b16 %v2362, %v2358
    %v2495 = vpack.c.b16 %v2363, %v2359
    %v2496 = vpack.c.b16 %v2364, %v2360
    %v2497 = vpack.c.b16 %v2369, %v2365
    %v2498 = vpack.c.b16 %v2370, %v2366
    %v2499 = vpack.c.b16 %v2371, %v2367
    %v2500 = vpack.c.b16 %v2372, %v2368
    %2629 = vmatprep.subr.bf16.mxu0 %v2374
    %2630 = vmatpush1.bf16.msra.mxu0 %v2373
    %2631 = vmatprep.subr.bf16.mxu0 %v2378
    %2632 = vmatpush1.bf16.msra.mxu0 %v2377
    %2633 = vmatprep.subr.bf16.mxu0 %v2382
    %2634 = vmatpush1.bf16.msra.mxu0 %v2381
    %2635 = vmatprep.subr.bf16.mxu0 %v2386
    %2636 = vmatpush1.bf16.msra.mxu0 %v2385
    %2637 = vmatprep.subr.bf16.mxu0 %v2390
    %2638 = vmatpush1.bf16.msra.mxu0 %v2389
    %2639 = vmatprep.subr.bf16.mxu0 %v2394
    %2640 = vmatpush1.bf16.msra.mxu0 %v2393
    %2641 = vmatprep.subr.bf16.mxu0 %v2398
    %2642 = vmatpush1.bf16.msra.mxu0 %v2397
    %2643 = vmatprep.subr.bf16.mxu0 %v2402
    %2644 = vmatpush1.bf16.msra.mxu0 %v2401
    %2645 = vmatprep.subr.bf16.mxu0 %v2406
    %2646 = vmatpush1.bf16.msra.mxu0 %v2405
    %2647 = vmatprep.subr.bf16.mxu0 %v2410
    %2648 = vmatpush1.bf16.msra.mxu0 %v2409
    %2649 = vmatprep.subr.bf16.mxu0 %v2414
    %2650 = vmatpush1.bf16.msra.mxu0 %v2413
    %2651 = vmatprep.subr.bf16.mxu0 %v2418
    %2652 = vmatpush1.bf16.msra.mxu0 %v2417
    %2653 = vmatprep.subr.bf16.mxu0 %v2422
    %2654 = vmatpush1.bf16.msra.mxu0 %v2421
    %2655 = vmatprep.subr.bf16.mxu0 %v2426
    %2656 = vmatpush1.bf16.msra.mxu0 %v2425
    %2657 = vmatprep.subr.bf16.mxu0 %v2430
    %2658 = vmatpush1.bf16.msra.mxu0 %v2429
    %2659 = vmatprep.subr.bf16.mxu0 %v2434
    %2660 = vmatpush1.bf16.msra.mxu0 %v2433
    %2661 = vmatprep.mubr.bf16.mxu0 %v1808
    %2662 = vmatmul.mubr.bf16.gmra.mrb[0].mxu0 %v1807
    %v2663 = vpop.f32.mrb[0].mxu0
    %v2664 = vadd.f32 %v1972, %v2663
    %v2665 = vpop.f32.mrb[0].mxu0
    %v2666 = vadd.f32 %v1976, %v2665
    %v2667 = vpop.f32.mrb[0].mxu0
    %v2668 = vadd.f32 %v1972, %v2667
    %v2669 = vpop.f32.mrb[0].mxu0
    %v2670 = vadd.f32 %v1976, %v2669
    %2671 = vmatprep.mubr.bf16.mxu0 %v1812
    %2672 = vmatmul.mubr.bf16.gmra.mrb[0].mxu0 %v1811
    %v2673 = vpop.f32.mrb[0].mxu0
    %v2674 = vadd.f32 %v1972, %v2673
    %v2675 = vpop.f32.mrb[0].mxu0
    %v2676 = vadd.f32 %v1976, %v2675
    %v2677 = vpop.f32.mrb[0].mxu0
    %v2678 = vadd.f32 %v1972, %v2677
    %v2679 = vpop.f32.mrb[0].mxu0
    %v2680 = vadd.f32 %v1976, %v2679
    %2681 = vmatprep.mubr.bf16.mxu0 %v1816
    %2682 = vmatmul.mubr.bf16.gmra.mrb[0].mxu0 %v1815
    %v2683 = vpop.f32.mrb[0].mxu0
    %v2684 = vadd.f32 %v1972, %v2683
    %v2685 = vpop.f32.mrb[0].mxu0
    %v2686 = vadd.f32 %v1976, %v2685
    %v2687 = vpop.f32.mrb[0].mxu0
    %v2688 = vadd.f32 %v1972, %v2687
    %v2689 = vpop.f32.mrb[0].mxu0
    %v2690 = vadd.f32 %v1976, %v2689
    %2691 = vmatprep.mubr.bf16.mxu0 %v1820
    %2692 = vmatmul.mubr.bf16.gmra.mrb[0].mxu0 %v1819
    %v2693 = vpop.f32.mrb[0].mxu0
    %v2694 = vadd.f32 %v1972, %v2693
    %v2695 = vpop.f32.mrb[0].mxu0
    %v2696 = vadd.f32 %v1976, %v2695
    %v2697 = vpop.f32.mrb[0].mxu0
    %v2698 = vadd.f32 %v1972, %v2697
    %v2699 = vpop.f32.mrb[0].mxu0
    %v2700 = vadd.f32 %v1976, %v2699
    %2701 = vmatprep.mubr.bf16.mxu0 %v1824
    %2702 = vmatmul.mubr.bf16.gmra.mrb[0].mxu0 %v1823
    %v2703 = vpop.f32.mrb[0].mxu0
    %v2704 = vadd.f32 %v1972, %v2703
    %v2705 = vpop.f32.mrb[0].mxu0
    %v2706 = vadd.f32 %v1976, %v2705
    %v2707 = vpop.f32.mrb[0].mxu0
    %v2708 = vadd.f32 %v1972, %v2707
    %v2709 = vpop.f32.mrb[0].mxu0
    %v2710 = vadd.f32 %v1976, %v2709
    %2711 = vmatprep.mubr.bf16.mxu0 %v1828
    %2712 = vmatmul.mubr.bf16.gmra.mrb[0].mxu0 %v1827
    %v2713 = vpop.f32.mrb[0].mxu0
    %v2714 = vadd.f32 %v1972, %v2713
    %v2715 = vpop.f32.mrb[0].mxu0
    %v2716 = vadd.f32 %v1976, %v2715
    %v2717 = vpop.f32.mrb[0].mxu0
    %v2718 = vadd.f32 %v1972, %v2717
    %v2719 = vpop.f32.mrb[0].mxu0
    %v2720 = vadd.f32 %v1976, %v2719
    %2721 = vmatprep.mubr.bf16.mxu0 %v1832
    %2722 = vmatmul.mubr.bf16.gmra.mrb[0].mxu0 %v1831
    %v2723 = vpop.f32.mrb[0].mxu0
    %v2724 = vadd.f32 %v1972, %v2723
    %v2725 = vpop.f32.mrb[0].mxu0
    %v2726 = vadd.f32 %v1976, %v2725
    %v2727 = vpop.f32.mrb[0].mxu0
    %v2728 = vadd.f32 %v1972, %v2727
    %v2729 = vpop.f32.mrb[0].mxu0
    %v2730 = vadd.f32 %v1976, %v2729
    %2731 = vmatprep.mubr.bf16.mxu0 %v1836
    %2732 = vmatmul.mubr.bf16.gmra.mrb[0].mxu0 %v1835
    %v2733 = vpop.f32.mrb[0].mxu0
    %v2734 = vadd.f32 %v1972, %v2733
    %v2735 = vpop.f32.mrb[0].mxu0
    %v2736 = vadd.f32 %v1976, %v2735
    %v2737 = vpop.f32.mrb[0].mxu0
    %v2738 = vadd.f32 %v1972, %v2737
    %v2739 = vpop.f32.mrb[0].mxu0
    %v2740 = vadd.f32 %v1976, %v2739
    %2741 = vdwg.mxu0
    %2742 = vmatprep.subr.bf16.mxu0 %v2438
    %2743 = vmatpush1.bf16.msra.mxu0 %v2437
    %2744 = vmatprep.subr.bf16.mxu0 %v2442
    %2745 = vmatpush1.bf16.msra.mxu0 %v2441
    %2746 = vmatprep.subr.bf16.mxu0 %v2446
    %2747 = vmatpush1.bf16.msra.mxu0 %v2445
    %2748 = vmatprep.subr.bf16.mxu0 %v2450
    %2749 = vmatpush1.bf16.msra.mxu0 %v2449
    %2750 = vmatprep.subr.bf16.mxu0 %v2454
    %2751 = vmatpush1.bf16.msra.mxu0 %v2453
    %2752 = vmatprep.subr.bf16.mxu0 %v2458
    %2753 = vmatpush1.bf16.msra.mxu0 %v2457
    %2754 = vmatprep.subr.bf16.mxu0 %v2462
    %2755 = vmatpush1.bf16.msra.mxu0 %v2461
    %2756 = vmatprep.subr.bf16.mxu0 %v2466
    %2757 = vmatpush1.bf16.msra.mxu0 %v2465
    %2758 = vmatprep.subr.bf16.mxu0 %v2470
    %2759 = vmatpush1.bf16.msra.mxu0 %v2469
    %2760 = vmatprep.subr.bf16.mxu0 %v2474
    %2761 = vmatpush1.bf16.msra.mxu0 %v2473
    %2762 = vmatprep.subr.bf16.mxu0 %v2478
    %2763 = vmatpush1.bf16.msra.mxu0 %v2477
    %2764 = vmatprep.subr.bf16.mxu0 %v2482
    %2765 = vmatpush1.bf16.msra.mxu0 %v2481
    %2766 = vmatprep.subr.bf16.mxu0 %v2486
    %2767 = vmatpush1.bf16.msra.mxu0 %v2485
    %2768 = vmatprep.subr.bf16.mxu0 %v2490
    %2769 = vmatpush1.bf16.msra.mxu0 %v2489
    %2770 = vmatprep.subr.bf16.mxu0 %v2494
    %2771 = vmatpush1.bf16.msra.mxu0 %v2493
    %2772 = vmatprep.subr.bf16.mxu0 %v2498
    %2773 = vmatpush1.bf16.msra.mxu0 %v2497
    %2774 = vmatprep.mubr.bf16.mxu0 %v1810
    %2775 = vmatmul.mubr.bf16.gmra.mrb[0].mxu0 %v1809
    %v2776 = vpop.f32.mrb[0].mxu0
    %v2777 = vadd.f32 %v2664, %v2776
    %v2778 = vpop.f32.mrb[0].mxu0
    %v2779 = vadd.f32 %v2666, %v2778
    %v2780 = vpop.f32.mrb[0].mxu0
    %v2781 = vadd.f32 %v2668, %v2780
    %v2782 = vpop.f32.mrb[0].mxu0
    %v2783 = vadd.f32 %v2670, %v2782
    %2784 = vmatprep.mubr.bf16.mxu0 %v1814
    %2785 = vmatmul.mubr.bf16.gmra.mrb[0].mxu0 %v1813
    %v2786 = vpop.f32.mrb[0].mxu0
    %v2787 = vadd.f32 %v2674, %v2786
    %v2788 = vpop.f32.mrb[0].mxu0
    %v2789 = vadd.f32 %v2676, %v2788
    %v2790 = vpop.f32.mrb[0].mxu0
    %v2791 = vadd.f32 %v2678, %v2790
    %v2792 = vpop.f32.mrb[0].mxu0
    %v2793 = vadd.f32 %v2680, %v2792
    %2794 = vmatprep.mubr.bf16.mxu0 %v1818
    %2795 = vmatmul.mubr.bf16.gmra.mrb[0].mxu0 %v1817
    %v2796 = vpop.f32.mrb[0].mxu0
    %v2797 = vadd.f32 %v2684, %v2796
    %v2798 = vpop.f32.mrb[0].mxu0
    %v2799 = vadd.f32 %v2686, %v2798
    %v2800 = vpop.f32.mrb[0].mxu0
    %v2801 = vadd.f32 %v2688, %v2800
    %v2802 = vpop.f32.mrb[0].mxu0
    %v2803 = vadd.f32 %v2690, %v2802
    %2804 = vmatprep.mubr.bf16.mxu0 %v1822
    %2805 = vmatmul.mubr.bf16.gmra.mrb[0].mxu0 %v1821
    %v2806 = vpop.f32.mrb[0].mxu0
    %v2807 = vadd.f32 %v2694, %v2806
    %v2808 = vpop.f32.mrb[0].mxu0
    %v2809 = vadd.f32 %v2696, %v2808
    %v2810 = vpop.f32.mrb[0].mxu0
    %v2811 = vadd.f32 %v2698, %v2810
    %v2812 = vpop.f32.mrb[0].mxu0
    %v2813 = vadd.f32 %v2700, %v2812
    %2814 = vmatprep.mubr.bf16.mxu0 %v1826
    %2815 = vmatmul.mubr.bf16.gmra.mrb[0].mxu0 %v1825
    %v2816 = vpop.f32.mrb[0].mxu0
    %v2817 = vadd.f32 %v2704, %v2816
    %v2818 = vpop.f32.mrb[0].mxu0
    %v2819 = vadd.f32 %v2706, %v2818
    %v2820 = vpop.f32.mrb[0].mxu0
    %v2821 = vadd.f32 %v2708, %v2820
    %v2822 = vpop.f32.mrb[0].mxu0
    %v2823 = vadd.f32 %v2710, %v2822
    %2824 = vmatprep.mubr.bf16.mxu0 %v1830
    %2825 = vmatmul.mubr.bf16.gmra.mrb[0].mxu0 %v1829
    %v2826 = vpop.f32.mrb[0].mxu0
    %v2827 = vadd.f32 %v2714, %v2826
    %v2828 = vpop.f32.mrb[0].mxu0
    %v2829 = vadd.f32 %v2716, %v2828
    %v2830 = vpop.f32.mrb[0].mxu0
    %v2831 = vadd.f32 %v2718, %v2830
    %v2832 = vpop.f32.mrb[0].mxu0
    %v2833 = vadd.f32 %v2720, %v2832
    %2834 = vmatprep.mubr.bf16.mxu0 %v1834
    %2835 = vmatmul.mubr.bf16.gmra.mrb[0].mxu0 %v1833
    %v2836 = vpop.f32.mrb[0].mxu0
    %v2837 = vadd.f32 %v2724, %v2836
    %v2838 = vpop.f32.mrb[0].mxu0
    %v2839 = vadd.f32 %v2726, %v2838
    %v2840 = vpop.f32.mrb[0].mxu0
    %v2841 = vadd.f32 %v2728, %v2840
    %v2842 = vpop.f32.mrb[0].mxu0
    %v2843 = vadd.f32 %v2730, %v2842
    %2844 = vmatprep.mubr.bf16.mxu0 %v1838
    %2845 = vmatmul.mubr.bf16.gmra.mrb[0].mxu0 %v1837
    %v2846 = vpop.f32.mrb[0].mxu0
    %v2847 = vadd.f32 %v2734, %v2846
    %v2848 = vpop.f32.mrb[0].mxu0
    %v2849 = vadd.f32 %v2736, %v2848
    %v2850 = vpop.f32.mrb[0].mxu0
    %v2851 = vadd.f32 %v2738, %v2850
    %v2852 = vpop.f32.mrb[0].mxu0
    %v2853 = vadd.f32 %v2740, %v2852
    %2854 = vdwg.mxu0
    %2855 = vmatprep.subr.bf16.mxu0 %v2376
    %2856 = vmatpush1.bf16.msra.mxu0 %v2375
    %2857 = vmatprep.subr.bf16.mxu0 %v2380
    %2858 = vmatpush1.bf16.msra.mxu0 %v2379
    %2859 = vmatprep.subr.bf16.mxu0 %v2384
    %2860 = vmatpush1.bf16.msra.mxu0 %v2383
    %2861 = vmatprep.subr.bf16.mxu0 %v2388
    %2862 = vmatpush1.bf16.msra.mxu0 %v2387
    %2863 = vmatprep.subr.bf16.mxu0 %v2392
    %2864 = vmatpush1.bf16.msra.mxu0 %v2391
    %2865 = vmatprep.subr.bf16.mxu0 %v2396
    %2866 = vmatpush1.bf16.msra.mxu0 %v2395
    %2867 = vmatprep.subr.bf16.mxu0 %v2400
    %2868 = vmatpush1.bf16.msra.mxu0 %v2399
    %2869 = vmatprep.subr.bf16.mxu0 %v2404
    %2870 = vmatpush1.bf16.msra.mxu0 %v2403
    %2871 = vmatprep.subr.bf16.mxu0 %v2408
    %2872 = vmatpush1.bf16.msra.mxu0 %v2407
    %2873 = vmatprep.subr.bf16.mxu0 %v2412
    %2874 = vmatpush1.bf16.msra.mxu0 %v2411
    %2875 = vmatprep.subr.bf16.mxu0 %v2416
    %2876 = vmatpush1.bf16.msra.mxu0 %v2415
    %2877 = vmatprep.subr.bf16.mxu0 %v2420
    %2878 = vmatpush1.bf16.msra.mxu0 %v2419
    %2879 = vmatprep.subr.bf16.mxu0 %v2424
    %2880 = vmatpush1.bf16.msra.mxu0 %v2423
    %2881 = vmatprep.subr.bf16.mxu0 %v2428
    %2882 = vmatpush1.bf16.msra.mxu0 %v2427
    %2883 = vmatprep.subr.bf16.mxu0 %v2432
    %2884 = vmatpush1.bf16.msra.mxu0 %v2431
    %2885 = vmatprep.subr.bf16.mxu0 %v2436
    %2886 = vmatpush1.bf16.msra.mxu0 %v2435
    %2887 = vmatprep.mubr.bf16.mxu0 %v1808
    %2888 = vmatmul.mubr.bf16.gmra.mrb[0].mxu0 %v1807
    %v2889 = vpop.f32.mrb[0].mxu0
    %v2890 = vadd.f32 %v1980, %v2889
    %v2891 = vpop.f32.mrb[0].mxu0
    %v2892 = vadd.f32 %v1984, %v2891
    %v2893 = vpop.f32.mrb[0].mxu0
    %v2894 = vadd.f32 %v1980, %v2893
    %v2895 = vpop.f32.mrb[0].mxu0
    %v2896 = vadd.f32 %v1984, %v2895
    %2897 = vmatprep.mubr.bf16.mxu0 %v1812
    %2898 = vmatmul.mubr.bf16.gmra.mrb[0].mxu0 %v1811
    %v2899 = vpop.f32.mrb[0].mxu0
    %v2900 = vadd.f32 %v1980, %v2899
    %v2901 = vpop.f32.mrb[0].mxu0
    %v2902 = vadd.f32 %v1984, %v2901
    %v2903 = vpop.f32.mrb[0].mxu0
    %v2904 = vadd.f32 %v1980, %v2903
    %v2905 = vpop.f32.mrb[0].mxu0
    %v2906 = vadd.f32 %v1984, %v2905
    %2907 = vmatprep.mubr.bf16.mxu0 %v1816
    %2908 = vmatmul.mubr.bf16.gmra.mrb[0].mxu0 %v1815
    %v2909 = vpop.f32.mrb[0].mxu0
    %v2910 = vadd.f32 %v1980, %v2909
    %v2911 = vpop.f32.mrb[0].mxu0
    %v2912 = vadd.f32 %v1984, %v2911
    %v2913 = vpop.f32.mrb[0].mxu0
    %v2914 = vadd.f32 %v1980, %v2913
    %v2915 = vpop.f32.mrb[0].mxu0
    %v2916 = vadd.f32 %v1984, %v2915
    %2917 = vmatprep.mubr.bf16.mxu0 %v1820
    %2918 = vmatmul.mubr.bf16.gmra.mrb[0].mxu0 %v1819
    %v2919 = vpop.f32.mrb[0].mxu0
    %v2920 = vadd.f32 %v1980, %v2919
    %v2921 = vpop.f32.mrb[0].mxu0
    %v2922 = vadd.f32 %v1984, %v2921
    %v2923 = vpop.f32.mrb[0].mxu0
    %v2924 = vadd.f32 %v1980, %v2923
    %v2925 = vpop.f32.mrb[0].mxu0
    %v2926 = vadd.f32 %v1984, %v2925
    %2927 = vmatprep.mubr.bf16.mxu0 %v1824
    %2928 = vmatmul.mubr.bf16.gmra.mrb[0].mxu0 %v1823
    %v2929 = vpop.f32.mrb[0].mxu0
    %v2930 = vadd.f32 %v1980, %v2929
    %v2931 = vpop.f32.mrb[0].mxu0
    %v2932 = vadd.f32 %v1984, %v2931
    %v2933 = vpop.f32.mrb[0].mxu0
    %v2934 = vadd.f32 %v1980, %v2933
    %v2935 = vpop.f32.mrb[0].mxu0
    %v2936 = vadd.f32 %v1984, %v2935
    %2937 = vmatprep.mubr.bf16.mxu0 %v1828
    %2938 = vmatmul.mubr.bf16.gmra.mrb[0].mxu0 %v1827
    %v2939 = vpop.f32.mrb[0].mxu0
    %v2940 = vadd.f32 %v1980, %v2939
    %v2941 = vpop.f32.mrb[0].mxu0
    %v2942 = vadd.f32 %v1984, %v2941
    %v2943 = vpop.f32.mrb[0].mxu0
    %v2944 = vadd.f32 %v1980, %v2943
    %v2945 = vpop.f32.mrb[0].mxu0
    %v2946 = vadd.f32 %v1984, %v2945
    %2947 = vmatprep.mubr.bf16.mxu0 %v1832
    %2948 = vmatmul.mubr.bf16.gmra.mrb[0].mxu0 %v1831
    %v2949 = vpop.f32.mrb[0].mxu0
    %v2950 = vadd.f32 %v1980, %v2949
    %v2951 = vpop.f32.mrb[0].mxu0
    %v2952 = vadd.f32 %v1984, %v2951
    %v2953 = vpop.f32.mrb[0].mxu0
    %v2954 = vadd.f32 %v1980, %v2953
    %v2955 = vpop.f32.mrb[0].mxu0
    %v2956 = vadd.f32 %v1984, %v2955
    %2957 = vmatprep.mubr.bf16.mxu0 %v1836
    %2958 = vmatmul.mubr.bf16.gmra.mrb[0].mxu0 %v1835
    %v2959 = vpop.f32.mrb[0].mxu0
    %v2960 = vadd.f32 %v1980, %v2959
    %v2961 = vpop.f32.mrb[0].mxu0
    %v2962 = vadd.f32 %v1984, %v2961
    %v2963 = vpop.f32.mrb[0].mxu0
    %v2964 = vadd.f32 %v1980, %v2963
    %v2965 = vpop.f32.mrb[0].mxu0
    %v2966 = vadd.f32 %v1984, %v2965
    %2967 = vdwg.mxu0
    %2968 = vmatprep.subr.bf16.mxu0 %v2440
    %2969 = vmatpush1.bf16.msra.mxu0 %v2439
    %2970 = vmatprep.subr.bf16.mxu0 %v2444
    %2971 = vmatpush1.bf16.msra.mxu0 %v2443
    %2972 = vmatprep.subr.bf16.mxu0 %v2448
    %2973 = vmatpush1.bf16.msra.mxu0 %v2447
    %2974 = vmatprep.subr.bf16.mxu0 %v2452
    %2975 = vmatpush1.bf16.msra.mxu0 %v2451
    %2976 = vmatprep.subr.bf16.mxu0 %v2456
    %2977 = vmatpush1.bf16.msra.mxu0 %v2455
    %2978 = vmatprep.subr.bf16.mxu0 %v2460
    %2979 = vmatpush1.bf16.msra.mxu0 %v2459
    %2980 = vmatprep.subr.bf16.mxu0 %v2464
    %2981 = vmatpush1.bf16.msra.mxu0 %v2463
    %2982 = vmatprep.subr.bf16.mxu0 %v2468
    %2983 = vmatpush1.bf16.msra.mxu0 %v2467
    %2984 = vmatprep.subr.bf16.mxu0 %v2472
    %2985 = vmatpush1.bf16.msra.mxu0 %v2471
    %2986 = vmatprep.subr.bf16.mxu0 %v2476
    %2987 = vmatpush1.bf16.msra.mxu0 %v2475
    %2988 = vmatprep.subr.bf16.mxu0 %v2480
    %2989 = vmatpush1.bf16.msra.mxu0 %v2479
    %2990 = vmatprep.subr.bf16.mxu0 %v2484
    %2991 = vmatpush1.bf16.msra.mxu0 %v2483
    %2992 = vmatprep.subr.bf16.mxu0 %v2488
    %2993 = vmatpush1.bf16.msra.mxu0 %v2487
    %2994 = vmatprep.subr.bf16.mxu0 %v2492
    %2995 = vmatpush1.bf16.msra.mxu0 %v2491
    %2996 = vmatprep.subr.bf16.mxu0 %v2496
    %2997 = vmatpush1.bf16.msra.mxu0 %v2495
    %2998 = vmatprep.subr.bf16.mxu0 %v2500
    %2999 = vmatpush1.bf16.msra.mxu0 %v2499
    %3000 = vmatprep.mubr.bf16.mxu0 %v1810
    %3001 = vmatmul.mubr.bf16.gmra.mrb[0].mxu0 %v1809
    %v3002 = vpop.f32.mrb[0].mxu0
    %v3003 = vadd.f32 %v2890, %v3002
    %v3004 = vpop.f32.mrb[0].mxu0
    %v3005 = vadd.f32 %v2892, %v3004
    %v3006 = vpop.f32.mrb[0].mxu0
    %v3007 = vadd.f32 %v2894, %v3006
    %v3008 = vpop.f32.mrb[0].mxu0
    %v3009 = vadd.f32 %v2896, %v3008
    %3010 = vmatprep.mubr.bf16.mxu0 %v1814
    %3011 = vmatmul.mubr.bf16.gmra.mrb[0].mxu0 %v1813
    %v3012 = vpop.f32.mrb[0].mxu0
    %v3013 = vadd.f32 %v2900, %v3012
    %v3014 = vpop.f32.mrb[0].mxu0
    %v3015 = vadd.f32 %v2902, %v3014
    %v3016 = vpop.f32.mrb[0].mxu0
    %v3017 = vadd.f32 %v2904, %v3016
    %v3018 = vpop.f32.mrb[0].mxu0
    %v3019 = vadd.f32 %v2906, %v3018
    %3020 = vmatprep.mubr.bf16.mxu0 %v1818
    %3021 = vmatmul.mubr.bf16.gmra.mrb[0].mxu0 %v1817
    %v3022 = vpop.f32.mrb[0].mxu0
    %v3023 = vadd.f32 %v2910, %v3022
    %v3024 = vpop.f32.mrb[0].mxu0
    %v3025 = vadd.f32 %v2912, %v3024
    %v3026 = vpop.f32.mrb[0].mxu0
    %v3027 = vadd.f32 %v2914, %v3026
    %v3028 = vpop.f32.mrb[0].mxu0
    %v3029 = vadd.f32 %v2916, %v3028
    %3030 = vmatprep.mubr.bf16.mxu0 %v1822
    %3031 = vmatmul.mubr.bf16.gmra.mrb[0].mxu0 %v1821
    %v3032 = vpop.f32.mrb[0].mxu0
    %v3033 = vadd.f32 %v2920, %v3032
    %v3034 = vpop.f32.mrb[0].mxu0
    %v3035 = vadd.f32 %v2922, %v3034
    %v3036 = vpop.f32.mrb[0].mxu0
    %v3037 = vadd.f32 %v2924, %v3036
    %v3038 = vpop.f32.mrb[0].mxu0
    %v3039 = vadd.f32 %v2926, %v3038
    %3040 = vmatprep.mubr.bf16.mxu0 %v1826
    %3041 = vmatmul.mubr.bf16.gmra.mrb[0].mxu0 %v1825
    %v3042 = vpop.f32.mrb[0].mxu0
    %v3043 = vadd.f32 %v2930, %v3042
    %v3044 = vpop.f32.mrb[0].mxu0
    %v3045 = vadd.f32 %v2932, %v3044
    %v3046 = vpop.f32.mrb[0].mxu0
    %v3047 = vadd.f32 %v2934, %v3046
    %v3048 = vpop.f32.mrb[0].mxu0
    %v3049 = vadd.f32 %v2936, %v3048
    %3050 = vmatprep.mubr.bf16.mxu0 %v1830
    %3051 = vmatmul.mubr.bf16.gmra.mrb[0].mxu0 %v1829
    %v3052 = vpop.f32.mrb[0].mxu0
    %v3053 = vadd.f32 %v2940, %v3052
    %v3054 = vpop.f32.mrb[0].mxu0
    %v3055 = vadd.f32 %v2942, %v3054
    %v3056 = vpop.f32.mrb[0].mxu0
    %v3057 = vadd.f32 %v2944, %v3056
    %v3058 = vpop.f32.mrb[0].mxu0
    %v3059 = vadd.f32 %v2946, %v3058
    %3060 = vmatprep.mubr.bf16.mxu0 %v1834
    %3061 = vmatmul.mubr.bf16.gmra.mrb[0].mxu0 %v1833
    %v3062 = vpop.f32.mrb[0].mxu0
    %v3063 = vadd.f32 %v2950, %v3062
    %v3064 = vpop.f32.mrb[0].mxu0
    %v3065 = vadd.f32 %v2952, %v3064
    %v3066 = vpop.f32.mrb[0].mxu0
    %v3067 = vadd.f32 %v2954, %v3066
    %v3068 = vpop.f32.mrb[0].mxu0
    %v3069 = vadd.f32 %v2956, %v3068
    %3070 = vmatprep.mubr.bf16.mxu0 %v1838
    %3071 = vmatmul.mubr.bf16.gmra.mrb[0].mxu0 %v1837
    %v3072 = vpop.f32.mrb[0].mxu0
    %v3073 = vadd.f32 %v2960, %v3072
    %v3074 = vpop.f32.mrb[0].mxu0
    %v3075 = vadd.f32 %v2962, %v3074
    %v3076 = vpop.f32.mrb[0].mxu0
    %v3077 = vadd.f32 %v2964, %v3076
    %v3078 = vpop.f32.mrb[0].mxu0
    %v3079 = vadd.f32 %v2966, %v3078
    %3080 = vdwg.mxu0
    %v3081 = vmax.f32 %v2777, 0.0
    %v3082 = vmax.f32 %v2779, 0.0
    %v3083 = vmax.f32 %v3003, 0.0
    %v3084 = vmax.f32 %v3005, 0.0
    %v3085 = vmax.f32 %v2781, 0.0
    %v3086 = vmax.f32 %v2783, 0.0
    %v3087 = vmax.f32 %v3007, 0.0
    %v3088 = vmax.f32 %v3009, 0.0
    %v3089 = vmax.f32 %v2787, 0.0
    %v3090 = vmax.f32 %v2789, 0.0
    %v3091 = vmax.f32 %v3013, 0.0
    %v3092 = vmax.f32 %v3015, 0.0
    %v3093 = vmax.f32 %v2791, 0.0
    %v3094 = vmax.f32 %v2793, 0.0
    %v3095 = vmax.f32 %v3017, 0.0
    %v3096 = vmax.f32 %v3019, 0.0
    %v3097 = vmax.f32 %v2797, 0.0
    %v3098 = vmax.f32 %v2799, 0.0
    %v3099 = vmax.f32 %v3023, 0.0
    %v3100 = vmax.f32 %v3025, 0.0
    %v3101 = vmax.f32 %v2801, 0.0
    %v3102 = vmax.f32 %v2803, 0.0
    %v3103 = vmax.f32 %v3027, 0.0
    %v3104 = vmax.f32 %v3029, 0.0
    %v3105 = vmax.f32 %v2807, 0.0
    %v3106 = vmax.f32 %v2809, 0.0
    %v3107 = vmax.f32 %v3033, 0.0
    %v3108 = vmax.f32 %v3035, 0.0
    %v3109 = vmax.f32 %v2811, 0.0
    %v3110 = vmax.f32 %v2813, 0.0
    %v3111 = vmax.f32 %v3037, 0.0
    %v3112 = vmax.f32 %v3039, 0.0
    %v3113 = vmax.f32 %v2817, 0.0
    %v3114 = vmax.f32 %v2819, 0.0
    %v3115 = vmax.f32 %v3043, 0.0
    %v3116 = vmax.f32 %v3045, 0.0
    %v3117 = vmax.f32 %v2821, 0.0
    %v3118 = vmax.f32 %v2823, 0.0
    %v3119 = vmax.f32 %v3047, 0.0
    %v3120 = vmax.f32 %v3049, 0.0
    %v3121 = vmax.f32 %v2827, 0.0
    %v3122 = vmax.f32 %v2829, 0.0
    %v3123 = vmax.f32 %v3053, 0.0
    %v3124 = vmax.f32 %v3055, 0.0
    %v3125 = vmax.f32 %v2831, 0.0
    %v3126 = vmax.f32 %v2833, 0.0
    %v3127 = vmax.f32 %v3057, 0.0
    %v3128 = vmax.f32 %v3059, 0.0
    %v3129 = vmax.f32 %v2837, 0.0
    %v3130 = vmax.f32 %v2839, 0.0
    %v3131 = vmax.f32 %v3063, 0.0
    %v3132 = vmax.f32 %v3065, 0.0
    %v3133 = vmax.f32 %v2841, 0.0
    %v3134 = vmax.f32 %v2843, 0.0
    %v3135 = vmax.f32 %v3067, 0.0
    %v3136 = vmax.f32 %v3069, 0.0
    %v3137 = vmax.f32 %v2847, 0.0
    %v3138 = vmax.f32 %v2849, 0.0
    %v3139 = vmax.f32 %v3073, 0.0
    %v3140 = vmax.f32 %v3075, 0.0
    %v3141 = vmax.f32 %v2851, 0.0
    %v3142 = vmax.f32 %v2853, 0.0
    %v3143 = vmax.f32 %v3077, 0.0
    %v3144 = vmax.f32 %v3079, 0.0
    %v3145 = vpack.c.bf16 %v3085, %v3081
    %v3146 = vpack.c.bf16 %v3086, %v3082
    %v3147 = vpack.c.bf16 %v3087, %v3083
    %v3148 = vpack.c.bf16 %v3088, %v3084
    %v3149 = vpack.c.bf16 %v3093, %v3089
    %v3150 = vpack.c.bf16 %v3094, %v3090
    %v3151 = vpack.c.bf16 %v3095, %v3091
    %v3152 = vpack.c.bf16 %v3096, %v3092
    %v3153 = vpack.c.bf16 %v3101, %v3097
    %v3154 = vpack.c.bf16 %v3102, %v3098
    %v3155 = vpack.c.bf16 %v3103, %v3099
    %v3156 = vpack.c.bf16 %v3104, %v3100
    %v3157 = vpack.c.bf16 %v3109, %v3105
    %v3158 = vpack.c.bf16 %v3110, %v3106
    %v3159 = vpack.c.bf16 %v3111, %v3107
    %v3160 = vpack.c.bf16 %v3112, %v3108
    %v3161 = vpack.c.bf16 %v3117, %v3113
    %v3162 = vpack.c.bf16 %v3118, %v3114
    %v3163 = vpack.c.bf16 %v3119, %v3115
    %v3164 = vpack.c.bf16 %v3120, %v3116
    %v3165 = vpack.c.bf16 %v3125, %v3121
    %v3166 = vpack.c.bf16 %v3126, %v3122
    %v3167 = vpack.c.bf16 %v3127, %v3123
    %v3168 = vpack.c.bf16 %v3128, %v3124
    %v3169 = vpack.c.bf16 %v3133, %v3129
    %v3170 = vpack.c.bf16 %v3134, %v3130
    %v3171 = vpack.c.bf16 %v3135, %v3131
    %v3172 = vpack.c.bf16 %v3136, %v3132
    %v3173 = vpack.c.bf16 %v3141, %v3137
    %v3174 = vpack.c.bf16 %v3142, %v3138
    %v3175 = vpack.c.bf16 %v3143, %v3139
    %v3176 = vpack.c.bf16 %v3144, %v3140
    %v3177 = vld [vmem:[#allocation8] sm:$0xff]
    %v3178 = vld [vmem:[#allocation8 + $0x8] sm:$0xff]
    %v3179 = vld [vmem:[#allocation8 + $0x10] sm:$0xff]
    %v3180 = vld [vmem:[#allocation8 + $0x18] sm:$0xff]
    %v3181 = vld [vmem:[#allocation8 + $0x20] sm:$0xff]
    %v3182 = vld [vmem:[#allocation8 + $0x28] sm:$0xff]
    %v3183 = vld [vmem:[#allocation8 + $0x30] sm:$0xff]
    %v3184 = vld [vmem:[#allocation8 + $0x38] sm:$0xff]
    %v3185 = vld [vmem:[#allocation8 + $0x40] sm:$0xff]
    %v3186 = vld [vmem:[#allocation8 + $0x48] sm:$0xff]
    %v3187 = vld [vmem:[#allocation8 + $0x50] sm:$0xff]
    %v3188 = vld [vmem:[#allocation8 + $0x58] sm:$0xff]
    %v3189 = vld [vmem:[#allocation8 + $0x60] sm:$0xff]
    %v3190 = vld [vmem:[#allocation8 + $0x68] sm:$0xff]
    %v3191 = vld [vmem:[#allocation8 + $0x70] sm:$0xff]
    %v3192 = vld [vmem:[#allocation8 + $0x78] sm:$0xff]
    %v3193 = vld [vmem:[#allocation8 + $0x80] sm:$0xff]
    %v3194 = vld [vmem:[#allocation8 + $0x88] sm:$0xff]
    %v3195 = vld [vmem:[#allocation8 + $0x90] sm:$0xff]
    %v3196 = vld [vmem:[#allocation8 + $0x98] sm:$0xff]
    %v3197 = vld [vmem:[#allocation8 + $0xa0] sm:$0xff]
    %v3198 = vld [vmem:[#allocation8 + $0xa8] sm:$0xff]
    %v3199 = vld [vmem:[#allocation8 + $0xb0] sm:$0xff]
    %v3200 = vld [vmem:[#allocation8 + $0xb8] sm:$0xff]
    %v3201 = vld [vmem:[#allocation8 + $0xc0] sm:$0xff]
    %v3202 = vld [vmem:[#allocation8 + $0xc8] sm:$0xff]
    %v3203 = vld [vmem:[#allocation8 + $0xd0] sm:$0xff]
    %v3204 = vld [vmem:[#allocation8 + $0xd8] sm:$0xff]
    %v3205 = vld [vmem:[#allocation8 + $0xe0] sm:$0xff]
    %v3206 = vld [vmem:[#allocation8 + $0xe8] sm:$0xff]
    %v3207 = vld [vmem:[#allocation8 + $0xf0] sm:$0xff]
    %v3208 = vld [vmem:[#allocation8 + $0xf8] sm:$0xff]
    %v3209 = vld [vmem:[#allocation8 + $0x100] sm:$0xff]
    %v3210 = vld [vmem:[#allocation8 + $0x108] sm:$0xff]
    %v3211 = vld [vmem:[#allocation8 + $0x110] sm:$0xff]
    %v3212 = vld [vmem:[#allocation8 + $0x118] sm:$0xff]
    %v3213 = vld [vmem:[#allocation8 + $0x120] sm:$0xff]
    %v3214 = vld [vmem:[#allocation8 + $0x128] sm:$0xff]
    %v3215 = vld [vmem:[#allocation8 + $0x130] sm:$0xff]
    %v3216 = vld [vmem:[#allocation8 + $0x138] sm:$0xff]
    %v3217 = vld [vmem:[#allocation8 + $0x140] sm:$0xff]
    %v3218 = vld [vmem:[#allocation8 + $0x148] sm:$0xff]
    %v3219 = vld [vmem:[#allocation8 + $0x150] sm:$0xff]
    %v3220 = vld [vmem:[#allocation8 + $0x158] sm:$0xff]
    %v3221 = vld [vmem:[#allocation8 + $0x160] sm:$0xff]
    %v3222 = vld [vmem:[#allocation8 + $0x168] sm:$0xff]
    %v3223 = vld [vmem:[#allocation8 + $0x170] sm:$0xff]
    %v3224 = vld [vmem:[#allocation8 + $0x178] sm:$0xff]
    %v3225 = vld [vmem:[#allocation8 + $0x180] sm:$0xff]
    %v3226 = vld [vmem:[#allocation8 + $0x188] sm:$0xff]
    %v3227 = vld [vmem:[#allocation8 + $0x190] sm:$0xff]
    %v3228 = vld [vmem:[#allocation8 + $0x198] sm:$0xff]
    %v3229 = vld [vmem:[#allocation8 + $0x1a0] sm:$0xff]
    %v3230 = vld [vmem:[#allocation8 + $0x1a8] sm:$0xff]
    %v3231 = vld [vmem:[#allocation8 + $0x1b0] sm:$0xff]
    %v3232 = vld [vmem:[#allocation8 + $0x1b8] sm:$0xff]
    %v3233 = vld [vmem:[#allocation8 + $0x1c0] sm:$0xff]
    %v3234 = vld [vmem:[#allocation8 + $0x1c8] sm:$0xff]
    %v3235 = vld [vmem:[#allocation8 + $0x1d0] sm:$0xff]
    %v3236 = vld [vmem:[#allocation8 + $0x1d8] sm:$0xff]
    %v3237 = vld [vmem:[#allocation8 + $0x1e0] sm:$0xff]
    %v3238 = vld [vmem:[#allocation8 + $0x1e8] sm:$0xff]
    %v3239 = vld [vmem:[#allocation8 + $0x1f0] sm:$0xff]
    %v3240 = vld [vmem:[#allocation8 + $0x1f8] sm:$0xff]
    %v3241 = vld [vmem:[#allocation8 + $0x200] sm:$0xff]
    %v3242 = vld [vmem:[#allocation8 + $0x208] sm:$0xff]
    %v3243 = vld [vmem:[#allocation8 + $0x210] sm:$0xff]
    %v3244 = vld [vmem:[#allocation8 + $0x218] sm:$0xff]
    %v3245 = vld [vmem:[#allocation8 + $0x220] sm:$0xff]
    %v3246 = vld [vmem:[#allocation8 + $0x228] sm:$0xff]
    %v3247 = vld [vmem:[#allocation8 + $0x230] sm:$0xff]
    %v3248 = vld [vmem:[#allocation8 + $0x238] sm:$0xff]
    %v3249 = vld [vmem:[#allocation8 + $0x240] sm:$0xff]
    %v3250 = vld [vmem:[#allocation8 + $0x248] sm:$0xff]
    %v3251 = vld [vmem:[#allocation8 + $0x250] sm:$0xff]
    %v3252 = vld [vmem:[#allocation8 + $0x258] sm:$0xff]
    %v3253 = vld [vmem:[#allocation8 + $0x260] sm:$0xff]
    %v3254 = vld [vmem:[#allocation8 + $0x268] sm:$0xff]
    %v3255 = vld [vmem:[#allocation8 + $0x270] sm:$0xff]
    %v3256 = vld [vmem:[#allocation8 + $0x278] sm:$0xff]
    %v3257 = vld [vmem:[#allocation8 + $0x280] sm:$0xff]
    %v3258 = vld [vmem:[#allocation8 + $0x288] sm:$0xff]
    %v3259 = vld [vmem:[#allocation8 + $0x290] sm:$0xff]
    %v3260 = vld [vmem:[#allocation8 + $0x298] sm:$0xff]
    %v3261 = vld [vmem:[#allocation8 + $0x2a0] sm:$0xff]
    %v3262 = vld [vmem:[#allocation8 + $0x2a8] sm:$0xff]
    %v3263 = vld [vmem:[#allocation8 + $0x2b0] sm:$0xff]
    %v3264 = vld [vmem:[#allocation8 + $0x2b8] sm:$0xff]
    %v3265 = vld [vmem:[#allocation8 + $0x2c0] sm:$0xff]
    %v3266 = vld [vmem:[#allocation8 + $0x2c8] sm:$0xff]
    %v3267 = vld [vmem:[#allocation8 + $0x2d0] sm:$0xff]
    %v3268 = vld [vmem:[#allocation8 + $0x2d8] sm:$0xff]
    %v3269 = vld [vmem:[#allocation8 + $0x2e0] sm:$0xff]
    %v3270 = vld [vmem:[#allocation8 + $0x2e8] sm:$0xff]
    %v3271 = vld [vmem:[#allocation8 + $0x2f0] sm:$0xff]
    %v3272 = vld [vmem:[#allocation8 + $0x2f8] sm:$0xff]
    %v3273 = vld [vmem:[#allocation8 + $0x300] sm:$0xff]
    %v3274 = vld [vmem:[#allocation8 + $0x308] sm:$0xff]
    %v3275 = vld [vmem:[#allocation8 + $0x310] sm:$0xff]
    %v3276 = vld [vmem:[#allocation8 + $0x318] sm:$0xff]
    %v3277 = vld [vmem:[#allocation8 + $0x320] sm:$0xff]
    %v3278 = vld [vmem:[#allocation8 + $0x328] sm:$0xff]
    %v3279 = vld [vmem:[#allocation8 + $0x330] sm:$0xff]
    %v3280 = vld [vmem:[#allocation8 + $0x338] sm:$0xff]
    %v3281 = vld [vmem:[#allocation8 + $0x340] sm:$0xff]
    %v3282 = vld [vmem:[#allocation8 + $0x348] sm:$0xff]
    %v3283 = vld [vmem:[#allocation8 + $0x350] sm:$0xff]
    %v3284 = vld [vmem:[#allocation8 + $0x358] sm:$0xff]
    %v3285 = vld [vmem:[#allocation8 + $0x360] sm:$0xff]
    %v3286 = vld [vmem:[#allocation8 + $0x368] sm:$0xff]
    %v3287 = vld [vmem:[#allocation8 + $0x370] sm:$0xff]
    %v3288 = vld [vmem:[#allocation8 + $0x378] sm:$0xff]
    %v3289 = vld [vmem:[#allocation8 + $0x380] sm:$0xff]
    %v3290 = vld [vmem:[#allocation8 + $0x388] sm:$0xff]
    %v3291 = vld [vmem:[#allocation8 + $0x390] sm:$0xff]
    %v3292 = vld [vmem:[#allocation8 + $0x398] sm:$0xff]
    %v3293 = vld [vmem:[#allocation8 + $0x3a0] sm:$0xff]
    %v3294 = vld [vmem:[#allocation8 + $0x3a8] sm:$0xff]
    %v3295 = vld [vmem:[#allocation8 + $0x3b0] sm:$0xff]
    %v3296 = vld [vmem:[#allocation8 + $0x3b8] sm:$0xff]
    %v3297 = vld [vmem:[#allocation8 + $0x3c0] sm:$0xff]
    %v3298 = vld [vmem:[#allocation8 + $0x3c8] sm:$0xff]
    %v3299 = vld [vmem:[#allocation8 + $0x3d0] sm:$0xff]
    %v3300 = vld [vmem:[#allocation8 + $0x3d8] sm:$0xff]
    %v3301 = vld [vmem:[#allocation8 + $0x3e0] sm:$0xff]
    %v3302 = vld [vmem:[#allocation8 + $0x3e8] sm:$0xff]
    %v3303 = vld [vmem:[#allocation8 + $0x3f0] sm:$0xff]
    %v3304 = vld [vmem:[#allocation8 + $0x3f8] sm:$0xff]
    %v3305 = vld [vmem:[%s8] sm:$0xf]
    %v3307 = vlaneseq
    %v3308 = vshrl.u32 %v3307, 7
    %v3309 = vsub.s32 0, %v3308
    %v3310 = vrot.slane %v3305, %v3309
    %v3311 = vlaneseq
    %v3312 = vshrl.u32 %v3311, 7
    %v3313 = vsub.s32 1, %v3312
    %v3314 = vrot.slane %v3305, %v3313
    %v3315 = vlaneseq
    %v3316 = vshrl.u32 %v3315, 7
    %v3317 = vsub.s32 2, %v3316
    %v3318 = vrot.slane %v3305, %v3317
    %v3319 = vlaneseq
    %v3320 = vshrl.u32 %v3319, 7
    %v3321 = vsub.s32 3, %v3320
    %v3322 = vrot.slane %v3305, %v3321
    %v3455 = vunpack.c.l.b16 %v3177
    %v3456 = vunpack.c.h.b16 %v3177
    %v3457 = vunpack.c.l.b16 %v3178
    %v3458 = vunpack.c.h.b16 %v3178
    %v3459 = vunpack.c.l.b16 %v3179
    %v3460 = vunpack.c.h.b16 %v3179
    %v3461 = vunpack.c.l.b16 %v3180
    %v3462 = vunpack.c.h.b16 %v3180
    %v3463 = vunpack.c.l.b16 %v3181
    %v3464 = vunpack.c.h.b16 %v3181
    %v3465 = vunpack.c.l.b16 %v3182
    %v3466 = vunpack.c.h.b16 %v3182
    %v3467 = vunpack.c.l.b16 %v3183
    %v3468 = vunpack.c.h.b16 %v3183
    %v3469 = vunpack.c.l.b16 %v3184
    %v3470 = vunpack.c.h.b16 %v3184
    %v3471 = vunpack.c.l.b16 %v3185
    %v3472 = vunpack.c.h.b16 %v3185
    %v3473 = vunpack.c.l.b16 %v3186
    %v3474 = vunpack.c.h.b16 %v3186
    %v3475 = vunpack.c.l.b16 %v3187
    %v3476 = vunpack.c.h.b16 %v3187
    %v3477 = vunpack.c.l.b16 %v3188
    %v3478 = vunpack.c.h.b16 %v3188
    %v3479 = vunpack.c.l.b16 %v3189
    %v3480 = vunpack.c.h.b16 %v3189
    %v3481 = vunpack.c.l.b16 %v3190
    %v3482 = vunpack.c.h.b16 %v3190
    %v3483 = vunpack.c.l.b16 %v3191
    %v3484 = vunpack.c.h.b16 %v3191
    %v3485 = vunpack.c.l.b16 %v3192
    %v3486 = vunpack.c.h.b16 %v3192
    %v3487 = vunpack.c.l.b16 %v3193
    %v3488 = vunpack.c.h.b16 %v3193
    %v3489 = vunpack.c.l.b16 %v3194
    %v3490 = vunpack.c.h.b16 %v3194
    %v3491 = vunpack.c.l.b16 %v3195
    %v3492 = vunpack.c.h.b16 %v3195
    %v3493 = vunpack.c.l.b16 %v3196
    %v3494 = vunpack.c.h.b16 %v3196
    %v3495 = vunpack.c.l.b16 %v3197
    %v3496 = vunpack.c.h.b16 %v3197
    %v3497 = vunpack.c.l.b16 %v3198
    %v3498 = vunpack.c.h.b16 %v3198
    %v3499 = vunpack.c.l.b16 %v3199
    %v3500 = vunpack.c.h.b16 %v3199
    %v3501 = vunpack.c.l.b16 %v3200
    %v3502 = vunpack.c.h.b16 %v3200
    %v3503 = vunpack.c.l.b16 %v3201
    %v3504 = vunpack.c.h.b16 %v3201
    %v3505 = vunpack.c.l.b16 %v3202
    %v3506 = vunpack.c.h.b16 %v3202
    %v3507 = vunpack.c.l.b16 %v3203
    %v3508 = vunpack.c.h.b16 %v3203
    %v3509 = vunpack.c.l.b16 %v3204
    %v3510 = vunpack.c.h.b16 %v3204
    %v3511 = vunpack.c.l.b16 %v3205
    %v3512 = vunpack.c.h.b16 %v3205
    %v3513 = vunpack.c.l.b16 %v3206
    %v3514 = vunpack.c.h.b16 %v3206
    %v3515 = vunpack.c.l.b16 %v3207
    %v3516 = vunpack.c.h.b16 %v3207
    %v3517 = vunpack.c.l.b16 %v3208
    %v3518 = vunpack.c.h.b16 %v3208
    %v3519 = vunpack.c.l.b16 %v3209
    %v3520 = vunpack.c.h.b16 %v3209
    %v3521 = vunpack.c.l.b16 %v3210
    %v3522 = vunpack.c.h.b16 %v3210
    %v3523 = vunpack.c.l.b16 %v3211
    %v3524 = vunpack.c.h.b16 %v3211
    %v3525 = vunpack.c.l.b16 %v3212
    %v3526 = vunpack.c.h.b16 %v3212
    %v3527 = vunpack.c.l.b16 %v3213
    %v3528 = vunpack.c.h.b16 %v3213
    %v3529 = vunpack.c.l.b16 %v3214
    %v3530 = vunpack.c.h.b16 %v3214
    %v3531 = vunpack.c.l.b16 %v3215
    %v3532 = vunpack.c.h.b16 %v3215
    %v3533 = vunpack.c.l.b16 %v3216
    %v3534 = vunpack.c.h.b16 %v3216
    %v3535 = vunpack.c.l.b16 %v3217
    %v3536 = vunpack.c.h.b16 %v3217
    %v3537 = vunpack.c.l.b16 %v3218
    %v3538 = vunpack.c.h.b16 %v3218
    %v3539 = vunpack.c.l.b16 %v3219
    %v3540 = vunpack.c.h.b16 %v3219
    %v3541 = vunpack.c.l.b16 %v3220
    %v3542 = vunpack.c.h.b16 %v3220
    %v3543 = vunpack.c.l.b16 %v3221
    %v3544 = vunpack.c.h.b16 %v3221
    %v3545 = vunpack.c.l.b16 %v3222
    %v3546 = vunpack.c.h.b16 %v3222
    %v3547 = vunpack.c.l.b16 %v3223
    %v3548 = vunpack.c.h.b16 %v3223
    %v3549 = vunpack.c.l.b16 %v3224
    %v3550 = vunpack.c.h.b16 %v3224
    %v3551 = vunpack.c.l.b16 %v3225
    %v3552 = vunpack.c.h.b16 %v3225
    %v3553 = vunpack.c.l.b16 %v3226
    %v3554 = vunpack.c.h.b16 %v3226
    %v3555 = vunpack.c.l.b16 %v3227
    %v3556 = vunpack.c.h.b16 %v3227
    %v3557 = vunpack.c.l.b16 %v3228
    %v3558 = vunpack.c.h.b16 %v3228
    %v3559 = vunpack.c.l.b16 %v3229
    %v3560 = vunpack.c.h.b16 %v3229
    %v3561 = vunpack.c.l.b16 %v3230
    %v3562 = vunpack.c.h.b16 %v3230
    %v3563 = vunpack.c.l.b16 %v3231
    %v3564 = vunpack.c.h.b16 %v3231
    %v3565 = vunpack.c.l.b16 %v3232
    %v3566 = vunpack.c.h.b16 %v3232
    %v3567 = vunpack.c.l.b16 %v3233
    %v3568 = vunpack.c.h.b16 %v3233
    %v3569 = vunpack.c.l.b16 %v3234
    %v3570 = vunpack.c.h.b16 %v3234
    %v3571 = vunpack.c.l.b16 %v3235
    %v3572 = vunpack.c.h.b16 %v3235
    %v3573 = vunpack.c.l.b16 %v3236
    %v3574 = vunpack.c.h.b16 %v3236
    %v3575 = vunpack.c.l.b16 %v3237
    %v3576 = vunpack.c.h.b16 %v3237
    %v3577 = vunpack.c.l.b16 %v3238
    %v3578 = vunpack.c.h.b16 %v3238
    %v3579 = vunpack.c.l.b16 %v3239
    %v3580 = vunpack.c.h.b16 %v3239
    %v3581 = vunpack.c.l.b16 %v3240
    %v3582 = vunpack.c.h.b16 %v3240
    %v3583 = vunpack.c.l.b16 %v3241
    %v3584 = vunpack.c.h.b16 %v3241
    %v3585 = vunpack.c.l.b16 %v3242
    %v3586 = vunpack.c.h.b16 %v3242
    %v3587 = vunpack.c.l.b16 %v3243
    %v3588 = vunpack.c.h.b16 %v3243
    %v3589 = vunpack.c.l.b16 %v3244
    %v3590 = vunpack.c.h.b16 %v3244
    %v3591 = vunpack.c.l.b16 %v3245
    %v3592 = vunpack.c.h.b16 %v3245
    %v3593 = vunpack.c.l.b16 %v3246
    %v3594 = vunpack.c.h.b16 %v3246
    %v3595 = vunpack.c.l.b16 %v3247
    %v3596 = vunpack.c.h.b16 %v3247
    %v3597 = vunpack.c.l.b16 %v3248
    %v3598 = vunpack.c.h.b16 %v3248
    %v3599 = vunpack.c.l.b16 %v3249
    %v3600 = vunpack.c.h.b16 %v3249
    %v3601 = vunpack.c.l.b16 %v3250
    %v3602 = vunpack.c.h.b16 %v3250
    %v3603 = vunpack.c.l.b16 %v3251
    %v3604 = vunpack.c.h.b16 %v3251
    %v3605 = vunpack.c.l.b16 %v3252
    %v3606 = vunpack.c.h.b16 %v3252
    %v3607 = vunpack.c.l.b16 %v3253
    %v3608 = vunpack.c.h.b16 %v3253
    %v3609 = vunpack.c.l.b16 %v3254
    %v3610 = vunpack.c.h.b16 %v3254
    %v3611 = vunpack.c.l.b16 %v3255
    %v3612 = vunpack.c.h.b16 %v3255
    %v3613 = vunpack.c.l.b16 %v3256
    %v3614 = vunpack.c.h.b16 %v3256
    %v3615 = vunpack.c.l.b16 %v3257
    %v3616 = vunpack.c.h.b16 %v3257
    %v3617 = vunpack.c.l.b16 %v3258
    %v3618 = vunpack.c.h.b16 %v3258
    %v3619 = vunpack.c.l.b16 %v3259
    %v3620 = vunpack.c.h.b16 %v3259
    %v3621 = vunpack.c.l.b16 %v3260
    %v3622 = vunpack.c.h.b16 %v3260
    %v3623 = vunpack.c.l.b16 %v3261
    %v3624 = vunpack.c.h.b16 %v3261
    %v3625 = vunpack.c.l.b16 %v3262
    %v3626 = vunpack.c.h.b16 %v3262
    %v3627 = vunpack.c.l.b16 %v3263
    %v3628 = vunpack.c.h.b16 %v3263
    %v3629 = vunpack.c.l.b16 %v3264
    %v3630 = vunpack.c.h.b16 %v3264
    %v3631 = vunpack.c.l.b16 %v3265
    %v3632 = vunpack.c.h.b16 %v3265
    %v3633 = vunpack.c.l.b16 %v3266
    %v3634 = vunpack.c.h.b16 %v3266
    %v3635 = vunpack.c.l.b16 %v3267
    %v3636 = vunpack.c.h.b16 %v3267
    %v3637 = vunpack.c.l.b16 %v3268
    %v3638 = vunpack.c.h.b16 %v3268
    %v3639 = vunpack.c.l.b16 %v3269
    %v3640 = vunpack.c.h.b16 %v3269
    %v3641 = vunpack.c.l.b16 %v3270
    %v3642 = vunpack.c.h.b16 %v3270
    %v3643 = vunpack.c.l.b16 %v3271
    %v3644 = vunpack.c.h.b16 %v3271
    %v3645 = vunpack.c.l.b16 %v3272
    %v3646 = vunpack.c.h.b16 %v3272
    %v3647 = vunpack.c.l.b16 %v3273
    %v3648 = vunpack.c.h.b16 %v3273
    %v3649 = vunpack.c.l.b16 %v3274
    %v3650 = vunpack.c.h.b16 %v3274
    %v3651 = vunpack.c.l.b16 %v3275
    %v3652 = vunpack.c.h.b16 %v3275
    %v3653 = vunpack.c.l.b16 %v3276
    %v3654 = vunpack.c.h.b16 %v3276
    %v3655 = vunpack.c.l.b16 %v3277
    %v3656 = vunpack.c.h.b16 %v3277
    %v3657 = vunpack.c.l.b16 %v3278
    %v3658 = vunpack.c.h.b16 %v3278
    %v3659 = vunpack.c.l.b16 %v3279
    %v3660 = vunpack.c.h.b16 %v3279
    %v3661 = vunpack.c.l.b16 %v3280
    %v3662 = vunpack.c.h.b16 %v3280
    %v3663 = vunpack.c.l.b16 %v3281
    %v3664 = vunpack.c.h.b16 %v3281
    %v3665 = vunpack.c.l.b16 %v3282
    %v3666 = vunpack.c.h.b16 %v3282
    %v3667 = vunpack.c.l.b16 %v3283
    %v3668 = vunpack.c.h.b16 %v3283
    %v3669 = vunpack.c.l.b16 %v3284
    %v3670 = vunpack.c.h.b16 %v3284
    %v3671 = vunpack.c.l.b16 %v3285
    %v3672 = vunpack.c.h.b16 %v3285
    %v3673 = vunpack.c.l.b16 %v3286
    %v3674 = vunpack.c.h.b16 %v3286
    %v3675 = vunpack.c.l.b16 %v3287
    %v3676 = vunpack.c.h.b16 %v3287
    %v3677 = vunpack.c.l.b16 %v3288
    %v3678 = vunpack.c.h.b16 %v3288
    %v3679 = vunpack.c.l.b16 %v3289
    %v3680 = vunpack.c.h.b16 %v3289
    %v3681 = vunpack.c.l.b16 %v3290
    %v3682 = vunpack.c.h.b16 %v3290
    %v3683 = vunpack.c.l.b16 %v3291
    %v3684 = vunpack.c.h.b16 %v3291
    %v3685 = vunpack.c.l.b16 %v3292
    %v3686 = vunpack.c.h.b16 %v3292
    %v3687 = vunpack.c.l.b16 %v3293
    %v3688 = vunpack.c.h.b16 %v3293
    %v3689 = vunpack.c.l.b16 %v3294
    %v3690 = vunpack.c.h.b16 %v3294
    %v3691 = vunpack.c.l.b16 %v3295
    %v3692 = vunpack.c.h.b16 %v3295
    %v3693 = vunpack.c.l.b16 %v3296
    %v3694 = vunpack.c.h.b16 %v3296
    %v3695 = vunpack.c.l.b16 %v3297
    %v3696 = vunpack.c.h.b16 %v3297
    %v3697 = vunpack.c.l.b16 %v3298
    %v3698 = vunpack.c.h.b16 %v3298
    %v3699 = vunpack.c.l.b16 %v3299
    %v3700 = vunpack.c.h.b16 %v3299
    %v3701 = vunpack.c.l.b16 %v3300
    %v3702 = vunpack.c.h.b16 %v3300
    %v3703 = vunpack.c.l.b16 %v3301
    %v3704 = vunpack.c.h.b16 %v3301
    %v3705 = vunpack.c.l.b16 %v3302
    %v3706 = vunpack.c.h.b16 %v3302
    %v3707 = vunpack.c.l.b16 %v3303
    %v3708 = vunpack.c.h.b16 %v3303
    %v3709 = vunpack.c.l.b16 %v3304
    %v3710 = vunpack.c.h.b16 %v3304
    %v3711 = vpack.c.b16 %v3459, %v3455
    %v3712 = vpack.c.b16 %v3460, %v3456
    %v3713 = vpack.c.b16 %v3461, %v3457
    %v3714 = vpack.c.b16 %v3462, %v3458
    %v3715 = vpack.c.b16 %v3467, %v3463
    %v3716 = vpack.c.b16 %v3468, %v3464
    %v3717 = vpack.c.b16 %v3469, %v3465
    %v3718 = vpack.c.b16 %v3470, %v3466
    %v3719 = vpack.c.b16 %v3475, %v3471
    %v3720 = vpack.c.b16 %v3476, %v3472
    %v3721 = vpack.c.b16 %v3477, %v3473
    %v3722 = vpack.c.b16 %v3478, %v3474
    %v3723 = vpack.c.b16 %v3483, %v3479
    %v3724 = vpack.c.b16 %v3484, %v3480
    %v3725 = vpack.c.b16 %v3485, %v3481
    %v3726 = vpack.c.b16 %v3486, %v3482
    %v3727 = vpack.c.b16 %v3491, %v3487
    %v3728 = vpack.c.b16 %v3492, %v3488
    %v3729 = vpack.c.b16 %v3493, %v3489
    %v3730 = vpack.c.b16 %v3494, %v3490
    %v3731 = vpack.c.b16 %v3499, %v3495
    %v3732 = vpack.c.b16 %v3500, %v3496
    %v3733 = vpack.c.b16 %v3501, %v3497
    %v3734 = vpack.c.b16 %v3502, %v3498
    %v3735 = vpack.c.b16 %v3507, %v3503
    %v3736 = vpack.c.b16 %v3508, %v3504
    %v3737 = vpack.c.b16 %v3509, %v3505
    %v3738 = vpack.c.b16 %v3510, %v3506
    %v3739 = vpack.c.b16 %v3515, %v3511
    %v3740 = vpack.c.b16 %v3516, %v3512
    %v3741 = vpack.c.b16 %v3517, %v3513
    %v3742 = vpack.c.b16 %v3518, %v3514
    %v3743 = vpack.c.b16 %v3523, %v3519
    %v3744 = vpack.c.b16 %v3524, %v3520
    %v3745 = vpack.c.b16 %v3525, %v3521
    %v3746 = vpack.c.b16 %v3526, %v3522
    %v3747 = vpack.c.b16 %v3531, %v3527
    %v3748 = vpack.c.b16 %v3532, %v3528
    %v3749 = vpack.c.b16 %v3533, %v3529
    %v3750 = vpack.c.b16 %v3534, %v3530
    %v3751 = vpack.c.b16 %v3539, %v3535
    %v3752 = vpack.c.b16 %v3540, %v3536
    %v3753 = vpack.c.b16 %v3541, %v3537
    %v3754 = vpack.c.b16 %v3542, %v3538
    %v3755 = vpack.c.b16 %v3547, %v3543
    %v3756 = vpack.c.b16 %v3548, %v3544
    %v3757 = vpack.c.b16 %v3549, %v3545
    %v3758 = vpack.c.b16 %v3550, %v3546
    %v3759 = vpack.c.b16 %v3555, %v3551
    %v3760 = vpack.c.b16 %v3556, %v3552
    %v3761 = vpack.c.b16 %v3557, %v3553
    %v3762 = vpack.c.b16 %v3558, %v3554
    %v3763 = vpack.c.b16 %v3563, %v3559
    %v3764 = vpack.c.b16 %v3564, %v3560
    %v3765 = vpack.c.b16 %v3565, %v3561
    %v3766 = vpack.c.b16 %v3566, %v3562
    %v3767 = vpack.c.b16 %v3571, %v3567
    %v3768 = vpack.c.b16 %v3572, %v3568
    %v3769 = vpack.c.b16 %v3573, %v3569
    %v3770 = vpack.c.b16 %v3574, %v3570
    %v3771 = vpack.c.b16 %v3579, %v3575
    %v3772 = vpack.c.b16 %v3580, %v3576
    %v3773 = vpack.c.b16 %v3581, %v3577
    %v3774 = vpack.c.b16 %v3582, %v3578
    %v3775 = vpack.c.b16 %v3587, %v3583
    %v3776 = vpack.c.b16 %v3588, %v3584
    %v3777 = vpack.c.b16 %v3589, %v3585
    %v3778 = vpack.c.b16 %v3590, %v3586
    %v3779 = vpack.c.b16 %v3595, %v3591
    %v3780 = vpack.c.b16 %v3596, %v3592
    %v3781 = vpack.c.b16 %v3597, %v3593
    %v3782 = vpack.c.b16 %v3598, %v3594
    %v3783 = vpack.c.b16 %v3603, %v3599
    %v3784 = vpack.c.b16 %v3604, %v3600
    %v3785 = vpack.c.b16 %v3605, %v3601
    %v3786 = vpack.c.b16 %v3606, %v3602
    %v3787 = vpack.c.b16 %v3611, %v3607
    %v3788 = vpack.c.b16 %v3612, %v3608
    %v3789 = vpack.c.b16 %v3613, %v3609
    %v3790 = vpack.c.b16 %v3614, %v3610
    %v3791 = vpack.c.b16 %v3619, %v3615
    %v3792 = vpack.c.b16 %v3620, %v3616
    %v3793 = vpack.c.b16 %v3621, %v3617
    %v3794 = vpack.c.b16 %v3622, %v3618
    %v3795 = vpack.c.b16 %v3627, %v3623
    %v3796 = vpack.c.b16 %v3628, %v3624
    %v3797 = vpack.c.b16 %v3629, %v3625
    %v3798 = vpack.c.b16 %v3630, %v3626
    %v3799 = vpack.c.b16 %v3635, %v3631
    %v3800 = vpack.c.b16 %v3636, %v3632
    %v3801 = vpack.c.b16 %v3637, %v3633
    %v3802 = vpack.c.b16 %v3638, %v3634
    %v3803 = vpack.c.b16 %v3643, %v3639
    %v3804 = vpack.c.b16 %v3644, %v3640
    %v3805 = vpack.c.b16 %v3645, %v3641
    %v3806 = vpack.c.b16 %v3646, %v3642
    %v3807 = vpack.c.b16 %v3651, %v3647
    %v3808 = vpack.c.b16 %v3652, %v3648
    %v3809 = vpack.c.b16 %v3653, %v3649
    %v3810 = vpack.c.b16 %v3654, %v3650
    %v3811 = vpack.c.b16 %v3659, %v3655
    %v3812 = vpack.c.b16 %v3660, %v3656
    %v3813 = vpack.c.b16 %v3661, %v3657
    %v3814 = vpack.c.b16 %v3662, %v3658
    %v3815 = vpack.c.b16 %v3667, %v3663
    %v3816 = vpack.c.b16 %v3668, %v3664
    %v3817 = vpack.c.b16 %v3669, %v3665
    %v3818 = vpack.c.b16 %v3670, %v3666
    %v3819 = vpack.c.b16 %v3675, %v3671
    %v3820 = vpack.c.b16 %v3676, %v3672
    %v3821 = vpack.c.b16 %v3677, %v3673
    %v3822 = vpack.c.b16 %v3678, %v3674
    %v3823 = vpack.c.b16 %v3683, %v3679
    %v3824 = vpack.c.b16 %v3684, %v3680
    %v3825 = vpack.c.b16 %v3685, %v3681
    %v3826 = vpack.c.b16 %v3686, %v3682
    %v3827 = vpack.c.b16 %v3691, %v3687
    %v3828 = vpack.c.b16 %v3692, %v3688
    %v3829 = vpack.c.b16 %v3693, %v3689
    %v3830 = vpack.c.b16 %v3694, %v3690
    %v3831 = vpack.c.b16 %v3699, %v3695
    %v3832 = vpack.c.b16 %v3700, %v3696
    %v3833 = vpack.c.b16 %v3701, %v3697
    %v3834 = vpack.c.b16 %v3702, %v3698
    %v3835 = vpack.c.b16 %v3707, %v3703
    %v3836 = vpack.c.b16 %v3708, %v3704
    %v3837 = vpack.c.b16 %v3709, %v3705
    %v3838 = vpack.c.b16 %v3710, %v3706
    %3967 = vmatprep.subr.bf16.mxu0 %v3712
    %3968 = vmatpush1.bf16.msra.mxu0 %v3711
    %3969 = vmatprep.subr.bf16.mxu0 %v3716
    %3970 = vmatpush1.bf16.msra.mxu0 %v3715
    %3971 = vmatprep.subr.bf16.mxu0 %v3720
    %3972 = vmatpush1.bf16.msra.mxu0 %v3719
    %3973 = vmatprep.subr.bf16.mxu0 %v3724
    %3974 = vmatpush1.bf16.msra.mxu0 %v3723
    %3975 = vmatprep.subr.bf16.mxu0 %v3728
    %3976 = vmatpush1.bf16.msra.mxu0 %v3727
    %3977 = vmatprep.subr.bf16.mxu0 %v3732
    %3978 = vmatpush1.bf16.msra.mxu0 %v3731
    %3979 = vmatprep.subr.bf16.mxu0 %v3736
    %3980 = vmatpush1.bf16.msra.mxu0 %v3735
    %3981 = vmatprep.subr.bf16.mxu0 %v3740
    %3982 = vmatpush1.bf16.msra.mxu0 %v3739
    %3983 = vmatprep.subr.bf16.mxu0 %v3744
    %3984 = vmatpush1.bf16.msra.mxu0 %v3743
    %3985 = vmatprep.subr.bf16.mxu0 %v3748
    %3986 = vmatpush1.bf16.msra.mxu0 %v3747
    %3987 = vmatprep.subr.bf16.mxu0 %v3752
    %3988 = vmatpush1.bf16.msra.mxu0 %v3751
    %3989 = vmatprep.subr.bf16.mxu0 %v3756
    %3990 = vmatpush1.bf16.msra.mxu0 %v3755
    %3991 = vmatprep.subr.bf16.mxu0 %v3760
    %3992 = vmatpush1.bf16.msra.mxu0 %v3759
    %3993 = vmatprep.subr.bf16.mxu0 %v3764
    %3994 = vmatpush1.bf16.msra.mxu0 %v3763
    %3995 = vmatprep.subr.bf16.mxu0 %v3768
    %3996 = vmatpush1.bf16.msra.mxu0 %v3767
    %3997 = vmatprep.subr.bf16.mxu0 %v3772
    %3998 = vmatpush1.bf16.msra.mxu0 %v3771
    %3999 = vmatprep.mubr.bf16.mxu0 %v3146
    %4000 = vmatmul.mubr.bf16.gmra.mrb[0].mxu0 %v3145
    %v4001 = vpop.f32.mrb[0].mxu0
    %v4002 = vadd.f32 %v3310, %v4001
    %v4003 = vpop.f32.mrb[0].mxu0
    %v4004 = vadd.f32 %v3314, %v4003
    %v4005 = vpop.f32.mrb[0].mxu0
    %v4006 = vadd.f32 %v3310, %v4005
    %v4007 = vpop.f32.mrb[0].mxu0
    %v4008 = vadd.f32 %v3314, %v4007
    %4009 = vmatprep.mubr.bf16.mxu0 %v3150
    %4010 = vmatmul.mubr.bf16.gmra.mrb[0].mxu0 %v3149
    %v4011 = vpop.f32.mrb[0].mxu0
    %v4012 = vadd.f32 %v3310, %v4011
    %v4013 = vpop.f32.mrb[0].mxu0
    %v4014 = vadd.f32 %v3314, %v4013
    %v4015 = vpop.f32.mrb[0].mxu0
    %v4016 = vadd.f32 %v3310, %v4015
    %v4017 = vpop.f32.mrb[0].mxu0
    %v4018 = vadd.f32 %v3314, %v4017
    %4019 = vmatprep.mubr.bf16.mxu0 %v3154
    %4020 = vmatmul.mubr.bf16.gmra.mrb[0].mxu0 %v3153
    %v4021 = vpop.f32.mrb[0].mxu0
    %v4022 = vadd.f32 %v3310, %v4021
    %v4023 = vpop.f32.mrb[0].mxu0
    %v4024 = vadd.f32 %v3314, %v4023
    %v4025 = vpop.f32.mrb[0].mxu0
    %v4026 = vadd.f32 %v3310, %v4025
    %v4027 = vpop.f32.mrb[0].mxu0
    %v4028 = vadd.f32 %v3314, %v4027
    %4029 = vmatprep.mubr.bf16.mxu0 %v3158
    %4030 = vmatmul.mubr.bf16.gmra.mrb[0].mxu0 %v3157
    %v4031 = vpop.f32.mrb[0].mxu0
    %v4032 = vadd.f32 %v3310, %v4031
    %v4033 = vpop.f32.mrb[0].mxu0
    %v4034 = vadd.f32 %v3314, %v4033
    %v4035 = vpop.f32.mrb[0].mxu0
    %v4036 = vadd.f32 %v3310, %v4035
    %v4037 = vpop.f32.mrb[0].mxu0
    %v4038 = vadd.f32 %v3314, %v4037
    %4039 = vmatprep.mubr.bf16.mxu0 %v3162
    %4040 = vmatmul.mubr.bf16.gmra.mrb[0].mxu0 %v3161
    %v4041 = vpop.f32.mrb[0].mxu0
    %v4042 = vadd.f32 %v3310, %v4041
    %v4043 = vpop.f32.mrb[0].mxu0
    %v4044 = vadd.f32 %v3314, %v4043
    %v4045 = vpop.f32.mrb[0].mxu0
    %v4046 = vadd.f32 %v3310, %v4045
    %v4047 = vpop.f32.mrb[0].mxu0
    %v4048 = vadd.f32 %v3314, %v4047
    %4049 = vmatprep.mubr.bf16.mxu0 %v3166
    %4050 = vmatmul.mubr.bf16.gmra.mrb[0].mxu0 %v3165
    %v4051 = vpop.f32.mrb[0].mxu0
    %v4052 = vadd.f32 %v3310, %v4051
    %v4053 = vpop.f32.mrb[0].mxu0
    %v4054 = vadd.f32 %v3314, %v4053
    %v4055 = vpop.f32.mrb[0].mxu0
    %v4056 = vadd.f32 %v3310, %v4055
    %v4057 = vpop.f32.mrb[0].mxu0
    %v4058 = vadd.f32 %v3314, %v4057
    %4059 = vmatprep.mubr.bf16.mxu0 %v3170
    %4060 = vmatmul.mubr.bf16.gmra.mrb[0].mxu0 %v3169
    %v4061 = vpop.f32.mrb[0].mxu0
    %v4062 = vadd.f32 %v3310, %v4061
    %v4063 = vpop.f32.mrb[0].mxu0
    %v4064 = vadd.f32 %v3314, %v4063
    %v4065 = vpop.f32.mrb[0].mxu0
    %v4066 = vadd.f32 %v3310, %v4065
    %v4067 = vpop.f32.mrb[0].mxu0
    %v4068 = vadd.f32 %v3314, %v4067
    %4069 = vmatprep.mubr.bf16.mxu0 %v3174
    %4070 = vmatmul.mubr.bf16.gmra.mrb[0].mxu0 %v3173
    %v4071 = vpop.f32.mrb[0].mxu0
    %v4072 = vadd.f32 %v3310, %v4071
    %v4073 = vpop.f32.mrb[0].mxu0
    %v4074 = vadd.f32 %v3314, %v4073
    %v4075 = vpop.f32.mrb[0].mxu0
    %v4076 = vadd.f32 %v3310, %v4075
    %v4077 = vpop.f32.mrb[0].mxu0
    %v4078 = vadd.f32 %v3314, %v4077
    %4079 = vdwg.mxu0
    %4080 = vmatprep.subr.bf16.mxu0 %v3776
    %4081 = vmatpush1.bf16.msra.mxu0 %v3775
    %4082 = vmatprep.subr.bf16.mxu0 %v3780
    %4083 = vmatpush1.bf16.msra.mxu0 %v3779
    %4084 = vmatprep.subr.bf16.mxu0 %v3784
    %4085 = vmatpush1.bf16.msra.mxu0 %v3783
    %4086 = vmatprep.subr.bf16.mxu0 %v3788
    %4087 = vmatpush1.bf16.msra.mxu0 %v3787
    %4088 = vmatprep.subr.bf16.mxu0 %v3792
    %4089 = vmatpush1.bf16.msra.mxu0 %v3791
    %4090 = vmatprep.subr.bf16.mxu0 %v3796
    %4091 = vmatpush1.bf16.msra.mxu0 %v3795
    %4092 = vmatprep.subr.bf16.mxu0 %v3800
    %4093 = vmatpush1.bf16.msra.mxu0 %v3799
    %4094 = vmatprep.subr.bf16.mxu0 %v3804
    %4095 = vmatpush1.bf16.msra.mxu0 %v3803
    %4096 = vmatprep.subr.bf16.mxu0 %v3808
    %4097 = vmatpush1.bf16.msra.mxu0 %v3807
    %4098 = vmatprep.subr.bf16.mxu0 %v3812
    %4099 = vmatpush1.bf16.msra.mxu0 %v3811
    %4100 = vmatprep.subr.bf16.mxu0 %v3816
    %4101 = vmatpush1.bf16.msra.mxu0 %v3815
    %4102 = vmatprep.subr.bf16.mxu0 %v3820
    %4103 = vmatpush1.bf16.msra.mxu0 %v3819
    %4104 = vmatprep.subr.bf16.mxu0 %v3824
    %4105 = vmatpush1.bf16.msra.mxu0 %v3823
    %4106 = vmatprep.subr.bf16.mxu0 %v3828
    %4107 = vmatpush1.bf16.msra.mxu0 %v3827
    %4108 = vmatprep.subr.bf16.mxu0 %v3832
    %4109 = vmatpush1.bf16.msra.mxu0 %v3831
    %4110 = vmatprep.subr.bf16.mxu0 %v3836
    %4111 = vmatpush1.bf16.msra.mxu0 %v3835
    %4112 = vmatprep.mubr.bf16.mxu0 %v3148
    %4113 = vmatmul.mubr.bf16.gmra.mrb[0].mxu0 %v3147
    %v4114 = vpop.f32.mrb[0].mxu0
    %v4115 = vadd.f32 %v4002, %v4114
    %v4116 = vpop.f32.mrb[0].mxu0
    %v4117 = vadd.f32 %v4004, %v4116
    %v4118 = vpop.f32.mrb[0].mxu0
    %v4119 = vadd.f32 %v4006, %v4118
    %v4120 = vpop.f32.mrb[0].mxu0
    %v4121 = vadd.f32 %v4008, %v4120
    %4122 = vmatprep.mubr.bf16.mxu0 %v3152
    %4123 = vmatmul.mubr.bf16.gmra.mrb[0].mxu0 %v3151
    %v4124 = vpop.f32.mrb[0].mxu0
    %v4125 = vadd.f32 %v4012, %v4124
    %v4126 = vpop.f32.mrb[0].mxu0
    %v4127 = vadd.f32 %v4014, %v4126
    %v4128 = vpop.f32.mrb[0].mxu0
    %v4129 = vadd.f32 %v4016, %v4128
    %v4130 = vpop.f32.mrb[0].mxu0
    %v4131 = vadd.f32 %v4018, %v4130
    %4132 = vmatprep.mubr.bf16.mxu0 %v3156
    %4133 = vmatmul.mubr.bf16.gmra.mrb[0].mxu0 %v3155
    %v4134 = vpop.f32.mrb[0].mxu0
    %v4135 = vadd.f32 %v4022, %v4134
    %v4136 = vpop.f32.mrb[0].mxu0
    %v4137 = vadd.f32 %v4024, %v4136
    %v4138 = vpop.f32.mrb[0].mxu0
    %v4139 = vadd.f32 %v4026, %v4138
    %v4140 = vpop.f32.mrb[0].mxu0
    %v4141 = vadd.f32 %v4028, %v4140
    %4142 = vmatprep.mubr.bf16.mxu0 %v3160
    %4143 = vmatmul.mubr.bf16.gmra.mrb[0].mxu0 %v3159
    %v4144 = vpop.f32.mrb[0].mxu0
    %v4145 = vadd.f32 %v4032, %v4144
    %v4146 = vpop.f32.mrb[0].mxu0
    %v4147 = vadd.f32 %v4034, %v4146
    %v4148 = vpop.f32.mrb[0].mxu0
    %v4149 = vadd.f32 %v4036, %v4148
    %v4150 = vpop.f32.mrb[0].mxu0
    %v4151 = vadd.f32 %v4038, %v4150
    %4152 = vmatprep.mubr.bf16.mxu0 %v3164
    %4153 = vmatmul.mubr.bf16.gmra.mrb[0].mxu0 %v3163
    %v4154 = vpop.f32.mrb[0].mxu0
    %v4155 = vadd.f32 %v4042, %v4154
    %v4156 = vpop.f32.mrb[0].mxu0
    %v4157 = vadd.f32 %v4044, %v4156
    %v4158 = vpop.f32.mrb[0].mxu0
    %v4159 = vadd.f32 %v4046, %v4158
    %v4160 = vpop.f32.mrb[0].mxu0
    %v4161 = vadd.f32 %v4048, %v4160
    %4162 = vmatprep.mubr.bf16.mxu0 %v3168
    %4163 = vmatmul.mubr.bf16.gmra.mrb[0].mxu0 %v3167
    %v4164 = vpop.f32.mrb[0].mxu0
    %v4165 = vadd.f32 %v4052, %v4164
    %v4166 = vpop.f32.mrb[0].mxu0
    %v4167 = vadd.f32 %v4054, %v4166
    %v4168 = vpop.f32.mrb[0].mxu0
    %v4169 = vadd.f32 %v4056, %v4168
    %v4170 = vpop.f32.mrb[0].mxu0
    %v4171 = vadd.f32 %v4058, %v4170
    %4172 = vmatprep.mubr.bf16.mxu0 %v3172
    %4173 = vmatmul.mubr.bf16.gmra.mrb[0].mxu0 %v3171
    %v4174 = vpop.f32.mrb[0].mxu0
    %v4175 = vadd.f32 %v4062, %v4174
    %v4176 = vpop.f32.mrb[0].mxu0
    %v4177 = vadd.f32 %v4064, %v4176
    %v4178 = vpop.f32.mrb[0].mxu0
    %v4179 = vadd.f32 %v4066, %v4178
    %v4180 = vpop.f32.mrb[0].mxu0
    %v4181 = vadd.f32 %v4068, %v4180
    %4182 = vmatprep.mubr.bf16.mxu0 %v3176
    %4183 = vmatmul.mubr.bf16.gmra.mrb[0].mxu0 %v3175
    %v4184 = vpop.f32.mrb[0].mxu0
    %v4185 = vadd.f32 %v4072, %v4184
    %v4186 = vpop.f32.mrb[0].mxu0
    %v4187 = vadd.f32 %v4074, %v4186
    %v4188 = vpop.f32.mrb[0].mxu0
    %v4189 = vadd.f32 %v4076, %v4188
    %v4190 = vpop.f32.mrb[0].mxu0
    %v4191 = vadd.f32 %v4078, %v4190
    %4192 = vdwg.mxu0
    %4193 = vmatprep.subr.bf16.mxu0 %v3714
    %4194 = vmatpush1.bf16.msra.mxu0 %v3713
    %4195 = vmatprep.subr.bf16.mxu0 %v3718
    %4196 = vmatpush1.bf16.msra.mxu0 %v3717
    %4197 = vmatprep.subr.bf16.mxu0 %v3722
    %4198 = vmatpush1.bf16.msra.mxu0 %v3721
    %4199 = vmatprep.subr.bf16.mxu0 %v3726
    %4200 = vmatpush1.bf16.msra.mxu0 %v3725
    %4201 = vmatprep.subr.bf16.mxu0 %v3730
    %4202 = vmatpush1.bf16.msra.mxu0 %v3729
    %4203 = vmatprep.subr.bf16.mxu0 %v3734
    %4204 = vmatpush1.bf16.msra.mxu0 %v3733
    %4205 = vmatprep.subr.bf16.mxu0 %v3738
    %4206 = vmatpush1.bf16.msra.mxu0 %v3737
    %4207 = vmatprep.subr.bf16.mxu0 %v3742
    %4208 = vmatpush1.bf16.msra.mxu0 %v3741
    %4209 = vmatprep.subr.bf16.mxu0 %v3746
    %4210 = vmatpush1.bf16.msra.mxu0 %v3745
    %4211 = vmatprep.subr.bf16.mxu0 %v3750
    %4212 = vmatpush1.bf16.msra.mxu0 %v3749
    %4213 = vmatprep.subr.bf16.mxu0 %v3754
    %4214 = vmatpush1.bf16.msra.mxu0 %v3753
    %4215 = vmatprep.subr.bf16.mxu0 %v3758
    %4216 = vmatpush1.bf16.msra.mxu0 %v3757
    %4217 = vmatprep.subr.bf16.mxu0 %v3762
    %4218 = vmatpush1.bf16.msra.mxu0 %v3761
    %4219 = vmatprep.subr.bf16.mxu0 %v3766
    %4220 = vmatpush1.bf16.msra.mxu0 %v3765
    %4221 = vmatprep.subr.bf16.mxu0 %v3770
    %4222 = vmatpush1.bf16.msra.mxu0 %v3769
    %4223 = vmatprep.subr.bf16.mxu0 %v3774
    %4224 = vmatpush1.bf16.msra.mxu0 %v3773
    %4225 = vmatprep.mubr.bf16.mxu0 %v3146
    %4226 = vmatmul.mubr.bf16.gmra.mrb[0].mxu0 %v3145
    %v4227 = vpop.f32.mrb[0].mxu0
    %v4228 = vadd.f32 %v3318, %v4227
    %v4229 = vpop.f32.mrb[0].mxu0
    %v4230 = vadd.f32 %v3322, %v4229
    %v4231 = vpop.f32.mrb[0].mxu0
    %v4232 = vadd.f32 %v3318, %v4231
    %v4233 = vpop.f32.mrb[0].mxu0
    %v4234 = vadd.f32 %v3322, %v4233
    %4235 = vmatprep.mubr.bf16.mxu0 %v3150
    %4236 = vmatmul.mubr.bf16.gmra.mrb[0].mxu0 %v3149
    %v4237 = vpop.f32.mrb[0].mxu0
    %v4238 = vadd.f32 %v3318, %v4237
    %v4239 = vpop.f32.mrb[0].mxu0
    %v4240 = vadd.f32 %v3322, %v4239
    %v4241 = vpop.f32.mrb[0].mxu0
    %v4242 = vadd.f32 %v3318, %v4241
    %v4243 = vpop.f32.mrb[0].mxu0
    %v4244 = vadd.f32 %v3322, %v4243
    %4245 = vmatprep.mubr.bf16.mxu0 %v3154
    %4246 = vmatmul.mubr.bf16.gmra.mrb[0].mxu0 %v3153
    %v4247 = vpop.f32.mrb[0].mxu0
    %v4248 = vadd.f32 %v3318, %v4247
    %v4249 = vpop.f32.mrb[0].mxu0
    %v4250 = vadd.f32 %v3322, %v4249
    %v4251 = vpop.f32.mrb[0].mxu0
    %v4252 = vadd.f32 %v3318, %v4251
    %v4253 = vpop.f32.mrb[0].mxu0
    %v4254 = vadd.f32 %v3322, %v4253
    %4255 = vmatprep.mubr.bf16.mxu0 %v3158
    %4256 = vmatmul.mubr.bf16.gmra.mrb[0].mxu0 %v3157
    %v4257 = vpop.f32.mrb[0].mxu0
    %v4258 = vadd.f32 %v3318, %v4257
    %v4259 = vpop.f32.mrb[0].mxu0
    %v4260 = vadd.f32 %v3322, %v4259
    %v4261 = vpop.f32.mrb[0].mxu0
    %v4262 = vadd.f32 %v3318, %v4261
    %v4263 = vpop.f32.mrb[0].mxu0
    %v4264 = vadd.f32 %v3322, %v4263
    %4265 = vmatprep.mubr.bf16.mxu0 %v3162
    %4266 = vmatmul.mubr.bf16.gmra.mrb[0].mxu0 %v3161
    %v4267 = vpop.f32.mrb[0].mxu0
    %v4268 = vadd.f32 %v3318, %v4267
    %v4269 = vpop.f32.mrb[0].mxu0
    %v4270 = vadd.f32 %v3322, %v4269
    %v4271 = vpop.f32.mrb[0].mxu0
    %v4272 = vadd.f32 %v3318, %v4271
    %v4273 = vpop.f32.mrb[0].mxu0
    %v4274 = vadd.f32 %v3322, %v4273
    %4275 = vmatprep.mubr.bf16.mxu0 %v3166
    %4276 = vmatmul.mubr.bf16.gmra.mrb[0].mxu0 %v3165
    %v4277 = vpop.f32.mrb[0].mxu0
    %v4278 = vadd.f32 %v3318, %v4277
    %v4279 = vpop.f32.mrb[0].mxu0
    %v4280 = vadd.f32 %v3322, %v4279
    %v4281 = vpop.f32.mrb[0].mxu0
    %v4282 = vadd.f32 %v3318, %v4281
    %v4283 = vpop.f32.mrb[0].mxu0
    %v4284 = vadd.f32 %v3322, %v4283
    %4285 = vmatprep.mubr.bf16.mxu0 %v3170
    %4286 = vmatmul.mubr.bf16.gmra.mrb[0].mxu0 %v3169
    %v4287 = vpop.f32.mrb[0].mxu0
    %v4288 = vadd.f32 %v3318, %v4287
    %v4289 = vpop.f32.mrb[0].mxu0
    %v4290 = vadd.f32 %v3322, %v4289
    %v4291 = vpop.f32.mrb[0].mxu0
    %v4292 = vadd.f32 %v3318, %v4291
    %v4293 = vpop.f32.mrb[0].mxu0
    %v4294 = vadd.f32 %v3322, %v4293
    %4295 = vmatprep.mubr.bf16.mxu0 %v3174
    %4296 = vmatmul.mubr.bf16.gmra.mrb[0].mxu0 %v3173
    %v4297 = vpop.f32.mrb[0].mxu0
    %v4298 = vadd.f32 %v3318, %v4297
    %v4299 = vpop.f32.mrb[0].mxu0
    %v4300 = vadd.f32 %v3322, %v4299
    %v4301 = vpop.f32.mrb[0].mxu0
    %v4302 = vadd.f32 %v3318, %v4301
    %v4303 = vpop.f32.mrb[0].mxu0
    %v4304 = vadd.f32 %v3322, %v4303
    %4305 = vdwg.mxu0
    %4306 = vmatprep.subr.bf16.mxu0 %v3778
    %4307 = vmatpush1.bf16.msra.mxu0 %v3777
    %4308 = vmatprep.subr.bf16.mxu0 %v3782
    %4309 = vmatpush1.bf16.msra.mxu0 %v3781
    %4310 = vmatprep.subr.bf16.mxu0 %v3786
    %4311 = vmatpush1.bf16.msra.mxu0 %v3785
    %4312 = vmatprep.subr.bf16.mxu0 %v3790
    %4313 = vmatpush1.bf16.msra.mxu0 %v3789
    %4314 = vmatprep.subr.bf16.mxu0 %v3794
    %4315 = vmatpush1.bf16.msra.mxu0 %v3793
    %4316 = vmatprep.subr.bf16.mxu0 %v3798
    %4317 = vmatpush1.bf16.msra.mxu0 %v3797
    %4318 = vmatprep.subr.bf16.mxu0 %v3802
    %4319 = vmatpush1.bf16.msra.mxu0 %v3801
    %4320 = vmatprep.subr.bf16.mxu0 %v3806
    %4321 = vmatpush1.bf16.msra.mxu0 %v3805
    %4322 = vmatprep.subr.bf16.mxu0 %v3810
    %4323 = vmatpush1.bf16.msra.mxu0 %v3809
    %4324 = vmatprep.subr.bf16.mxu0 %v3814
    %4325 = vmatpush1.bf16.msra.mxu0 %v3813
    %4326 = vmatprep.subr.bf16.mxu0 %v3818
    %4327 = vmatpush1.bf16.msra.mxu0 %v3817
    %4328 = vmatprep.subr.bf16.mxu0 %v3822
    %4329 = vmatpush1.bf16.msra.mxu0 %v3821
    %4330 = vmatprep.subr.bf16.mxu0 %v3826
    %4331 = vmatpush1.bf16.msra.mxu0 %v3825
    %4332 = vmatprep.subr.bf16.mxu0 %v3830
    %4333 = vmatpush1.bf16.msra.mxu0 %v3829
    %4334 = vmatprep.subr.bf16.mxu0 %v3834
    %4335 = vmatpush1.bf16.msra.mxu0 %v3833
    %4336 = vmatprep.subr.bf16.mxu0 %v3838
    %4337 = vmatpush1.bf16.msra.mxu0 %v3837
    %4338 = vmatprep.mubr.bf16.mxu0 %v3148
    %4339 = vmatmul.mubr.bf16.gmra.mrb[0].mxu0 %v3147
    %v4340 = vpop.f32.mrb[0].mxu0
    %v4341 = vadd.f32 %v4228, %v4340
    %v4342 = vpop.f32.mrb[0].mxu0
    %v4343 = vadd.f32 %v4230, %v4342
    %v4344 = vpop.f32.mrb[0].mxu0
    %v4345 = vadd.f32 %v4232, %v4344
    %v4346 = vpop.f32.mrb[0].mxu0
    %v4347 = vadd.f32 %v4234, %v4346
    %4348 = vmatprep.mubr.bf16.mxu0 %v3152
    %4349 = vmatmul.mubr.bf16.gmra.mrb[0].mxu0 %v3151
    %v4350 = vpop.f32.mrb[0].mxu0
    %v4351 = vadd.f32 %v4238, %v4350
    %v4352 = vpop.f32.mrb[0].mxu0
    %v4353 = vadd.f32 %v4240, %v4352
    %v4354 = vpop.f32.mrb[0].mxu0
    %v4355 = vadd.f32 %v4242, %v4354
    %v4356 = vpop.f32.mrb[0].mxu0
    %v4357 = vadd.f32 %v4244, %v4356
    %4358 = vmatprep.mubr.bf16.mxu0 %v3156
    %4359 = vmatmul.mubr.bf16.gmra.mrb[0].mxu0 %v3155
    %v4360 = vpop.f32.mrb[0].mxu0
    %v4361 = vadd.f32 %v4248, %v4360
    %v4362 = vpop.f32.mrb[0].mxu0
    %v4363 = vadd.f32 %v4250, %v4362
    %v4364 = vpop.f32.mrb[0].mxu0
    %v4365 = vadd.f32 %v4252, %v4364
    %v4366 = vpop.f32.mrb[0].mxu0
    %v4367 = vadd.f32 %v4254, %v4366
    %4368 = vmatprep.mubr.bf16.mxu0 %v3160
    %4369 = vmatmul.mubr.bf16.gmra.mrb[0].mxu0 %v3159
    %v4370 = vpop.f32.mrb[0].mxu0
    %v4371 = vadd.f32 %v4258, %v4370
    %v4372 = vpop.f32.mrb[0].mxu0
    %v4373 = vadd.f32 %v4260, %v4372
    %v4374 = vpop.f32.mrb[0].mxu0
    %v4375 = vadd.f32 %v4262, %v4374
    %v4376 = vpop.f32.mrb[0].mxu0
    %v4377 = vadd.f32 %v4264, %v4376
    %4378 = vmatprep.mubr.bf16.mxu0 %v3164
    %4379 = vmatmul.mubr.bf16.gmra.mrb[0].mxu0 %v3163
    %v4380 = vpop.f32.mrb[0].mxu0
    %v4381 = vadd.f32 %v4268, %v4380
    %v4382 = vpop.f32.mrb[0].mxu0
    %v4383 = vadd.f32 %v4270, %v4382
    %v4384 = vpop.f32.mrb[0].mxu0
    %v4385 = vadd.f32 %v4272, %v4384
    %v4386 = vpop.f32.mrb[0].mxu0
    %v4387 = vadd.f32 %v4274, %v4386
    %4388 = vmatprep.mubr.bf16.mxu0 %v3168
    %4389 = vmatmul.mubr.bf16.gmra.mrb[0].mxu0 %v3167
    %v4390 = vpop.f32.mrb[0].mxu0
    %v4391 = vadd.f32 %v4278, %v4390
    %v4392 = vpop.f32.mrb[0].mxu0
    %v4393 = vadd.f32 %v4280, %v4392
    %v4394 = vpop.f32.mrb[0].mxu0
    %v4395 = vadd.f32 %v4282, %v4394
    %v4396 = vpop.f32.mrb[0].mxu0
    %v4397 = vadd.f32 %v4284, %v4396
    %4398 = vmatprep.mubr.bf16.mxu0 %v3172
    %4399 = vmatmul.mubr.bf16.gmra.mrb[0].mxu0 %v3171
    %v4400 = vpop.f32.mrb[0].mxu0
    %v4401 = vadd.f32 %v4288, %v4400
    %v4402 = vpop.f32.mrb[0].mxu0
    %v4403 = vadd.f32 %v4290, %v4402
    %v4404 = vpop.f32.mrb[0].mxu0
    %v4405 = vadd.f32 %v4292, %v4404
    %v4406 = vpop.f32.mrb[0].mxu0
    %v4407 = vadd.f32 %v4294, %v4406
    %4408 = vmatprep.mubr.bf16.mxu0 %v3176
    %4409 = vmatmul.mubr.bf16.gmra.mrb[0].mxu0 %v3175
    %v4410 = vpop.f32.mrb[0].mxu0
    %v4411 = vadd.f32 %v4298, %v4410
    %v4412 = vpop.f32.mrb[0].mxu0
    %v4413 = vadd.f32 %v4300, %v4412
    %v4414 = vpop.f32.mrb[0].mxu0
    %v4415 = vadd.f32 %v4302, %v4414
    %v4416 = vpop.f32.mrb[0].mxu0
    %v4417 = vadd.f32 %v4304, %v4416
    %4418 = vdwg.mxu0
    %v4419 = vmax.f32 %v4115, 0.0
    %v4420 = vmax.f32 %v4117, 0.0
    %v4421 = vmax.f32 %v4341, 0.0
    %v4422 = vmax.f32 %v4343, 0.0
    %v4423 = vmax.f32 %v4119, 0.0
    %v4424 = vmax.f32 %v4121, 0.0
    %v4425 = vmax.f32 %v4345, 0.0
    %v4426 = vmax.f32 %v4347, 0.0
    %v4427 = vmax.f32 %v4125, 0.0
    %v4428 = vmax.f32 %v4127, 0.0
    %v4429 = vmax.f32 %v4351, 0.0
    %v4430 = vmax.f32 %v4353, 0.0
    %v4431 = vmax.f32 %v4129, 0.0
    %v4432 = vmax.f32 %v4131, 0.0
    %v4433 = vmax.f32 %v4355, 0.0
    %v4434 = vmax.f32 %v4357, 0.0
    %v4435 = vmax.f32 %v4135, 0.0
    %v4436 = vmax.f32 %v4137, 0.0
    %v4437 = vmax.f32 %v4361, 0.0
    %v4438 = vmax.f32 %v4363, 0.0
    %v4439 = vmax.f32 %v4139, 0.0
    %v4440 = vmax.f32 %v4141, 0.0
    %v4441 = vmax.f32 %v4365, 0.0
    %v4442 = vmax.f32 %v4367, 0.0
    %v4443 = vmax.f32 %v4145, 0.0
    %v4444 = vmax.f32 %v4147, 0.0
    %v4445 = vmax.f32 %v4371, 0.0
    %v4446 = vmax.f32 %v4373, 0.0
    %v4447 = vmax.f32 %v4149, 0.0
    %v4448 = vmax.f32 %v4151, 0.0
    %v4449 = vmax.f32 %v4375, 0.0
    %v4450 = vmax.f32 %v4377, 0.0
    %v4451 = vmax.f32 %v4155, 0.0
    %v4452 = vmax.f32 %v4157, 0.0
    %v4453 = vmax.f32 %v4381, 0.0
    %v4454 = vmax.f32 %v4383, 0.0
    %v4455 = vmax.f32 %v4159, 0.0
    %v4456 = vmax.f32 %v4161, 0.0
    %v4457 = vmax.f32 %v4385, 0.0
    %v4458 = vmax.f32 %v4387, 0.0
    %v4459 = vmax.f32 %v4165, 0.0
    %v4460 = vmax.f32 %v4167, 0.0
    %v4461 = vmax.f32 %v4391, 0.0
    %v4462 = vmax.f32 %v4393, 0.0
    %v4463 = vmax.f32 %v4169, 0.0
    %v4464 = vmax.f32 %v4171, 0.0
    %v4465 = vmax.f32 %v4395, 0.0
    %v4466 = vmax.f32 %v4397, 0.0
    %v4467 = vmax.f32 %v4175, 0.0
    %v4468 = vmax.f32 %v4177, 0.0
    %v4469 = vmax.f32 %v4401, 0.0
    %v4470 = vmax.f32 %v4403, 0.0
    %v4471 = vmax.f32 %v4179, 0.0
    %v4472 = vmax.f32 %v4181, 0.0
    %v4473 = vmax.f32 %v4405, 0.0
    %v4474 = vmax.f32 %v4407, 0.0
    %v4475 = vmax.f32 %v4185, 0.0
    %v4476 = vmax.f32 %v4187, 0.0
    %v4477 = vmax.f32 %v4411, 0.0
    %v4478 = vmax.f32 %v4413, 0.0
    %v4479 = vmax.f32 %v4189, 0.0
    %v4480 = vmax.f32 %v4191, 0.0
    %v4481 = vmax.f32 %v4415, 0.0
    %v4482 = vmax.f32 %v4417, 0.0
    %v4483 = vld [vmem:[%s9] sm:$0xf]
    %v4484 = vunpack.c.l.bf16 %v4483
    %v4486 = vlaneseq
    %v4487 = vshrl.u32 %v4486, 7
    %v4488 = vsub.s32 0, %v4487
    %v4489 = vrot.slane %v4484, %v4488
    %v4490 = vlaneseq
    %v4491 = vshrl.u32 %v4490, 7
    %v4492 = vsub.s32 2, %v4491
    %v4493 = vrot.slane %v4484, %v4492
    %v4494 = vlaneseq
    %v4495 = vshrl.u32 %v4494, 7
    %v4496 = vsub.s32 4, %v4495
    %v4497 = vrot.slane %v4484, %v4496
    %v4498 = vlaneseq
    %v4499 = vshrl.u32 %v4498, 7
    %v4500 = vsub.s32 6, %v4499
    %v4501 = vrot.slane %v4484, %v4500
    %v4506 = vlaneseq
    %v4507 = vshrl.u32 %v4506, 7
    %v4508 = vsub.s32 0, %v4507
    %v4509 = vrot.slane %v4489, %v4508
    %v4510 = vlaneseq
    %v4511 = vshrl.u32 %v4510, 7
    %v4512 = vsub.s32 0, %v4511
    %v4513 = vrot.slane %v4493, %v4512
    %v4514 = vlaneseq
    %v4515 = vshrl.u32 %v4514, 7
    %v4516 = vsub.s32 0, %v4515
    %v4517 = vrot.slane %v4497, %v4516
    %v4518 = vlaneseq
    %v4519 = vshrl.u32 %v4518, 7
    %v4520 = vsub.s32 0, %v4519
    %v4521 = vrot.slane %v4501, %v4520
    %v4522 = vmul.f32 %v4419, %v4509
    %v4523 = vmul.f32 %v4420, %v4513
    %v4524 = vmul.f32 %v4421, %v4517
    %v4525 = vmul.f32 %v4422, %v4521
    %v4526 = vmul.f32 %v4423, %v4509
    %v4527 = vmul.f32 %v4424, %v4513
    %v4528 = vmul.f32 %v4425, %v4517
    %v4529 = vmul.f32 %v4426, %v4521
    %v4530 = vmul.f32 %v4427, %v4509
    %v4531 = vmul.f32 %v4428, %v4513
    %v4532 = vmul.f32 %v4429, %v4517
    %v4533 = vmul.f32 %v4430, %v4521
    %v4534 = vmul.f32 %v4431, %v4509
    %v4535 = vmul.f32 %v4432, %v4513
    %v4536 = vmul.f32 %v4433, %v4517
    %v4537 = vmul.f32 %v4434, %v4521
    %v4538 = vmul.f32 %v4435, %v4509
    %v4539 = vmul.f32 %v4436, %v4513
    %v4540 = vmul.f32 %v4437, %v4517
    %v4541 = vmul.f32 %v4438, %v4521
    %v4542 = vmul.f32 %v4439, %v4509
    %v4543 = vmul.f32 %v4440, %v4513
    %v4544 = vmul.f32 %v4441, %v4517
    %v4545 = vmul.f32 %v4442, %v4521
    %v4546 = vmul.f32 %v4443, %v4509
    %v4547 = vmul.f32 %v4444, %v4513
    %v4548 = vmul.f32 %v4445, %v4517
    %v4549 = vmul.f32 %v4446, %v4521
    %v4550 = vmul.f32 %v4447, %v4509
    %v4551 = vmul.f32 %v4448, %v4513
    %v4552 = vmul.f32 %v4449, %v4517
    %v4553 = vmul.f32 %v4450, %v4521
    %v4554 = vmul.f32 %v4451, %v4509
    %v4555 = vmul.f32 %v4452, %v4513
    %v4556 = vmul.f32 %v4453, %v4517
    %v4557 = vmul.f32 %v4454, %v4521
    %v4558 = vmul.f32 %v4455, %v4509
    %v4559 = vmul.f32 %v4456, %v4513
    %v4560 = vmul.f32 %v4457, %v4517
    %v4561 = vmul.f32 %v4458, %v4521
    %v4562 = vmul.f32 %v4459, %v4509
    %v4563 = vmul.f32 %v4460, %v4513
    %v4564 = vmul.f32 %v4461, %v4517
    %v4565 = vmul.f32 %v4462, %v4521
    %v4566 = vmul.f32 %v4463, %v4509
    %v4567 = vmul.f32 %v4464, %v4513
    %v4568 = vmul.f32 %v4465, %v4517
    %v4569 = vmul.f32 %v4466, %v4521
    %v4570 = vmul.f32 %v4467, %v4509
    %v4571 = vmul.f32 %v4468, %v4513
    %v4572 = vmul.f32 %v4469, %v4517
    %v4573 = vmul.f32 %v4470, %v4521
    %v4574 = vmul.f32 %v4471, %v4509
    %v4575 = vmul.f32 %v4472, %v4513
    %v4576 = vmul.f32 %v4473, %v4517
    %v4577 = vmul.f32 %v4474, %v4521
    %v4578 = vmul.f32 %v4475, %v4509
    %v4579 = vmul.f32 %v4476, %v4513
    %v4580 = vmul.f32 %v4477, %v4517
    %v4581 = vmul.f32 %v4478, %v4521
    %v4582 = vmul.f32 %v4479, %v4509
    %v4583 = vmul.f32 %v4480, %v4513
    %v4584 = vmul.f32 %v4481, %v4517
    %v4585 = vmul.f32 %v4482, %v4521
    %v4586 = vadd.f32 %v4522, %v4523
    %v4587 = vadd.f32 %v4586, %v4524
    %v4588 = vadd.f32 %v4587, %v4525
    %4589 = vadd.xlane.f32.xlu0 %v4588
    %v4590 = vpop.xlane.xlu0 %4589
    %v4591 = vadd.f32 %v4526, %v4527
    %v4592 = vadd.f32 %v4591, %v4528
    %v4593 = vadd.f32 %v4592, %v4529
    %4594 = vadd.xlane.f32.xlu0 %v4593
    %v4595 = vpop.xlane.xlu0 %4594
    %v4596 = vadd.f32 %v4530, %v4531
    %v4597 = vadd.f32 %v4596, %v4532
    %v4598 = vadd.f32 %v4597, %v4533
    %4599 = vadd.xlane.f32.xlu0 %v4598
    %v4600 = vpop.xlane.xlu0 %4599
    %v4601 = vadd.f32 %v4534, %v4535
    %v4602 = vadd.f32 %v4601, %v4536
    %v4603 = vadd.f32 %v4602, %v4537
    %4604 = vadd.xlane.f32.xlu0 %v4603
    %v4605 = vpop.xlane.xlu0 %4604
    %v4606 = vadd.f32 %v4538, %v4539
    %v4607 = vadd.f32 %v4606, %v4540
    %v4608 = vadd.f32 %v4607, %v4541
    %4609 = vadd.xlane.f32.xlu0 %v4608
    %v4610 = vpop.xlane.xlu0 %4609
    %v4611 = vadd.f32 %v4542, %v4543
    %v4612 = vadd.f32 %v4611, %v4544
    %v4613 = vadd.f32 %v4612, %v4545
    %4614 = vadd.xlane.f32.xlu0 %v4613
    %v4615 = vpop.xlane.xlu0 %4614
    %v4616 = vadd.f32 %v4546, %v4547
    %v4617 = vadd.f32 %v4616, %v4548
    %v4618 = vadd.f32 %v4617, %v4549
    %4619 = vadd.xlane.f32.xlu0 %v4618
    %v4620 = vpop.xlane.xlu0 %4619
    %v4621 = vadd.f32 %v4550, %v4551
    %v4622 = vadd.f32 %v4621, %v4552
    %v4623 = vadd.f32 %v4622, %v4553
    %4624 = vadd.xlane.f32.xlu0 %v4623
    %v4625 = vpop.xlane.xlu0 %4624
    %v4626 = vadd.f32 %v4554, %v4555
    %v4627 = vadd.f32 %v4626, %v4556
    %v4628 = vadd.f32 %v4627, %v4557
    %4629 = vadd.xlane.f32.xlu0 %v4628
    %v4630 = vpop.xlane.xlu0 %4629
    %v4631 = vadd.f32 %v4558, %v4559
    %v4632 = vadd.f32 %v4631, %v4560
    %v4633 = vadd.f32 %v4632, %v4561
    %4634 = vadd.xlane.f32.xlu0 %v4633
    %v4635 = vpop.xlane.xlu0 %4634
    %v4636 = vadd.f32 %v4562, %v4563
    %v4637 = vadd.f32 %v4636, %v4564
    %v4638 = vadd.f32 %v4637, %v4565
    %4639 = vadd.xlane.f32.xlu0 %v4638
    %v4640 = vpop.xlane.xlu0 %4639
    %v4641 = vadd.f32 %v4566, %v4567
    %v4642 = vadd.f32 %v4641, %v4568
    %v4643 = vadd.f32 %v4642, %v4569
    %4644 = vadd.xlane.f32.xlu0 %v4643
    %v4645 = vpop.xlane.xlu0 %4644
    %v4646 = vadd.f32 %v4570, %v4571
    %v4647 = vadd.f32 %v4646, %v4572
    %v4648 = vadd.f32 %v4647, %v4573
    %4649 = vadd.xlane.f32.xlu0 %v4648
    %v4650 = vpop.xlane.xlu0 %4649
    %v4651 = vadd.f32 %v4574, %v4575
    %v4652 = vadd.f32 %v4651, %v4576
    %v4653 = vadd.f32 %v4652, %v4577
    %4654 = vadd.xlane.f32.xlu0 %v4653
    %v4655 = vpop.xlane.xlu0 %4654
    %v4656 = vadd.f32 %v4578, %v4579
    %v4657 = vadd.f32 %v4656, %v4580
    %v4658 = vadd.f32 %v4657, %v4581
    %4659 = vadd.xlane.f32.xlu0 %v4658
    %v4660 = vpop.xlane.xlu0 %4659
    %v4661 = vadd.f32 %v4582, %v4583
    %v4662 = vadd.f32 %v4661, %v4584
    %v4663 = vadd.f32 %v4662, %v4585
    %4664 = vadd.xlane.f32.xlu0 %v4663
    %v4665 = vpop.xlane.xlu0 %4664
    %v4666 = vld [vmem:[#allocation2] sm:$0x1]
    %4668 = vset.pattern.permute.xlu0 0
    %4669 = vperm.xlu0 %4668, %v4666
    %v4670 = vpop.permute.xlu0 %4669
    %v4672 = vlaneseq
    %v4673 = vshrl.u32 %v4672, 7
    %v4674 = vsub.s32 0, %v4673
    %v4675 = vrot.slane %v4670, %v4674
    %v4676 = vadd.f32 %v4590, %v4675
    %v4677 = vadd.f32 %v4595, %v4675
    %v4678 = vadd.f32 %v4600, %v4675
    %v4679 = vadd.f32 %v4605, %v4675
    %v4680 = vadd.f32 %v4610, %v4675
    %v4681 = vadd.f32 %v4615, %v4675
    %v4682 = vadd.f32 %v4620, %v4675
    %v4683 = vadd.f32 %v4625, %v4675
    %v4684 = vadd.f32 %v4630, %v4675
    %v4685 = vadd.f32 %v4635, %v4675
    %v4686 = vadd.f32 %v4640, %v4675
    %v4687 = vadd.f32 %v4645, %v4675
    %v4688 = vadd.f32 %v4650, %v4675
    %v4689 = vadd.f32 %v4655, %v4675
    %v4690 = vadd.f32 %v4660, %v4675
    %v4691 = vadd.f32 %v4665, %v4675
    %v4692 = vxor.u32 %v4676, 2147483648
    %v4693 = vxor.u32 %v4677, 2147483648
    %v4694 = vxor.u32 %v4678, 2147483648
    %v4695 = vxor.u32 %v4679, 2147483648
    %v4696 = vxor.u32 %v4680, 2147483648
    %v4697 = vxor.u32 %v4681, 2147483648
    %v4698 = vxor.u32 %v4682, 2147483648
    %v4699 = vxor.u32 %v4683, 2147483648
    %v4700 = vxor.u32 %v4684, 2147483648
    %v4701 = vxor.u32 %v4685, 2147483648
    %v4702 = vxor.u32 %v4686, 2147483648
    %v4703 = vxor.u32 %v4687, 2147483648
    %v4704 = vxor.u32 %v4688, 2147483648
    %v4705 = vxor.u32 %v4689, 2147483648
    %v4706 = vxor.u32 %v4690, 2147483648
    %v4707 = vxor.u32 %v4691, 2147483648
    %v4708 = vmul.f32 %v4692, 1.442695
    %v4709 = vpow.pop %v4708
    %v4710 = vmul.f32 %v4693, 1.442695
    %v4711 = vpow.pop %v4710
    %v4712 = vmul.f32 %v4694, 1.442695
    %v4713 = vpow.pop %v4712
    %v4714 = vmul.f32 %v4695, 1.442695
    %v4715 = vpow.pop %v4714
    %v4716 = vmul.f32 %v4696, 1.442695
    %v4717 = vpow.pop %v4716
    %v4718 = vmul.f32 %v4697, 1.442695
    %v4719 = vpow.pop %v4718
    %v4720 = vmul.f32 %v4698, 1.442695
    %v4721 = vpow.pop %v4720
    %v4722 = vmul.f32 %v4699, 1.442695
    %v4723 = vpow.pop %v4722
    %v4724 = vmul.f32 %v4700, 1.442695
    %v4725 = vpow.pop %v4724
    %v4726 = vmul.f32 %v4701, 1.442695
    %v4727 = vpow.pop %v4726
    %v4728 = vmul.f32 %v4702, 1.442695
    %v4729 = vpow.pop %v4728
    %v4730 = vmul.f32 %v4703, 1.442695
    %v4731 = vpow.pop %v4730
    %v4732 = vmul.f32 %v4704, 1.442695
    %v4733 = vpow.pop %v4732
    %v4734 = vmul.f32 %v4705, 1.442695
    %v4735 = vpow.pop %v4734
    %v4736 = vmul.f32 %v4706, 1.442695
    %v4737 = vpow.pop %v4736
    %v4738 = vmul.f32 %v4707, 1.442695
    %v4739 = vpow.pop %v4738
    %v4740 = vadd.f32 %v4709, 1.0
    %v4741 = vadd.f32 %v4711, 1.0
    %v4742 = vadd.f32 %v4713, 1.0
    %v4743 = vadd.f32 %v4715, 1.0
    %v4744 = vadd.f32 %v4717, 1.0
    %v4745 = vadd.f32 %v4719, 1.0
    %v4746 = vadd.f32 %v4721, 1.0
    %v4747 = vadd.f32 %v4723, 1.0
    %v4748 = vadd.f32 %v4725, 1.0
    %v4749 = vadd.f32 %v4727, 1.0
    %v4750 = vadd.f32 %v4729, 1.0
    %v4751 = vadd.f32 %v4731, 1.0
    %v4752 = vadd.f32 %v4733, 1.0
    %v4753 = vadd.f32 %v4735, 1.0
    %v4754 = vadd.f32 %v4737, 1.0
    %v4755 = vadd.f32 %v4739, 1.0
    %v4756 = vrcp.pop %v4740
    %v4757 = vmul.f32 1.0, %v4756
    %v4758 = vrcp.pop %v4741
    %v4759 = vmul.f32 1.0, %v4758
    %v4760 = vrcp.pop %v4742
    %v4761 = vmul.f32 1.0, %v4760
    %v4762 = vrcp.pop %v4743
    %v4763 = vmul.f32 1.0, %v4762
    %v4764 = vrcp.pop %v4744
    %v4765 = vmul.f32 1.0, %v4764
    %v4766 = vrcp.pop %v4745
    %v4767 = vmul.f32 1.0, %v4766
    %v4768 = vrcp.pop %v4746
    %v4769 = vmul.f32 1.0, %v4768
    %v4770 = vrcp.pop %v4747
    %v4771 = vmul.f32 1.0, %v4770
    %v4772 = vrcp.pop %v4748
    %v4773 = vmul.f32 1.0, %v4772
    %v4774 = vrcp.pop %v4749
    %v4775 = vmul.f32 1.0, %v4774
    %v4776 = vrcp.pop %v4750
    %v4777 = vmul.f32 1.0, %v4776
    %v4778 = vrcp.pop %v4751
    %v4779 = vmul.f32 1.0, %v4778
    %v4780 = vrcp.pop %v4752
    %v4781 = vmul.f32 1.0, %v4780
    %v4782 = vrcp.pop %v4753
    %v4783 = vmul.f32 1.0, %v4782
    %v4784 = vrcp.pop %v4754
    %v4785 = vmul.f32 1.0, %v4784
    %v4786 = vrcp.pop %v4755
    %v4787 = vmul.f32 1.0, %v4786
    %v4804 = vlaneseq
    %v4805 = vand.u32 %v4804, 127
    %v4806 = vlaneseq
    %v4807 = vshrl.u32 %v4806, 7
    %v4808 = vsub.s32 %v4805, %v4807
    %v4809 = vrot.slane %v4757, %v4808
    %v4810 = vadd.s32 %v4805, 4294967288
    %v4811 = vlaneseq
    %v4812 = vshrl.u32 %v4811, 7
    %v4813 = vsub.s32 %v4810, %v4812
    %v4814 = vrot.slane %v4759, %v4813
    %vm4815 = vcmask 130112
    %v4816 = vsel %vm4815, %v4814, %v4809
    %v4817 = vadd.s32 %v4805, 4294967280
    %v4818 = vlaneseq
    %v4819 = vshrl.u32 %v4818, 7
    %v4820 = vsub.s32 %v4817, %v4819
    %v4821 = vrot.slane %v4761, %v4820
    %vm4822 = vcmask 195712
    %v4823 = vsel %vm4822, %v4821, %v4816
    %v4824 = vadd.s32 %v4805, 4294967272
    %v4825 = vlaneseq
    %v4826 = vshrl.u32 %v4825, 7
    %v4827 = vsub.s32 %v4824, %v4826
    %v4828 = vrot.slane %v4763, %v4827
    %vm4829 = vcmask 261312
    %v4830 = vsel %vm4829, %v4828, %v4823
    %v4831 = vadd.s32 %v4805, 4294967264
    %v4832 = vlaneseq
    %v4833 = vshrl.u32 %v4832, 7
    %v4834 = vsub.s32 %v4831, %v4833
    %v4835 = vrot.slane %v4765, %v4834
    %vm4836 = vcmask 326912
    %v4837 = vsel %vm4836, %v4835, %v4830
    %v4838 = vadd.s32 %v4805, 4294967256
    %v4839 = vlaneseq
    %v4840 = vshrl.u32 %v4839, 7
    %v4841 = vsub.s32 %v4838, %v4840
    %v4842 = vrot.slane %v4767, %v4841
    %vm4843 = vcmask 392512
    %v4844 = vsel %vm4843, %v4842, %v4837
    %v4845 = vadd.s32 %v4805, 4294967248
    %v4846 = vlaneseq
    %v4847 = vshrl.u32 %v4846, 7
    %v4848 = vsub.s32 %v4845, %v4847
    %v4849 = vrot.slane %v4769, %v4848
    %vm4850 = vcmask 458112
    %v4851 = vsel %vm4850, %v4849, %v4844
    %v4852 = vadd.s32 %v4805, 4294967240
    %v4853 = vlaneseq
    %v4854 = vshrl.u32 %v4853, 7
    %v4855 = vsub.s32 %v4852, %v4854
    %v4856 = vrot.slane %v4771, %v4855
    %vm4857 = vcmask 523712
    %v4858 = vsel %vm4857, %v4856, %v4851
    %v4859 = vadd.s32 %v4805, 4294967232
    %v4860 = vlaneseq
    %v4861 = vshrl.u32 %v4860, 7
    %v4862 = vsub.s32 %v4859, %v4861
    %v4863 = vrot.slane %v4773, %v4862
    %vm4864 = vcmask 589312
    %v4865 = vsel %vm4864, %v4863, %v4858
    %v4866 = vadd.s32 %v4805, 4294967224
    %v4867 = vlaneseq
    %v4868 = vshrl.u32 %v4867, 7
    %v4869 = vsub.s32 %v4866, %v4868
    %v4870 = vrot.slane %v4775, %v4869
    %vm4871 = vcmask 654912
    %v4872 = vsel %vm4871, %v4870, %v4865
    %v4873 = vadd.s32 %v4805, 4294967216
    %v4874 = vlaneseq
    %v4875 = vshrl.u32 %v4874, 7
    %v4876 = vsub.s32 %v4873, %v4875
    %v4877 = vrot.slane %v4777, %v4876
    %vm4878 = vcmask 720512
    %v4879 = vsel %vm4878, %v4877, %v4872
    %v4880 = vadd.s32 %v4805, 4294967208
    %v4881 = vlaneseq
    %v4882 = vshrl.u32 %v4881, 7
    %v4883 = vsub.s32 %v4880, %v4882
    %v4884 = vrot.slane %v4779, %v4883
    %vm4885 = vcmask 786112
    %v4886 = vsel %vm4885, %v4884, %v4879
    %v4887 = vadd.s32 %v4805, 4294967200
    %v4888 = vlaneseq
    %v4889 = vshrl.u32 %v4888, 7
    %v4890 = vsub.s32 %v4887, %v4889
    %v4891 = vrot.slane %v4781, %v4890
    %vm4892 = vcmask 851712
    %v4893 = vsel %vm4892, %v4891, %v4886
    %v4894 = vadd.s32 %v4805, 4294967192
    %v4895 = vlaneseq
    %v4896 = vshrl.u32 %v4895, 7
    %v4897 = vsub.s32 %v4894, %v4896
    %v4898 = vrot.slane %v4783, %v4897
    %vm4899 = vcmask 917312
    %v4900 = vsel %vm4899, %v4898, %v4893
    %v4901 = vadd.s32 %v4805, 4294967184
    %v4902 = vlaneseq
    %v4903 = vshrl.u32 %v4902, 7
    %v4904 = vsub.s32 %v4901, %v4903
    %v4905 = vrot.slane %v4785, %v4904
    %vm4906 = vcmask 982912
    %v4907 = vsel %vm4906, %v4905, %v4900
    %v4908 = vadd.s32 %v4805, 4294967176
    %v4909 = vlaneseq
    %v4910 = vshrl.u32 %v4909, 7
    %v4911 = vsub.s32 %v4908, %v4910
    %v4912 = vrot.slane %v4787, %v4911
    %vm4913 = vcmask 1048512
    %v4914 = vsel %vm4913, %v4912, %v4907
    %4916 = vst [vmem:[#allocation9] sm:$0x1] %v4914
    // Predicated region
    $region58: #{tpu_custom_call.1} parent=1 // pred_check
      _
    $region59: #{tpu_custom_call.1} parent=1 // pred_check_branch
      %4918 = sbr.rel (0) target = $region61
    $region60: #{tpu_custom_call.1} parent=1 // pred_region
      %s4920 = ssub.s32 16, 16
      %4921 = vsyncadd [#allocation5], %s4920
      %s4923 = sshll.u32 [#allocation9], 4
      %s4924 = int_to_ptr.vmem [resolvable:$true] %s4923
      %4926 = dma.vmem_to_hbm [thread:$0]  %s4924, 16, %s11, [#allocation5]
    $region61: #{tpu_custom_call.1} parent=1 // pred_fallthru
      _
    // Predicated region
    $region62: #{tpu_custom_call.1} parent=1 // pred_check
      _
    $region63: #{tpu_custom_call.1} parent=1 // pred_check_branch
      %4928 = sbr.rel (0) target = $region65
    $region64: #{tpu_custom_call.1} parent=1 // pred_region
      %4929 = dma.done [#allocation5], 16
    $region65: #{tpu_custom_call.1} parent=1 // pred_fallthru
      _
    %4930 = vsyncpa [#allocation4], 1
    %4931 = vsyncpa [#allocation7], 1
    %4932 = vsyncpa [#allocation5], 1

</llo_original>
